<compile_context>
chip_gen: v5e
topology: v5e:2x2
jax: 0.10.0
libtpu: 0.0.40
codegen_flags: <defaults>
</compile_context>

<pallas_src>
import jax
import jax.numpy as jnp
import numpy as np
from jax import lax
from jax.experimental import pallas as pl
from jax.experimental.pallas import tpu as pltpu


def _basic_block_kernel(x_ref, w1_ref, b1_ref, w2_ref, b2_ref, o_ref,
                        xpad_ref, ypad_ref):
    # x_ref   : (1, H, W, Cin)  f32  un-padded input, one batch element
    # w*_ref  : (3, 3, Cin, C)  bf16 HWIO conv weights, BN scale folded in
    # b*_ref  : (1, C)          f32  folded BN shift
    # o_ref   : (1, H, W, C)    f32
    # xpad_ref: (H+2, W, Cin)   bf16 scratch, H-padded input
    # ypad_ref: (H+2, W, C)     bf16 scratch, H-padded relu(bn1(conv1(x)))
    H, W, C = o_ref.shape[1], o_ref.shape[2], o_ref.shape[3]
    Cin = x_ref.shape[3]
    HW = H * W

    x = x_ref[0]                                     # (H, W, Cin) f32

    # Build the H-padded bf16 copies in VMEM.  Only the 2 border rows are
    # zeroed; this is redone every grid step (cheap, and safe if the batch
    # axis is sharded across TensorCores).  Interior rows are overwritten.
    xpad_ref[0:1] = jnp.zeros((1, W, Cin), jnp.bfloat16)
    xpad_ref[H + 1:H + 2] = jnp.zeros((1, W, Cin), jnp.bfloat16)
    xpad_ref[1:H + 1] = x.astype(jnp.bfloat16)
    ypad_ref[0:1] = jnp.zeros((1, W, C), jnp.bfloat16)
    ypad_ref[H + 1:H + 2] = jnp.zeros((1, W, C), jnp.bfloat16)

    # Border masks for the width (dw) taps, hoisted out of the conv helper.
    col = jax.lax.broadcasted_iota(jnp.int32, (H, W, C), 1).reshape(HW, C)
    not_first_col = col > 0
    not_last_col = col < W - 1

    def conv3x3(src_pad, w):
        # src_pad: (H+2, W, cin) bf16 value; w: (3, 3, cin, C) bf16 value.
        # 9 MXU matmuls; the lhs is shared across the 3 width taps of each
        # kernel row, and every lhs slice is along the leading (H) axis.
        acc = [None, None, None]                     # one f32 accumulator per dw
        for dh in range(3):
            lhs = src_pad[dh:dh + H].reshape(HW, -1)
            for dw in range(3):
                d = jnp.dot(lhs, w[dh, dw], preferred_element_type=jnp.float32)
                acc[dw] = d if dh == 0 else acc[dw] + d
        # Width taps applied on the output side:
        #   out[:, w] = acc1[:, w] + acc0[:, w-1] + acc2[:, w+1]
        # with zero contributions outside the borders.  pltpu.roll only takes
        # non-negative shifts, so shift-by-(-1) is written as HW - 1 (circular
        # wrap-around rows are killed by the border masks anyway).
        left = jnp.where(not_first_col,
                         pltpu.roll(acc[0], shift=1, axis=0), 0.0)
        right = jnp.where(not_last_col,
                          pltpu.roll(acc[2], shift=HW - 1, axis=0), 0.0)
        return acc[1] + left + right                 # (HW, C) f32

    # ---- conv1 + bn1 (shift only) + relu ----
    y1 = jnp.maximum(conv3x3(xpad_ref[...], w1_ref[...]) + b1_ref[...], 0.0)
    ypad_ref[1:H + 1] = y1.reshape(H, W, C).astype(jnp.bfloat16)

    # ---- conv2 + bn2 (shift only) + residual + relu ----
    y2 = conv3x3(ypad_ref[...], w2_ref[...]) + b2_ref[...]
    out = jnp.maximum(y2 + x.reshape(HW, Cin), 0.0)  # residual add in f32
    o_ref[...] = out.reshape(1, H, W, C).astype(o_ref.dtype)


def basic_block_forward(x_nchw, w1_oihw, bn1, w2_oihw, bn2, eps=1e-5):
    """BasicBlock forward (stride=1, downsample=None).  x_nchw: (N, C, H, W)."""
    g1, be1, m1, v1 = bn1
    g2, be2, m2, v2 = bn2
    s1 = g1 / jnp.sqrt(v1 + eps)
    b1 = (be1 - m1 * s1).astype(jnp.float32)
    s2 = g2 / jnp.sqrt(v2 + eps)
    b2 = (be2 - m2 * s2).astype(jnp.float32)

    x = jnp.transpose(x_nchw, (0, 2, 3, 1)).astype(jnp.float32)   # NHWC
    N, H, W, Cin = x.shape
    C = w1_oihw.shape[0]
    assert Cin == C, "stride=1 / no-downsample BasicBlock needs Cin == C"

    # PyTorch (Cout, Cin, kh, kw) -> HWIO (kh, kw, Cin, Cout), BN scale folded
    # into the weights, cast to bf16 for the MXU (one-time host work).
    w1 = (jnp.transpose(w1_oihw, (2, 3, 1, 0)) * s1[None, None, None, :]
          ).astype(jnp.bfloat16)
    w2 = (jnp.transpose(w2_oihw, (2, 3, 1, 0)) * s2[None, None, None, :]
          ).astype(jnp.bfloat16)

    out_nhwc = pl.pallas_call(
        _basic_block_kernel,
        out_shape=jax.ShapeDtypeStruct((N, H, W, C), jnp.float32),
        grid_spec=pltpu.PrefetchScalarGridSpec(
            num_scalar_prefetch=0,
            grid=(N,),
            in_specs=[
                pl.BlockSpec((1, H, W, Cin), lambda n: (n, 0, 0, 0)),  # x
                pl.BlockSpec((3, 3, Cin, C), lambda n: (0, 0, 0, 0)),  # w1
                pl.BlockSpec((1, C), lambda n: (0, 0)),                # b1
                pl.BlockSpec((3, 3, C, C), lambda n: (0, 0, 0, 0)),    # w2
                pl.BlockSpec((1, C), lambda n: (0, 0)),                # b2
            ],
            out_specs=pl.BlockSpec((1, H, W, C), lambda n: (n, 0, 0, 0)),
            scratch_shapes=[
                pltpu.VMEM((H + 2, W, Cin), jnp.bfloat16),   # H-padded x
                pltpu.VMEM((H + 2, W, C), jnp.bfloat16),     # H-padded y1
            ],
        ),
        compiler_params=pltpu.CompilerParams(
            dimension_semantics=("parallel",)),   # batch elements independent
    )(x, w1, b1.reshape(1, C), w2, b2.reshape(1, C))

    return jnp.transpose(out_nhwc, (0, 3, 1, 2))   # back to NCHW


def _reference(x, w1, bn1, w2, bn2, eps=1e-5):
    """Pure-JAX f32 NCHW reference matching the PyTorch BasicBlock (eval BN)."""
    def bn(y, p):
        g, b, m, v = p
        inv = g / jnp.sqrt(v + eps)
        return (y - m[None, :, None, None]) * inv[None, :, None, None] \
            + b[None, :, None, None]
    dn = ('NCHW', 'OIHW', 'NCHW')
    y = lax.conv_general_dilated(x, w1, (1, 1), ((1, 1), (1, 1)),
                                 dimension_numbers=dn)
    y = jnp.maximum(bn(y, bn1), 0.0)
    y = lax.conv_general_dilated(y, w2, (1, 1), ((1, 1), (1, 1)),
                                 dimension_numbers=dn)
    y = bn(y, bn2) + x
    return jnp.maximum(y, 0.0)


if __name__ == "__main__":
    N, C, H, W = 2, 4, 16, 16          # in_channel == channel, stride=1
    key = jax.random.PRNGKey(0)
    ks = jax.random.split(key, 11)

    x = jax.random.normal(ks[0], (N, C, H, W), jnp.float32)
    w1 = jax.random.normal(ks[1], (C, C, 3, 3), jnp.float32) * 0.1
    w2 = jax.random.normal(ks[2], (C, C, 3, 3), jnp.float32) * 0.1
    bn1 = (1.0 + 0.1 * jax.random.normal(ks[3], (C,), jnp.float32),      # gamma
           0.1 * jax.random.normal(ks[4], (C,), jnp.float32),            # beta
           0.1 * jax.random.normal(ks[5], (C,), jnp.float32),            # run_mean
           1.0 + 0.1 * jax.nn.softplus(jax.random.normal(ks[6], (C,))))  # run_var
    bn2 = (1.0 + 0.1 * jax.random.normal(ks[7], (C,), jnp.float32),
           0.1 * jax.random.normal(ks[8], (C,), jnp.float32),
           0.1 * jax.random.normal(ks[9], (C,), jnp.float32),
           1.0 + 0.1 * jax.nn.softplus(jax.random.normal(ks[10], (C,))))

    out = basic_block_forward(x, w1, bn1, w2, bn2)
    out = jax.block_until_ready(out)

    ref = jax.block_until_ready(_reference(x, w1, bn1, w2, bn2))
    assert out.shape == (N, C, H, W)
    # bf16 matmul inputs (f32 accumulation) vs an all-f32 reference:
    # tolerance loosened accordingly.
    np.testing.assert_allclose(np.asarray(out), np.asarray(ref),
                               rtol=2e-2, atol=2e-2)
    print("KERNEL_OK")
</pallas_src>

<mosaic_0001>
module attributes {stable_mosaic.version = 11 : i64} {
  func.func @_basic_block_kernel(%arg0: i32, %arg1: memref<1x16x16x4xf32, #tpu.memory_space<vmem>>, %arg2: memref<3x3x4x4xbf16, #tpu.memory_space<vmem>>, %arg3: memref<1x4xf32, #tpu.memory_space<vmem>>, %arg4: memref<3x3x4x4xbf16, #tpu.memory_space<vmem>>, %arg5: memref<1x4xf32, #tpu.memory_space<vmem>>, %arg6: memref<1x16x16x4xf32, #tpu.memory_space<vmem>>, %arg7: memref<18x16x4xbf16, #tpu.memory_space<vmem>>, %arg8: memref<18x16x4xbf16, #tpu.memory_space<vmem>>) attributes {dimension_semantics = [#tpu.dimension_semantics<parallel>], iteration_bounds = array<i64: 2>, scalar_prefetch = 0 : i64, scratch_operands = 2 : i64, tpu.core_type = #tpu.core_type<tc>, window_params = [{transform_indices = @transform_0, window_bounds = array<i64: 1, 16, 16, 4>}, {pipeline_mode = #tpu.pipeline_mode<synchronous>, transform_indices = @transform_1, window_bounds = array<i64: 3, 3, 4, 4>}, {pipeline_mode = #tpu.pipeline_mode<synchronous>, transform_indices = @transform_2, window_bounds = array<i64: 1, 4>}, {pipeline_mode = #tpu.pipeline_mode<synchronous>, transform_indices = @transform_3, window_bounds = array<i64: 3, 3, 4, 4>}, {pipeline_mode = #tpu.pipeline_mode<synchronous>, transform_indices = @transform_4, window_bounds = array<i64: 1, 4>}, {transform_indices = @transform_5, window_bounds = array<i64: 1, 16, 16, 4>}]} {
    %c0 = arith.constant 0 : index
    %c0_0 = arith.constant 0 : index
    %c0_1 = arith.constant 0 : index
    %c0_2 = arith.constant 0 : index
    %0 = vector.load %arg1[%c0, %c0_0, %c0_1, %c0_2] : memref<1x16x16x4xf32, #tpu.memory_space<vmem>>, vector<1x16x16x4xf32>
    %1 = vector.shape_cast %0 : vector<1x16x16x4xf32> to vector<16x16x4xf32>
    %cst = arith.constant 0.000000e+00 : bf16
    %2 = vector.broadcast %cst : bf16 to vector<1x16x4xbf16>
    %c0_3 = arith.constant 0 : index
    %c0_4 = arith.constant 0 : index
    %c0_5 = arith.constant 0 : index
    %3 = vector.load %arg7[%c0_3, %c0_4, %c0_5] : memref<18x16x4xbf16, #tpu.memory_space<vmem>>, vector<1x16x4xbf16>
    tpu.vector_store %arg7[%c0_3, %c0_4, %c0_5], %2 {strides = array<i32>} : memref<18x16x4xbf16, #tpu.memory_space<vmem>>, vector<1x16x4xbf16>,
    %cst_6 = arith.constant 0.000000e+00 : bf16
    %4 = vector.broadcast %cst_6 : bf16 to vector<1x16x4xbf16>
    %c17 = arith.constant 17 : index
    %c0_7 = arith.constant 0 : index
    %c0_8 = arith.constant 0 : index
    %5 = vector.load %arg7[%c17, %c0_7, %c0_8] : memref<18x16x4xbf16, #tpu.memory_space<vmem>>, vector<1x16x4xbf16>
    tpu.vector_store %arg7[%c17, %c0_7, %c0_8], %4 {strides = array<i32>} : memref<18x16x4xbf16, #tpu.memory_space<vmem>>, vector<1x16x4xbf16>,
    %6 = arith.truncf %1 : vector<16x16x4xf32> to vector<16x16x4xbf16>
    %c1 = arith.constant 1 : index
    %c0_9 = arith.constant 0 : index
    %c0_10 = arith.constant 0 : index
    %7 = vector.load %arg7[%c1, %c0_9, %c0_10] : memref<18x16x4xbf16, #tpu.memory_space<vmem>>, vector<16x16x4xbf16>
    tpu.vector_store %arg7[%c1, %c0_9, %c0_10], %6 {strides = array<i32>} : memref<18x16x4xbf16, #tpu.memory_space<vmem>>, vector<16x16x4xbf16>,
    %cst_11 = arith.constant 0.000000e+00 : bf16
    %8 = vector.broadcast %cst_11 : bf16 to vector<1x16x4xbf16>
    %c0_12 = arith.constant 0 : index
    %c0_13 = arith.constant 0 : index
    %c0_14 = arith.constant 0 : index
    %9 = vector.load %arg8[%c0_12, %c0_13, %c0_14] : memref<18x16x4xbf16, #tpu.memory_space<vmem>>, vector<1x16x4xbf16>
    tpu.vector_store %arg8[%c0_12, %c0_13, %c0_14], %8 {strides = array<i32>} : memref<18x16x4xbf16, #tpu.memory_space<vmem>>, vector<1x16x4xbf16>,
    %cst_15 = arith.constant 0.000000e+00 : bf16
    %10 = vector.broadcast %cst_15 : bf16 to vector<1x16x4xbf16>
    %c17_16 = arith.constant 17 : index
    %c0_17 = arith.constant 0 : index
    %c0_18 = arith.constant 0 : index
    %11 = vector.load %arg8[%c17_16, %c0_17, %c0_18] : memref<18x16x4xbf16, #tpu.memory_space<vmem>>, vector<1x16x4xbf16>
    tpu.vector_store %arg8[%c17_16, %c0_17, %c0_18], %10 {strides = array<i32>} : memref<18x16x4xbf16, #tpu.memory_space<vmem>>, vector<1x16x4xbf16>,
    %12 = tpu.iota {dimensions = array<i32: 1>} : vector<16x16x4xi32>
    %13 = vector.shape_cast %12 : vector<16x16x4xi32> to vector<256x4xi32>
    %c0_i32 = arith.constant 0 : i32
    %14 = vector.broadcast %c0_i32 : i32 to vector<256x4xi32>
    %15 = arith.cmpi sgt, %13, %14 : vector<256x4xi32>
    %c15_i32 = arith.constant 15 : i32
    %16 = vector.broadcast %c15_i32 : i32 to vector<256x4xi32>
    %17 = arith.cmpi slt, %13, %16 : vector<256x4xi32>
    %c0_19 = arith.constant 0 : index
    %c0_20 = arith.constant 0 : index
    %c0_21 = arith.constant 0 : index
    %18 = vector.load %arg7[%c0_19, %c0_20, %c0_21] : memref<18x16x4xbf16, #tpu.memory_space<vmem>>, vector<18x16x4xbf16>
    %c0_22 = arith.constant 0 : index
    %c0_23 = arith.constant 0 : index
    %c0_24 = arith.constant 0 : index
    %c0_25 = arith.constant 0 : index
    %19 = vector.load %arg2[%c0_22, %c0_23, %c0_24, %c0_25] : memref<3x3x4x4xbf16, #tpu.memory_space<vmem>>, vector<3x3x4x4xbf16>
    %20 = vector.extract_strided_slice %18 {offsets = [0, 0, 0], sizes = [16, 16, 4], strides = [1, 1, 1]} : vector<18x16x4xbf16> to vector<16x16x4xbf16>
    %21 = vector.shape_cast %20 : vector<16x16x4xbf16> to vector<256x4xbf16>
    %22 = vector.extract_strided_slice %19 {offsets = [0, 0, 0, 0], sizes = [1, 1, 4, 4], strides = [1, 1, 1, 1]} : vector<3x3x4x4xbf16> to vector<1x1x4x4xbf16>
    %23 = vector.shape_cast %22 : vector<1x1x4x4xbf16> to vector<4x4xbf16>
    %cst_26 = arith.constant dense<0.000000e+00> : vector<256x4xf32>
    %24 = tpu.matmul %21, %23, %cst_26 {dimension_numbers = #tpu.dot_dimension_numbers<[1], [0], [0], [1], [0, 0, 1, 1], [], []>} : vector<256x4xbf16>, vector<4x4xbf16>, vector<256x4xf32> -> vector<256x4xf32>
    %25 = vector.extract_strided_slice %19 {offsets = [0, 1, 0, 0], sizes = [1, 1, 4, 4], strides = [1, 1, 1, 1]} : vector<3x3x4x4xbf16> to vector<1x1x4x4xbf16>
    %26 = vector.shape_cast %25 : vector<1x1x4x4xbf16> to vector<4x4xbf16>
    %cst_27 = arith.constant dense<0.000000e+00> : vector<256x4xf32>
    %27 = tpu.matmul %21, %26, %cst_27 {dimension_numbers = #tpu.dot_dimension_numbers<[1], [0], [0], [1], [0, 0, 1, 1], [], []>} : vector<256x4xbf16>, vector<4x4xbf16>, vector<256x4xf32> -> vector<256x4xf32>
    %28 = vector.extract_strided_slice %19 {offsets = [0, 2, 0, 0], sizes = [1, 1, 4, 4], strides = [1, 1, 1, 1]} : vector<3x3x4x4xbf16> to vector<1x1x4x4xbf16>
    %29 = vector.shape_cast %28 : vector<1x1x4x4xbf16> to vector<4x4xbf16>
    %cst_28 = arith.constant dense<0.000000e+00> : vector<256x4xf32>
    %30 = tpu.matmul %21, %29, %cst_28 {dimension_numbers = #tpu.dot_dimension_numbers<[1], [0], [0], [1], [0, 0, 1, 1], [], []>} : vector<256x4xbf16>, vector<4x4xbf16>, vector<256x4xf32> -> vector<256x4xf32>
    %31 = vector.extract_strided_slice %18 {offsets = [1, 0, 0], sizes = [16, 16, 4], strides = [1, 1, 1]} : vector<18x16x4xbf16> to vector<16x16x4xbf16>
    %32 = vector.shape_cast %31 : vector<16x16x4xbf16> to vector<256x4xbf16>
    %33 = vector.extract_strided_slice %19 {offsets = [1, 0, 0, 0], sizes = [1, 1, 4, 4], strides = [1, 1, 1, 1]} : vector<3x3x4x4xbf16> to vector<1x1x4x4xbf16>
    %34 = vector.shape_cast %33 : vector<1x1x4x4xbf16> to vector<4x4xbf16>
    %cst_29 = arith.constant dense<0.000000e+00> : vector<256x4xf32>
    %35 = tpu.matmul %32, %34, %cst_29 {dimension_numbers = #tpu.dot_dimension_numbers<[1], [0], [0], [1], [0, 0, 1, 1], [], []>} : vector<256x4xbf16>, vector<4x4xbf16>, vector<256x4xf32> -> vector<256x4xf32>
    %36 = arith.addf %24, %35 : vector<256x4xf32>
    %37 = vector.extract_strided_slice %19 {offsets = [1, 1, 0, 0], sizes = [1, 1, 4, 4], strides = [1, 1, 1, 1]} : vector<3x3x4x4xbf16> to vector<1x1x4x4xbf16>
    %38 = vector.shape_cast %37 : vector<1x1x4x4xbf16> to vector<4x4xbf16>
    %cst_30 = arith.constant dense<0.000000e+00> : vector<256x4xf32>
    %39 = tpu.matmul %32, %38, %cst_30 {dimension_numbers = #tpu.dot_dimension_numbers<[1], [0], [0], [1], [0, 0, 1, 1], [], []>} : vector<256x4xbf16>, vector<4x4xbf16>, vector<256x4xf32> -> vector<256x4xf32>
    %40 = arith.addf %27, %39 : vector<256x4xf32>
    %41 = vector.extract_strided_slice %19 {offsets = [1, 2, 0, 0], sizes = [1, 1, 4, 4], strides = [1, 1, 1, 1]} : vector<3x3x4x4xbf16> to vector<1x1x4x4xbf16>
    %42 = vector.shape_cast %41 : vector<1x1x4x4xbf16> to vector<4x4xbf16>
    %cst_31 = arith.constant dense<0.000000e+00> : vector<256x4xf32>
    %43 = tpu.matmul %32, %42, %cst_31 {dimension_numbers = #tpu.dot_dimension_numbers<[1], [0], [0], [1], [0, 0, 1, 1], [], []>} : vector<256x4xbf16>, vector<4x4xbf16>, vector<256x4xf32> -> vector<256x4xf32>
    %44 = arith.addf %30, %43 : vector<256x4xf32>
    %45 = vector.extract_strided_slice %18 {offsets = [2, 0, 0], sizes = [16, 16, 4], strides = [1, 1, 1]} : vector<18x16x4xbf16> to vector<16x16x4xbf16>
    %46 = vector.shape_cast %45 : vector<16x16x4xbf16> to vector<256x4xbf16>
    %47 = vector.extract_strided_slice %19 {offsets = [2, 0, 0, 0], sizes = [1, 1, 4, 4], strides = [1, 1, 1, 1]} : vector<3x3x4x4xbf16> to vector<1x1x4x4xbf16>
    %48 = vector.shape_cast %47 : vector<1x1x4x4xbf16> to vector<4x4xbf16>
    %cst_32 = arith.constant dense<0.000000e+00> : vector<256x4xf32>
    %49 = tpu.matmul %46, %48, %cst_32 {dimension_numbers = #tpu.dot_dimension_numbers<[1], [0], [0], [1], [0, 0, 1, 1], [], []>} : vector<256x4xbf16>, vector<4x4xbf16>, vector<256x4xf32> -> vector<256x4xf32>
    %50 = arith.addf %36, %49 : vector<256x4xf32>
    %51 = vector.extract_strided_slice %19 {offsets = [2, 1, 0, 0], sizes = [1, 1, 4, 4], strides = [1, 1, 1, 1]} : vector<3x3x4x4xbf16> to vector<1x1x4x4xbf16>
    %52 = vector.shape_cast %51 : vector<1x1x4x4xbf16> to vector<4x4xbf16>
    %cst_33 = arith.constant dense<0.000000e+00> : vector<256x4xf32>
    %53 = tpu.matmul %46, %52, %cst_33 {dimension_numbers = #tpu.dot_dimension_numbers<[1], [0], [0], [1], [0, 0, 1, 1], [], []>} : vector<256x4xbf16>, vector<4x4xbf16>, vector<256x4xf32> -> vector<256x4xf32>
    %54 = arith.addf %40, %53 : vector<256x4xf32>
    %55 = vector.extract_strided_slice %19 {offsets = [2, 2, 0, 0], sizes = [1, 1, 4, 4], strides = [1, 1, 1, 1]} : vector<3x3x4x4xbf16> to vector<1x1x4x4xbf16>
    %56 = vector.shape_cast %55 : vector<1x1x4x4xbf16> to vector<4x4xbf16>
    %cst_34 = arith.constant dense<0.000000e+00> : vector<256x4xf32>
    %57 = tpu.matmul %46, %56, %cst_34 {dimension_numbers = #tpu.dot_dimension_numbers<[1], [0], [0], [1], [0, 0, 1, 1], [], []>} : vector<256x4xbf16>, vector<4x4xbf16>, vector<256x4xf32> -> vector<256x4xf32>
    %58 = arith.addf %44, %57 : vector<256x4xf32>
    %c1_i32 = arith.constant 1 : i32
    %59 = tpu.dynamic_rotate %50 by %c1_i32 dim 0 : vector<256x4xf32>, i32 -> vector<256x4xf32>
    %cst_35 = arith.constant 0.000000e+00 : f32
    %60 = vector.broadcast %cst_35 : f32 to vector<256x4xf32>
    %61 = arith.select %15, %59, %60 : vector<256x4xi1>, vector<256x4xf32>
    %c255_i32 = arith.constant 255 : i32
    %62 = tpu.dynamic_rotate %58 by %c255_i32 dim 0 : vector<256x4xf32>, i32 -> vector<256x4xf32>
    %cst_36 = arith.constant 0.000000e+00 : f32
    %63 = vector.broadcast %cst_36 : f32 to vector<256x4xf32>
    %64 = arith.select %17, %62, %63 : vector<256x4xi1>, vector<256x4xf32>
    %65 = arith.addf %54, %61 : vector<256x4xf32>
    %66 = arith.addf %65, %64 : vector<256x4xf32>
    %c0_37 = arith.constant 0 : index
    %c0_38 = arith.constant 0 : index
    %67 = vector.load %arg3[%c0_37, %c0_38] : memref<1x4xf32, #tpu.memory_space<vmem>>, vector<1x4xf32>
    %68 = vector.broadcast %67 : vector<1x4xf32> to vector<256x4xf32>
    %69 = arith.addf %66, %68 : vector<256x4xf32>
    %cst_39 = arith.constant 0.000000e+00 : f32
    %70 = vector.broadcast %cst_39 : f32 to vector<256x4xf32>
    %71 = arith.maximumf %69, %70 : vector<256x4xf32>
    %72 = vector.shape_cast %71 : vector<256x4xf32> to vector<16x16x4xf32>
    %73 = arith.truncf %72 : vector<16x16x4xf32> to vector<16x16x4xbf16>
    %c1_40 = arith.constant 1 : index
    %c0_41 = arith.constant 0 : index
    %c0_42 = arith.constant 0 : index
    %74 = vector.load %arg8[%c1_40, %c0_41, %c0_42] : memref<18x16x4xbf16, #tpu.memory_space<vmem>>, vector<16x16x4xbf16>
    tpu.vector_store %arg8[%c1_40, %c0_41, %c0_42], %73 {strides = array<i32>} : memref<18x16x4xbf16, #tpu.memory_space<vmem>>, vector<16x16x4xbf16>,
    %c0_43 = arith.constant 0 : index
    %c0_44 = arith.constant 0 : index
    %c0_45 = arith.constant 0 : index
    %75 = vector.load %arg8[%c0_43, %c0_44, %c0_45] : memref<18x16x4xbf16, #tpu.memory_space<vmem>>, vector<18x16x4xbf16>
    %c0_46 = arith.constant 0 : index
    %c0_47 = arith.constant 0 : index
    %c0_48 = arith.constant 0 : index
    %c0_49 = arith.constant 0 : index
    %76 = vector.load %arg4[%c0_46, %c0_47, %c0_48, %c0_49] : memref<3x3x4x4xbf16, #tpu.memory_space<vmem>>, vector<3x3x4x4xbf16>
    %77 = vector.extract_strided_slice %75 {offsets = [0, 0, 0], sizes = [16, 16, 4], strides = [1, 1, 1]} : vector<18x16x4xbf16> to vector<16x16x4xbf16>
    %78 = vector.shape_cast %77 : vector<16x16x4xbf16> to vector<256x4xbf16>
    %79 = vector.extract_strided_slice %76 {offsets = [0, 0, 0, 0], sizes = [1, 1, 4, 4], strides = [1, 1, 1, 1]} : vector<3x3x4x4xbf16> to vector<1x1x4x4xbf16>
    %80 = vector.shape_cast %79 : vector<1x1x4x4xbf16> to vector<4x4xbf16>
    %cst_50 = arith.constant dense<0.000000e+00> : vector<256x4xf32>
    %81 = tpu.matmul %78, %80, %cst_50 {dimension_numbers = #tpu.dot_dimension_numbers<[1], [0], [0], [1], [0, 0, 1, 1], [], []>} : vector<256x4xbf16>, vector<4x4xbf16>, vector<256x4xf32> -> vector<256x4xf32>
    %82 = vector.extract_strided_slice %76 {offsets = [0, 1, 0, 0], sizes = [1, 1, 4, 4], strides = [1, 1, 1, 1]} : vector<3x3x4x4xbf16> to vector<1x1x4x4xbf16>
    %83 = vector.shape_cast %82 : vector<1x1x4x4xbf16> to vector<4x4xbf16>
    %cst_51 = arith.constant dense<0.000000e+00> : vector<256x4xf32>
    %84 = tpu.matmul %78, %83, %cst_51 {dimension_numbers = #tpu.dot_dimension_numbers<[1], [0], [0], [1], [0, 0, 1, 1], [], []>} : vector<256x4xbf16>, vector<4x4xbf16>, vector<256x4xf32> -> vector<256x4xf32>
    %85 = vector.extract_strided_slice %76 {offsets = [0, 2, 0, 0], sizes = [1, 1, 4, 4], strides = [1, 1, 1, 1]} : vector<3x3x4x4xbf16> to vector<1x1x4x4xbf16>
    %86 = vector.shape_cast %85 : vector<1x1x4x4xbf16> to vector<4x4xbf16>
    %cst_52 = arith.constant dense<0.000000e+00> : vector<256x4xf32>
    %87 = tpu.matmul %78, %86, %cst_52 {dimension_numbers = #tpu.dot_dimension_numbers<[1], [0], [0], [1], [0, 0, 1, 1], [], []>} : vector<256x4xbf16>, vector<4x4xbf16>, vector<256x4xf32> -> vector<256x4xf32>
    %88 = vector.extract_strided_slice %75 {offsets = [1, 0, 0], sizes = [16, 16, 4], strides = [1, 1, 1]} : vector<18x16x4xbf16> to vector<16x16x4xbf16>
    %89 = vector.shape_cast %88 : vector<16x16x4xbf16> to vector<256x4xbf16>
    %90 = vector.extract_strided_slice %76 {offsets = [1, 0, 0, 0], sizes = [1, 1, 4, 4], strides = [1, 1, 1, 1]} : vector<3x3x4x4xbf16> to vector<1x1x4x4xbf16>
    %91 = vector.shape_cast %90 : vector<1x1x4x4xbf16> to vector<4x4xbf16>
    %cst_53 = arith.constant dense<0.000000e+00> : vector<256x4xf32>
    %92 = tpu.matmul %89, %91, %cst_53 {dimension_numbers = #tpu.dot_dimension_numbers<[1], [0], [0], [1], [0, 0, 1, 1], [], []>} : vector<256x4xbf16>, vector<4x4xbf16>, vector<256x4xf32> -> vector<256x4xf32>
    %93 = arith.addf %81, %92 : vector<256x4xf32>
    %94 = vector.extract_strided_slice %76 {offsets = [1, 1, 0, 0], sizes = [1, 1, 4, 4], strides = [1, 1, 1, 1]} : vector<3x3x4x4xbf16> to vector<1x1x4x4xbf16>
    %95 = vector.shape_cast %94 : vector<1x1x4x4xbf16> to vector<4x4xbf16>
    %cst_54 = arith.constant dense<0.000000e+00> : vector<256x4xf32>
    %96 = tpu.matmul %89, %95, %cst_54 {dimension_numbers = #tpu.dot_dimension_numbers<[1], [0], [0], [1], [0, 0, 1, 1], [], []>} : vector<256x4xbf16>, vector<4x4xbf16>, vector<256x4xf32> -> vector<256x4xf32>
    %97 = arith.addf %84, %96 : vector<256x4xf32>
    %98 = vector.extract_strided_slice %76 {offsets = [1, 2, 0, 0], sizes = [1, 1, 4, 4], strides = [1, 1, 1, 1]} : vector<3x3x4x4xbf16> to vector<1x1x4x4xbf16>
    %99 = vector.shape_cast %98 : vector<1x1x4x4xbf16> to vector<4x4xbf16>
    %cst_55 = arith.constant dense<0.000000e+00> : vector<256x4xf32>
    %100 = tpu.matmul %89, %99, %cst_55 {dimension_numbers = #tpu.dot_dimension_numbers<[1], [0], [0], [1], [0, 0, 1, 1], [], []>} : vector<256x4xbf16>, vector<4x4xbf16>, vector<256x4xf32> -> vector<256x4xf32>
    %101 = arith.addf %87, %100 : vector<256x4xf32>
    %102 = vector.extract_strided_slice %75 {offsets = [2, 0, 0], sizes = [16, 16, 4], strides = [1, 1, 1]} : vector<18x16x4xbf16> to vector<16x16x4xbf16>
    %103 = vector.shape_cast %102 : vector<16x16x4xbf16> to vector<256x4xbf16>
    %104 = vector.extract_strided_slice %76 {offsets = [2, 0, 0, 0], sizes = [1, 1, 4, 4], strides = [1, 1, 1, 1]} : vector<3x3x4x4xbf16> to vector<1x1x4x4xbf16>
    %105 = vector.shape_cast %104 : vector<1x1x4x4xbf16> to vector<4x4xbf16>
    %cst_56 = arith.constant dense<0.000000e+00> : vector<256x4xf32>
    %106 = tpu.matmul %103, %105, %cst_56 {dimension_numbers = #tpu.dot_dimension_numbers<[1], [0], [0], [1], [0, 0, 1, 1], [], []>} : vector<256x4xbf16>, vector<4x4xbf16>, vector<256x4xf32> -> vector<256x4xf32>
    %107 = arith.addf %93, %106 : vector<256x4xf32>
    %108 = vector.extract_strided_slice %76 {offsets = [2, 1, 0, 0], sizes = [1, 1, 4, 4], strides = [1, 1, 1, 1]} : vector<3x3x4x4xbf16> to vector<1x1x4x4xbf16>
    %109 = vector.shape_cast %108 : vector<1x1x4x4xbf16> to vector<4x4xbf16>
    %cst_57 = arith.constant dense<0.000000e+00> : vector<256x4xf32>
    %110 = tpu.matmul %103, %109, %cst_57 {dimension_numbers = #tpu.dot_dimension_numbers<[1], [0], [0], [1], [0, 0, 1, 1], [], []>} : vector<256x4xbf16>, vector<4x4xbf16>, vector<256x4xf32> -> vector<256x4xf32>
    %111 = arith.addf %97, %110 : vector<256x4xf32>
    %112 = vector.extract_strided_slice %76 {offsets = [2, 2, 0, 0], sizes = [1, 1, 4, 4], strides = [1, 1, 1, 1]} : vector<3x3x4x4xbf16> to vector<1x1x4x4xbf16>
    %113 = vector.shape_cast %112 : vector<1x1x4x4xbf16> to vector<4x4xbf16>
    %cst_58 = arith.constant dense<0.000000e+00> : vector<256x4xf32>
    %114 = tpu.matmul %103, %113, %cst_58 {dimension_numbers = #tpu.dot_dimension_numbers<[1], [0], [0], [1], [0, 0, 1, 1], [], []>} : vector<256x4xbf16>, vector<4x4xbf16>, vector<256x4xf32> -> vector<256x4xf32>
    %115 = arith.addf %101, %114 : vector<256x4xf32>
    %c1_i32_59 = arith.constant 1 : i32
    %116 = tpu.dynamic_rotate %107 by %c1_i32_59 dim 0 : vector<256x4xf32>, i32 -> vector<256x4xf32>
    %cst_60 = arith.constant 0.000000e+00 : f32
    %117 = vector.broadcast %cst_60 : f32 to vector<256x4xf32>
    %118 = arith.select %15, %116, %117 : vector<256x4xi1>, vector<256x4xf32>
    %c255_i32_61 = arith.constant 255 : i32
    %119 = tpu.dynamic_rotate %115 by %c255_i32_61 dim 0 : vector<256x4xf32>, i32 -> vector<256x4xf32>
    %cst_62 = arith.constant 0.000000e+00 : f32
    %120 = vector.broadcast %cst_62 : f32 to vector<256x4xf32>
    %121 = arith.select %17, %119, %120 : vector<256x4xi1>, vector<256x4xf32>
    %122 = arith.addf %111, %118 : vector<256x4xf32>
    %123 = arith.addf %122, %121 : vector<256x4xf32>
    %c0_63 = arith.constant 0 : index
    %c0_64 = arith.constant 0 : index
    %124 = vector.load %arg5[%c0_63, %c0_64] : memref<1x4xf32, #tpu.memory_space<vmem>>, vector<1x4xf32>
    %125 = vector.broadcast %124 : vector<1x4xf32> to vector<256x4xf32>
    %126 = arith.addf %123, %125 : vector<256x4xf32>
    %127 = vector.shape_cast %1 : vector<16x16x4xf32> to vector<256x4xf32>
    %128 = arith.addf %126, %127 : vector<256x4xf32>
    %cst_65 = arith.constant 0.000000e+00 : f32
    %129 = vector.broadcast %cst_65 : f32 to vector<256x4xf32>
    %130 = arith.maximumf %128, %129 : vector<256x4xf32>
    %131 = vector.shape_cast %130 : vector<256x4xf32> to vector<1x16x16x4xf32>
    %c0_66 = arith.constant 0 : index
    %c0_67 = arith.constant 0 : index
    %c0_68 = arith.constant 0 : index
    %c0_69 = arith.constant 0 : index
    %132 = vector.load %arg6[%c0_66, %c0_67, %c0_68, %c0_69] : memref<1x16x16x4xf32, #tpu.memory_space<vmem>>, vector<1x16x16x4xf32>
    tpu.vector_store %arg6[%c0_66, %c0_67, %c0_68, %c0_69], %131 {strides = array<i32>} : memref<1x16x16x4xf32, #tpu.memory_space<vmem>>, vector<1x16x16x4xf32>,
    return
  }
  func.func @transform_0(%arg0: i32) -> (i32, i32, i32, i32) {
    %c0_i32 = arith.constant 0 : i32
    %c0_i32_0 = arith.constant 0 : i32
    %c0_i32_1 = arith.constant 0 : i32
    %c0_i32_2 = arith.constant 0 : i32
    return %arg0, %c0_i32, %c0_i32_0, %c0_i32_1 : i32, i32, i32, i32
  }
  func.func @transform_1(%arg0: i32) -> (i32, i32, i32, i32) {
    %c0_i32 = arith.constant 0 : i32
    %c0_i32_0 = arith.constant 0 : i32
    %c0_i32_1 = arith.constant 0 : i32
    %c0_i32_2 = arith.constant 0 : i32
    %c0_i32_3 = arith.constant 0 : i32
    return %c0_i32, %c0_i32_0, %c0_i32_1, %c0_i32_2 : i32, i32, i32, i32
  }
  func.func @transform_2(%arg0: i32) -> (i32, i32) {
    %c0_i32 = arith.constant 0 : i32
    %c0_i32_0 = arith.constant 0 : i32
    %c0_i32_1 = arith.constant 0 : i32
    return %c0_i32, %c0_i32_0 : i32, i32
  }
  func.func @transform_3(%arg0: i32) -> (i32, i32, i32, i32) {
    %c0_i32 = arith.constant 0 : i32
    %c0_i32_0 = arith.constant 0 : i32
    %c0_i32_1 = arith.constant 0 : i32
    %c0_i32_2 = arith.constant 0 : i32
    %c0_i32_3 = arith.constant 0 : i32
    return %c0_i32, %c0_i32_0, %c0_i32_1, %c0_i32_2 : i32, i32, i32, i32
  }
  func.func @transform_4(%arg0: i32) -> (i32, i32) {
    %c0_i32 = arith.constant 0 : i32
    %c0_i32_0 = arith.constant 0 : i32
    %c0_i32_1 = arith.constant 0 : i32
    return %c0_i32, %c0_i32_0 : i32, i32
  }
  func.func @transform_5(%arg0: i32) -> (i32, i32, i32, i32) {
    %c0_i32 = arith.constant 0 : i32
    %c0_i32_0 = arith.constant 0 : i32
    %c0_i32_1 = arith.constant 0 : i32
    %c0_i32_2 = arith.constant 0 : i32
    return %arg0, %c0_i32, %c0_i32_0, %c0_i32_1 : i32, i32, i32, i32
  }
}

</mosaic_0001>

<llo_original>
// kernel: tpu_custom_call.1
$region0: #{tpu_custom_call.1}
  #allocation0 [shape = 'u32[]', space=smem, size = 0x4, offset = 0x4, fixed_abs, tag = 'smem constant byte address 0x4 - core index']
  #allocation1 [shape = 'u32[72,128]{1,0:T(1,128)}', space=vmem, size = 0x9000, scoped, tag = 'internal scratch']
  #allocation2 [shape = 'bf16[18,16,4]{2,1,0:T(8,128)(2,1)}', space=vmem, size = 0x12000, scoped, tag = 'scratch operand']
  #allocation3 [shape = 'bf16[18,16,4]{2,1,0:T(8,128)(2,1)}', space=vmem, size = 0x12000, scoped, tag = 'scratch operand']
  %s0 = inlined_call_operand.vmem [shape: f32[2,16,16,4], index: 0, kind: input, shape index: {}]
  %s1 = inlined_call_operand.vmem [shape: bf16[3,3,4,4], index: 1, kind: input, shape index: {}]
  %s2 = inlined_call_operand.vmem [shape: f32[1,4], index: 2, kind: input, shape index: {}]
  %s3 = inlined_call_operand.vmem [shape: bf16[3,3,4,4], index: 3, kind: input, shape index: {}]
  %s4 = inlined_call_operand.vmem [shape: f32[1,4], index: 4, kind: input, shape index: {}]
  %s5 = inlined_call_operand.vmem [shape: f32[2,16,16,4], index: 5, kind: output, shape index: {}]
  %s6 = sld [smem:[#allocation0]]
  $region53: #{tpu_custom_call.1} parent=0
    _
  %s8 = ssub.s32 1, %s6
  %s9 = scalar_select 0, %s8, %s6
  loop: start=0, step=1, limit=4
  $region2: #{tpu_custom_call.1} parent=0 // loop_pre_header
    _
  $region3: #{tpu_custom_call.1} parent=0 // loop_header
    %s11 = sphi 0, %s15
    %p12 = scmp.ge.s32.totalorder %s11, 4
    %s21 = sphi 0, %s23
    %s24 = sphi 0, %s21
    %s25 = sphi 0, %s24
    %s41 = sphi 0, %s25
    %s45 = sphi 0, %s45
    %s47 = sphi 0, %s45
    %s48 = sphi 0, %s47
    %s62 = sphi 0, %s48
    %s66 = sphi 0, %s66
    %s68 = sphi 0, %s66
    %s69 = sphi 0, %s68
    %s83 = sphi 0, %s69
    %s87 = sphi 0, %s87
    %s89 = sphi 0, %s87
    %s90 = sphi 0, %s89
    %s104 = sphi 0, %s90
    %s108 = sphi 0, %s108
    %s110 = sphi 0, %s108
    %s111 = sphi 0, %s110
    %s125 = sphi 0, %s111
    %s131 = sphi 0, %s133
    %s134 = sphi 0, %s131
    %s135 = sphi 0, %s134
    %s151 = sphi 0, %s135
  $region4: #{tpu_custom_call.1} parent=0 // loop_header_branch
    %14 = sbr.rel (%p12) target = $region8
  $region5: #{tpu_custom_call.1} parent=0 // loop_body
    %s16 = ssub.s32 %s11, 1
    %s17 = ssub.s32 %s11, 2
    %s18 = sadd.s32 %s11, 1
    %s19 = ssub.s32 %s11, %s18
    %p20 = scmp.eq.s32.totalorder %s19, 0
    %s22 = sadd.s32 %s21, 1
    %s23 = scalar_select %p20, %s21, %s22
    %p26 = pneg %p20
    %p27 = scmp.eq.s32.totalorder %s11, 1
    %p28 = por %p26, %p27
    %p29 = scmp.ne.s32.totalorder %s21, %s24
    %p30 = scmp.eq.s32.totalorder %s11, 0
    %p31 = por %p29, %p30
    %p32 = scmp.ne.s32.totalorder %s21, %s24
    %p33 = scmp.eq.s32.totalorder %s16, 1
    %p34 = por %p32, %p33
    %p35 = scmp.ne.s32.totalorder %s24, %s25
    %p36 = scmp.eq.s32.totalorder %s16, 0
    %p37 = por %p35, %p36
    %p38 = scmp.ne.s32.totalorder %s24, %s25
    %p39 = scmp.eq.s32.totalorder %s17, 1
    %p40 = por %p38, %p39
    %p42 = scmp.ne.s32.totalorder %s25, %s41
    %p43 = scmp.eq.s32.totalorder %s17, 0
    %p44 = por %p42, %p43
    %s46 = sadd.s32 %s45, 1
    %p49 = scmp.eq.s32.totalorder %s11, 1
    %p50 = scmp.ne.s32.totalorder %s45, %s47
    %p51 = scmp.eq.s32.totalorder %s11, 0
    %p52 = por %p50, %p51
    %p53 = scmp.ne.s32.totalorder %s45, %s47
    %p54 = scmp.eq.s32.totalorder %s16, 1
    %p55 = por %p53, %p54
    %p56 = scmp.ne.s32.totalorder %s47, %s48
    %p57 = scmp.eq.s32.totalorder %s16, 0
    %p58 = por %p56, %p57
    %p59 = scmp.ne.s32.totalorder %s47, %s48
    %p60 = scmp.eq.s32.totalorder %s17, 1
    %p61 = por %p59, %p60
    %p63 = scmp.ne.s32.totalorder %s48, %s62
    %p64 = scmp.eq.s32.totalorder %s17, 0
    %p65 = por %p63, %p64
    %s67 = sadd.s32 %s66, 1
    %p70 = scmp.eq.s32.totalorder %s11, 1
    %p71 = scmp.ne.s32.totalorder %s66, %s68
    %p72 = scmp.eq.s32.totalorder %s11, 0
    %p73 = por %p71, %p72
    %p74 = scmp.ne.s32.totalorder %s66, %s68
    %p75 = scmp.eq.s32.totalorder %s16, 1
    %p76 = por %p74, %p75
    %p77 = scmp.ne.s32.totalorder %s68, %s69
    %p78 = scmp.eq.s32.totalorder %s16, 0
    %p79 = por %p77, %p78
    %p80 = scmp.ne.s32.totalorder %s68, %s69
    %p81 = scmp.eq.s32.totalorder %s17, 1
    %p82 = por %p80, %p81
    %p84 = scmp.ne.s32.totalorder %s69, %s83
    %p85 = scmp.eq.s32.totalorder %s17, 0
    %p86 = por %p84, %p85
    %s88 = sadd.s32 %s87, 1
    %p91 = scmp.eq.s32.totalorder %s11, 1
    %p92 = scmp.ne.s32.totalorder %s87, %s89
    %p93 = scmp.eq.s32.totalorder %s11, 0
    %p94 = por %p92, %p93
    %p95 = scmp.ne.s32.totalorder %s87, %s89
    %p96 = scmp.eq.s32.totalorder %s16, 1
    %p97 = por %p95, %p96
    %p98 = scmp.ne.s32.totalorder %s89, %s90
    %p99 = scmp.eq.s32.totalorder %s16, 0
    %p100 = por %p98, %p99
    %p101 = scmp.ne.s32.totalorder %s89, %s90
    %p102 = scmp.eq.s32.totalorder %s17, 1
    %p103 = por %p101, %p102
    %p105 = scmp.ne.s32.totalorder %s90, %s104
    %p106 = scmp.eq.s32.totalorder %s17, 0
    %p107 = por %p105, %p106
    %s109 = sadd.s32 %s108, 1
    %p112 = scmp.eq.s32.totalorder %s11, 1
    %p113 = scmp.ne.s32.totalorder %s108, %s110
    %p114 = scmp.eq.s32.totalorder %s11, 0
    %p115 = por %p113, %p114
    %p116 = scmp.ne.s32.totalorder %s108, %s110
    %p117 = scmp.eq.s32.totalorder %s16, 1
    %p118 = por %p116, %p117
    %p119 = scmp.ne.s32.totalorder %s110, %s111
    %p120 = scmp.eq.s32.totalorder %s16, 0
    %p121 = por %p119, %p120
    %p122 = scmp.ne.s32.totalorder %s110, %s111
    %p123 = scmp.eq.s32.totalorder %s17, 1
    %p124 = por %p122, %p123
    %p126 = scmp.ne.s32.totalorder %s111, %s125
    %p127 = scmp.eq.s32.totalorder %s17, 0
    %p128 = por %p126, %p127
    %s129 = ssub.s32 %s11, %s18
    %p130 = scmp.eq.s32.totalorder %s129, 0
    %s132 = sadd.s32 %s131, 1
    %s133 = scalar_select %p130, %s131, %s132
    %p136 = pneg %p130
    %p137 = scmp.eq.s32.totalorder %s11, 1
    %p138 = por %p136, %p137
    %p139 = scmp.ne.s32.totalorder %s131, %s134
    %p140 = scmp.eq.s32.totalorder %s11, 0
    %p141 = por %p139, %p140
    %p142 = scmp.ne.s32.totalorder %s131, %s134
    %p143 = scmp.eq.s32.totalorder %s16, 1
    %p144 = por %p142, %p143
    %p145 = scmp.ne.s32.totalorder %s134, %s135
    %p146 = scmp.eq.s32.totalorder %s16, 0
    %p147 = por %p145, %p146
    %p148 = scmp.ne.s32.totalorder %s134, %s135
    %p149 = scmp.eq.s32.totalorder %s17, 1
    %p150 = por %p148, %p149
    %p152 = scmp.ne.s32.totalorder %s135, %s151
    %p153 = scmp.eq.s32.totalorder %s17, 0
    %p154 = por %p152, %p153
    %p155 = scmp.le.s32.totalorder 1, %s11
    %p156 = scmp.lt.s32.totalorder %s11, 3
    %p157 = pnand %p155, %p156
    %p158 = pneg %p157
    // Predicated region
    $region9: #{tpu_custom_call.1} parent=5 // pred_check
      _
    $region10: #{tpu_custom_call.1} parent=5 // pred_check_branch
      %160 = sbr.rel (%p157) target = $region12
    $region11: #{tpu_custom_call.1} parent=5 // pred_region
      %s161 = ssub.s32 %s11, 1
      // Predicated region
      $region13: #{tpu_custom_call.1} parent=11 // pred_check
        %p162 = pneg %p58
      $region14: #{tpu_custom_call.1} parent=11 // pred_check_branch
        %164 = sbr.rel (%p162) target = $region16
      $region15: #{tpu_custom_call.1} parent=11 // pred_region
        _
      $region16: #{tpu_custom_call.1} parent=11 // pred_fallthru
        _
      // Predicated region
      $region17: #{tpu_custom_call.1} parent=11 // pred_check
        %p165 = pneg %p79
      $region18: #{tpu_custom_call.1} parent=11 // pred_check_branch
        %167 = sbr.rel (%p165) target = $region20
      $region19: #{tpu_custom_call.1} parent=11 // pred_region
        _
      $region20: #{tpu_custom_call.1} parent=11 // pred_fallthru
        _
      // Predicated region
      $region21: #{tpu_custom_call.1} parent=11 // pred_check
        %p168 = pneg %p100
      $region22: #{tpu_custom_call.1} parent=11 // pred_check_branch
        %170 = sbr.rel (%p168) target = $region24
      $region23: #{tpu_custom_call.1} parent=11 // pred_region
        _
      $region24: #{tpu_custom_call.1} parent=11 // pred_fallthru
        _
      // Predicated region
      $region25: #{tpu_custom_call.1} parent=11 // pred_check
        %p171 = pneg %p121
      $region26: #{tpu_custom_call.1} parent=11 // pred_check_branch
        %173 = sbr.rel (%p171) target = $region28
      $region27: #{tpu_custom_call.1} parent=11 // pred_region
        _
      $region28: #{tpu_custom_call.1} parent=11 // pred_fallthru
        _
    $region12: #{tpu_custom_call.1} parent=5 // pred_fallthru
      _
    %p174 = scmp.lt.s32.totalorder %s11, 2
    // Predicated region
    $region29: #{tpu_custom_call.1} parent=5 // pred_check
      %p175 = pneg %p174
    $region30: #{tpu_custom_call.1} parent=5 // pred_check_branch
      %177 = sbr.rel (%p175) target = $region32
    $region31: #{tpu_custom_call.1} parent=5 // pred_region
      // Predicated region
      $region33: #{tpu_custom_call.1} parent=31 // pred_check
        %p178 = pneg %p31
      $region34: #{tpu_custom_call.1} parent=31 // pred_check_branch
        %180 = sbr.rel (%p178) target = $region36
      $region35: #{tpu_custom_call.1} parent=31 // pred_region
        %p181 = scmp.lt.s32.totalorder %s11, 1
        %s182 = scalar_select %p181, %s11, 1
        %s183 = smul.addr %s182, 32
        %s184 = smul.addr %s183, 8
        %s185 = scalar_lea.vmem %s0, %s184
      $region36: #{tpu_custom_call.1} parent=31 // pred_fallthru
        _
    $region32: #{tpu_custom_call.1} parent=5 // pred_fallthru
      _
    %p186 = scmp.le.s32.totalorder 1, %s11
    %p187 = scmp.lt.s32.totalorder %s11, 3
    %p188 = pnand %p186, %p187
    %p189 = pneg %p188
    // Predicated region
    $region37: #{tpu_custom_call.1} parent=5 // pred_check
      _
    $region38: #{tpu_custom_call.1} parent=5 // pred_check_branch
      %191 = sbr.rel (%p188) target = $region40
    $region39: #{tpu_custom_call.1} parent=5 // pred_region
      %s192 = ssub.s32 %s11, 1
      %p193 = scmp.lt.s32.totalorder %s16, 1
      %s194 = scalar_select %p193, %s16, 1
      %s195 = smul.addr %s194, 32
      %s196 = smul.addr %s195, 8
      %s197 = scalar_lea.vmem %s0, %s196
      %p198 = pneg %p37
      %p199 = pneg %p34
      %p200 = pneg %p58
      %p201 = pneg %p55
      %p202 = pneg %p79
      %p203 = pneg %p76
      %p204 = pneg %p100
      %p205 = pneg %p97
      %p206 = pneg %p121
      %p207 = pneg %p118
      %p208 = pneg %p147
      %p209 = pneg %p144
      %p210 = scmp.lt.s32.totalorder %s16, 1
      %s211 = scalar_select %p210, %s16, 1
      %s212 = smul.addr %s211, 32
      %s213 = smul.addr %s212, 8
      %s214 = scalar_lea.vmem %s5, %s213
      %p215 = scmp.lt.s32.totalorder %s16, 1
      %s216 = scalar_select %p215, %s16, 1
      %s217 = smul.addr %s216, 32
      %s218 = smul.addr %s217, 8
      %s219 = scalar_lea.vmem %s0, %s218
      %p220 = scmp.lt.s32.totalorder %s16, 1
      %s221 = scalar_select %p220, %s16, 1
      %s222 = smul.addr %s221, 32
      %s223 = smul.addr %s222, 8
      %s224 = scalar_lea.vmem %s5, %s223
      %v226 = vld [vmem:[%s219] sm:$0xff]
      %v227 = vld [vmem:[%s219 + $0x8] sm:$0xff]
      %v228 = vld [vmem:[%s219 + $0x10] sm:$0xff]
      %v229 = vld [vmem:[%s219 + $0x18] sm:$0xff]
      %v230 = vld [vmem:[%s219 + $0x20] sm:$0xff]
      %v231 = vld [vmem:[%s219 + $0x28] sm:$0xff]
      %v232 = vld [vmem:[%s219 + $0x30] sm:$0xff]
      %v233 = vld [vmem:[%s219 + $0x38] sm:$0xff]
      %v234 = vld [vmem:[%s219 + $0x40] sm:$0xff]
      %v235 = vld [vmem:[%s219 + $0x48] sm:$0xff]
      %v236 = vld [vmem:[%s219 + $0x50] sm:$0xff]
      %v237 = vld [vmem:[%s219 + $0x58] sm:$0xff]
      %v238 = vld [vmem:[%s219 + $0x60] sm:$0xff]
      %v239 = vld [vmem:[%s219 + $0x68] sm:$0xff]
      %v240 = vld [vmem:[%s219 + $0x70] sm:$0xff]
      %v241 = vld [vmem:[%s219 + $0x78] sm:$0xff]
      %v242 = vld [vmem:[%s219 + $0x80] sm:$0xff]
      %v243 = vld [vmem:[%s219 + $0x88] sm:$0xff]
      %v244 = vld [vmem:[%s219 + $0x90] sm:$0xff]
      %v245 = vld [vmem:[%s219 + $0x98] sm:$0xff]
      %v246 = vld [vmem:[%s219 + $0xa0] sm:$0xff]
      %v247 = vld [vmem:[%s219 + $0xa8] sm:$0xff]
      %v248 = vld [vmem:[%s219 + $0xb0] sm:$0xff]
      %v249 = vld [vmem:[%s219 + $0xb8] sm:$0xff]
      %v250 = vld [vmem:[%s219 + $0xc0] sm:$0xff]
      %v251 = vld [vmem:[%s219 + $0xc8] sm:$0xff]
      %v252 = vld [vmem:[%s219 + $0xd0] sm:$0xff]
      %v253 = vld [vmem:[%s219 + $0xd8] sm:$0xff]
      %v254 = vld [vmem:[%s219 + $0xe0] sm:$0xff]
      %v255 = vld [vmem:[%s219 + $0xe8] sm:$0xff]
      %v256 = vld [vmem:[%s219 + $0xf0] sm:$0xff]
      %v257 = vld [vmem:[%s219 + $0xf8] sm:$0xff]
      %vm258 = vcmask 27648
      %259 = vst.msk [vmem:[#allocation2] sm:$0xf] %vm258, 0
      %260 = vst.msk [vmem:[#allocation2 + $0x4] sm:$0xf] %vm258, 0
      %s261 = scalar_lea.vmem [#allocation2], 136
      %262 = vst.msk [vmem:[%s261] sm:$0xf] %vm258, 0
      %263 = vst.msk [vmem:[%s261 + $0x4] sm:$0xf] %vm258, 0
      %v264 = vpack.c.bf16 %v226, %v226
      %v265 = vpack.c.bf16 %v227, %v227
      %v266 = vpack.c.bf16 %v228, %v228
      %v267 = vpack.c.bf16 %v229, %v229
      %v268 = vpack.c.bf16 %v230, %v230
      %v269 = vpack.c.bf16 %v231, %v231
      %v270 = vpack.c.bf16 %v232, %v232
      %v271 = vpack.c.bf16 %v233, %v233
      %v272 = vpack.c.bf16 %v234, %v234
      %v273 = vpack.c.bf16 %v235, %v235
      %v274 = vpack.c.bf16 %v236, %v236
      %v275 = vpack.c.bf16 %v237, %v237
      %v276 = vpack.c.bf16 %v238, %v238
      %v277 = vpack.c.bf16 %v239, %v239
      %v278 = vpack.c.bf16 %v240, %v240
      %v279 = vpack.c.bf16 %v241, %v241
      %v280 = vpack.c.bf16 %v242, %v242
      %v281 = vpack.c.bf16 %v243, %v243
      %v282 = vpack.c.bf16 %v244, %v244
      %v283 = vpack.c.bf16 %v245, %v245
      %v284 = vpack.c.bf16 %v246, %v246
      %v285 = vpack.c.bf16 %v247, %v247
      %v286 = vpack.c.bf16 %v248, %v248
      %v287 = vpack.c.bf16 %v249, %v249
      %v288 = vpack.c.bf16 %v250, %v250
      %v289 = vpack.c.bf16 %v251, %v251
      %v290 = vpack.c.bf16 %v252, %v252
      %v291 = vpack.c.bf16 %v253, %v253
      %v292 = vpack.c.bf16 %v254, %v254
      %v293 = vpack.c.bf16 %v255, %v255
      %v294 = vpack.c.bf16 %v256, %v256
      %v295 = vpack.c.bf16 %v257, %v257
      %s296 = scalar_lea.vmem [#allocation2], 8
      %297 = vst.msk [vmem:[%s296] sm:$0xf] %vm258, %v264
      %298 = vst.msk [vmem:[%s296 + $0x4] sm:$0xf] %vm258, %v265
      %299 = vst.msk [vmem:[%s296 + $0x8] sm:$0xf] %vm258, %v266
      %300 = vst.msk [vmem:[%s296 + $0xc] sm:$0xf] %vm258, %v267
      %301 = vst.msk [vmem:[%s296 + $0x10] sm:$0xf] %vm258, %v268
      %302 = vst.msk [vmem:[%s296 + $0x14] sm:$0xf] %vm258, %v269
      %303 = vst.msk [vmem:[%s296 + $0x18] sm:$0xf] %vm258, %v270
      %304 = vst.msk [vmem:[%s296 + $0x1c] sm:$0xf] %vm258, %v271
      %305 = vst.msk [vmem:[%s296 + $0x20] sm:$0xf] %vm258, %v272
      %306 = vst.msk [vmem:[%s296 + $0x24] sm:$0xf] %vm258, %v273
      %307 = vst.msk [vmem:[%s296 + $0x28] sm:$0xf] %vm258, %v274
      %308 = vst.msk [vmem:[%s296 + $0x2c] sm:$0xf] %vm258, %v275
      %309 = vst.msk [vmem:[%s296 + $0x30] sm:$0xf] %vm258, %v276
      %310 = vst.msk [vmem:[%s296 + $0x34] sm:$0xf] %vm258, %v277
      %311 = vst.msk [vmem:[%s296 + $0x38] sm:$0xf] %vm258, %v278
      %312 = vst.msk [vmem:[%s296 + $0x3c] sm:$0xf] %vm258, %v279
      %313 = vst.msk [vmem:[%s296 + $0x40] sm:$0xf] %vm258, %v280
      %314 = vst.msk [vmem:[%s296 + $0x44] sm:$0xf] %vm258, %v281
      %315 = vst.msk [vmem:[%s296 + $0x48] sm:$0xf] %vm258, %v282
      %316 = vst.msk [vmem:[%s296 + $0x4c] sm:$0xf] %vm258, %v283
      %317 = vst.msk [vmem:[%s296 + $0x50] sm:$0xf] %vm258, %v284
      %318 = vst.msk [vmem:[%s296 + $0x54] sm:$0xf] %vm258, %v285
      %319 = vst.msk [vmem:[%s296 + $0x58] sm:$0xf] %vm258, %v286
      %320 = vst.msk [vmem:[%s296 + $0x5c] sm:$0xf] %vm258, %v287
      %321 = vst.msk [vmem:[%s296 + $0x60] sm:$0xf] %vm258, %v288
      %322 = vst.msk [vmem:[%s296 + $0x64] sm:$0xf] %vm258, %v289
      %323 = vst.msk [vmem:[%s296 + $0x68] sm:$0xf] %vm258, %v290
      %324 = vst.msk [vmem:[%s296 + $0x6c] sm:$0xf] %vm258, %v291
      %325 = vst.msk [vmem:[%s296 + $0x70] sm:$0xf] %vm258, %v292
      %326 = vst.msk [vmem:[%s296 + $0x74] sm:$0xf] %vm258, %v293
      %327 = vst.msk [vmem:[%s296 + $0x78] sm:$0xf] %vm258, %v294
      %328 = vst.msk [vmem:[%s296 + $0x7c] sm:$0xf] %vm258, %v295
      %329 = vst.msk [vmem:[#allocation3] sm:$0xf] %vm258, 0
      %330 = vst.msk [vmem:[#allocation3 + $0x4] sm:$0xf] %vm258, 0
      %s331 = scalar_lea.vmem [#allocation3], 136
      %332 = vst.msk [vmem:[%s331] sm:$0xf] %vm258, 0
      %333 = vst.msk [vmem:[%s331 + $0x4] sm:$0xf] %vm258, 0
      %v334 = vlaneseq
      %v335 = vshrl.u32 %v334, 7
      %v336 = vadd.s32 %v335, 8
      %vm337 = vcmp.gt.s32.totalorder %v335, 0
      %vm338 = vcmp.gt.s32.totalorder %v336, 0
      %vm339 = vcmp.lt.s32.totalorder %v335, 15
      %vm340 = vcmp.lt.s32.totalorder %v336, 15
      %v341 = vld [vmem:[#allocation2] sm:$0xf]
      %v342 = vld [vmem:[#allocation2 + $0x4] sm:$0xf]
      %v343 = vld [vmem:[#allocation2 + $0x8] sm:$0xf]
      %v344 = vld [vmem:[#allocation2 + $0xc] sm:$0xf]
      %v345 = vld [vmem:[#allocation2 + $0x10] sm:$0xf]
      %v346 = vld [vmem:[#allocation2 + $0x14] sm:$0xf]
      %v347 = vld [vmem:[#allocation2 + $0x18] sm:$0xf]
      %v348 = vld [vmem:[#allocation2 + $0x1c] sm:$0xf]
      %v349 = vld [vmem:[#allocation2 + $0x20] sm:$0xf]
      %v350 = vld [vmem:[#allocation2 + $0x24] sm:$0xf]
      %v351 = vld [vmem:[#allocation2 + $0x28] sm:$0xf]
      %v352 = vld [vmem:[#allocation2 + $0x2c] sm:$0xf]
      %v353 = vld [vmem:[#allocation2 + $0x30] sm:$0xf]
      %v354 = vld [vmem:[#allocation2 + $0x34] sm:$0xf]
      %v355 = vld [vmem:[#allocation2 + $0x38] sm:$0xf]
      %v356 = vld [vmem:[#allocation2 + $0x3c] sm:$0xf]
      %v357 = vld [vmem:[#allocation2 + $0x40] sm:$0xf]
      %v358 = vld [vmem:[#allocation2 + $0x44] sm:$0xf]
      %v359 = vld [vmem:[#allocation2 + $0x48] sm:$0xf]
      %v360 = vld [vmem:[#allocation2 + $0x4c] sm:$0xf]
      %v361 = vld [vmem:[#allocation2 + $0x50] sm:$0xf]
      %v362 = vld [vmem:[#allocation2 + $0x54] sm:$0xf]
      %v363 = vld [vmem:[#allocation2 + $0x58] sm:$0xf]
      %v364 = vld [vmem:[#allocation2 + $0x5c] sm:$0xf]
      %v365 = vld [vmem:[#allocation2 + $0x60] sm:$0xf]
      %v366 = vld [vmem:[#allocation2 + $0x64] sm:$0xf]
      %v367 = vld [vmem:[#allocation2 + $0x68] sm:$0xf]
      %v368 = vld [vmem:[#allocation2 + $0x6c] sm:$0xf]
      %v369 = vld [vmem:[#allocation2 + $0x70] sm:$0xf]
      %v370 = vld [vmem:[#allocation2 + $0x74] sm:$0xf]
      %v371 = vld [vmem:[#allocation2 + $0x78] sm:$0xf]
      %v372 = vld [vmem:[#allocation2 + $0x7c] sm:$0xf]
      %v373 = vld [vmem:[#allocation2 + $0x80] sm:$0xf]
      %v374 = vld [vmem:[#allocation2 + $0x84] sm:$0xf]
      %v375 = vld [vmem:[#allocation2 + $0x88] sm:$0xf]
      %v376 = vld [vmem:[#allocation2 + $0x8c] sm:$0xf]
      %v377 = vld [vmem:[%s1] sm:$0x3]
      %v378 = vld [vmem:[%s1 + $0x2] sm:$0x3]
      %v379 = vld [vmem:[%s1 + $0x4] sm:$0x3]
      %v380 = vld [vmem:[%s1 + $0x6] sm:$0x3]
      %v381 = vld [vmem:[%s1 + $0x8] sm:$0x3]
      %v382 = vld [vmem:[%s1 + $0xa] sm:$0x3]
      %v383 = vld [vmem:[%s1 + $0xc] sm:$0x3]
      %v384 = vld [vmem:[%s1 + $0xe] sm:$0x3]
      %v385 = vld [vmem:[%s1 + $0x10] sm:$0x3]
      %v418 = vunpack.c.l.b16 %v343
      %v419 = vunpack.c.l.b16 %v344
      %v420 = vunpack.c.l.b16 %v345
      %v421 = vunpack.c.l.b16 %v346
      %v422 = vunpack.c.l.b16 %v347
      %v423 = vunpack.c.l.b16 %v348
      %v424 = vunpack.c.l.b16 %v349
      %v425 = vunpack.c.l.b16 %v350
      %v426 = vunpack.c.l.b16 %v351
      %v427 = vunpack.c.l.b16 %v352
      %v428 = vunpack.c.l.b16 %v353
      %v429 = vunpack.c.l.b16 %v354
      %v430 = vunpack.c.l.b16 %v355
      %v431 = vunpack.c.l.b16 %v356
      %v432 = vunpack.c.l.b16 %v357
      %v433 = vunpack.c.l.b16 %v358
      %v434 = vunpack.c.l.b16 %v359
      %v435 = vunpack.c.l.b16 %v360
      %v436 = vunpack.c.l.b16 %v361
      %v437 = vunpack.c.l.b16 %v362
      %v438 = vunpack.c.l.b16 %v363
      %v439 = vunpack.c.l.b16 %v364
      %v440 = vunpack.c.l.b16 %v365
      %v441 = vunpack.c.l.b16 %v366
      %v442 = vunpack.c.l.b16 %v367
      %v443 = vunpack.c.l.b16 %v368
      %v444 = vunpack.c.l.b16 %v369
      %v445 = vunpack.c.l.b16 %v370
      %v446 = vunpack.c.l.b16 %v371
      %v447 = vunpack.c.l.b16 %v372
      %v448 = vunpack.c.l.b16 %v373
      %v449 = vunpack.c.l.b16 %v374
      %v450 = vpack.c.b16 %v419, %v418
      %v451 = vpack.c.b16 %v421, %v420
      %v452 = vpack.c.b16 %v423, %v422
      %v453 = vpack.c.b16 %v425, %v424
      %v454 = vpack.c.b16 %v427, %v426
      %v455 = vpack.c.b16 %v429, %v428
      %v456 = vpack.c.b16 %v431, %v430
      %v457 = vpack.c.b16 %v433, %v432
      %v458 = vpack.c.b16 %v435, %v434
      %v459 = vpack.c.b16 %v437, %v436
      %v460 = vpack.c.b16 %v439, %v438
      %v461 = vpack.c.b16 %v441, %v440
      %v462 = vpack.c.b16 %v443, %v442
      %v463 = vpack.c.b16 %v445, %v444
      %v464 = vpack.c.b16 %v447, %v446
      %v465 = vpack.c.b16 %v449, %v448
      %vm466 = vcmask 31744
      %v468 = vsel %vm466, %v450, 0
      %v471 = vsel %vm466, %v451, 0
      %v474 = vsel %vm466, %v452, 0
      %v477 = vsel %vm466, %v453, 0
      %v480 = vsel %vm466, %v454, 0
      %v483 = vsel %vm466, %v455, 0
      %v486 = vsel %vm466, %v456, 0
      %v489 = vsel %vm466, %v457, 0
      %v492 = vsel %vm466, %v458, 0
      %v495 = vsel %vm466, %v459, 0
      %v498 = vsel %vm466, %v460, 0
      %v501 = vsel %vm466, %v461, 0
      %v504 = vsel %vm466, %v462, 0
      %v507 = vsel %vm466, %v463, 0
      %v510 = vsel %vm466, %v464, 0
      %v513 = vsel %vm466, %v465, 0
      %vm515 = vcmask 1041408
      %v517 = vsel %vm515, %v380, 0
      %519 = vmatpush.bf16.msra.mxu0 0
      %520 = vmatpush.bf16.msra.mxu0 0
      %521 = vmatpush.bf16.msra.mxu0 0
      %522 = vmatpush.bf16.msra.mxu0 0
      %523 = vmatpush.bf16.msra.mxu0 0
      %524 = vmatpush.bf16.msra.mxu0 0
      %525 = vmatpush.bf16.msra.mxu0 0
      %526 = vmatpush.bf16.msra.mxu0 %v517
      %527 = vmatmul.bf16.gmra.mxu0 %v468
      %v528 = vpop.f32.mrf.mxu0
      %v529 = vadd.f32 0.0, %v528
      %v530 = vpop.f32.mrf.mxu0
      %v531 = vadd.f32 0.0, %v530
      %532 = vmatmul.bf16.gmra.mxu0 %v471
      %v533 = vpop.f32.mrf.mxu0
      %v534 = vadd.f32 0.0, %v533
      %v535 = vpop.f32.mrf.mxu0
      %v536 = vadd.f32 0.0, %v535
      %537 = vmatmul.bf16.gmra.mxu0 %v474
      %v538 = vpop.f32.mrf.mxu0
      %v539 = vadd.f32 0.0, %v538
      %v540 = vpop.f32.mrf.mxu0
      %v541 = vadd.f32 0.0, %v540
      %542 = vmatmul.bf16.gmra.mxu0 %v477
      %v543 = vpop.f32.mrf.mxu0
      %v544 = vadd.f32 0.0, %v543
      %v545 = vpop.f32.mrf.mxu0
      %v546 = vadd.f32 0.0, %v545
      %547 = vmatmul.bf16.gmra.mxu0 %v480
      %v548 = vpop.f32.mrf.mxu0
      %v549 = vadd.f32 0.0, %v548
      %v550 = vpop.f32.mrf.mxu0
      %v551 = vadd.f32 0.0, %v550
      %552 = vmatmul.bf16.gmra.mxu0 %v483
      %v553 = vpop.f32.mrf.mxu0
      %v554 = vadd.f32 0.0, %v553
      %v555 = vpop.f32.mrf.mxu0
      %v556 = vadd.f32 0.0, %v555
      %557 = vmatmul.bf16.gmra.mxu0 %v486
      %v558 = vpop.f32.mrf.mxu0
      %v559 = vadd.f32 0.0, %v558
      %v560 = vpop.f32.mrf.mxu0
      %v561 = vadd.f32 0.0, %v560
      %562 = vmatmul.bf16.gmra.mxu0 %v489
      %v563 = vpop.f32.mrf.mxu0
      %v564 = vadd.f32 0.0, %v563
      %v565 = vpop.f32.mrf.mxu0
      %v566 = vadd.f32 0.0, %v565
      %567 = vmatmul.bf16.gmra.mxu0 %v492
      %v568 = vpop.f32.mrf.mxu0
      %v569 = vadd.f32 0.0, %v568
      %v570 = vpop.f32.mrf.mxu0
      %v571 = vadd.f32 0.0, %v570
      %572 = vmatmul.bf16.gmra.mxu0 %v495
      %v573 = vpop.f32.mrf.mxu0
      %v574 = vadd.f32 0.0, %v573
      %v575 = vpop.f32.mrf.mxu0
      %v576 = vadd.f32 0.0, %v575
      %577 = vmatmul.bf16.gmra.mxu0 %v498
      %v578 = vpop.f32.mrf.mxu0
      %v579 = vadd.f32 0.0, %v578
      %v580 = vpop.f32.mrf.mxu0
      %v581 = vadd.f32 0.0, %v580
      %582 = vmatmul.bf16.gmra.mxu0 %v501
      %v583 = vpop.f32.mrf.mxu0
      %v584 = vadd.f32 0.0, %v583
      %v585 = vpop.f32.mrf.mxu0
      %v586 = vadd.f32 0.0, %v585
      %587 = vmatmul.bf16.gmra.mxu0 %v504
      %v588 = vpop.f32.mrf.mxu0
      %v589 = vadd.f32 0.0, %v588
      %v590 = vpop.f32.mrf.mxu0
      %v591 = vadd.f32 0.0, %v590
      %592 = vmatmul.bf16.gmra.mxu0 %v507
      %v593 = vpop.f32.mrf.mxu0
      %v594 = vadd.f32 0.0, %v593
      %v595 = vpop.f32.mrf.mxu0
      %v596 = vadd.f32 0.0, %v595
      %597 = vmatmul.bf16.gmra.mxu0 %v510
      %v598 = vpop.f32.mrf.mxu0
      %v599 = vadd.f32 0.0, %v598
      %v600 = vpop.f32.mrf.mxu0
      %v601 = vadd.f32 0.0, %v600
      %602 = vmatmul.bf16.gmra.mxu0 %v513
      %v603 = vpop.f32.mrf.mxu0
      %v604 = vadd.f32 0.0, %v603
      %v605 = vpop.f32.mrf.mxu0
      %v606 = vadd.f32 0.0, %v605
      %607 = vdwg.mxu0
      %v610 = vunpack.c.l.b16 %v341
      %v611 = vunpack.c.l.b16 %v342
      %v612 = vpack.c.b16 %v611, %v610
      %v614 = vsel %vm466, %v612, 0
      %v617 = vsel %vm515, %v377, 0
      %619 = vmatpush.bf16.msra.mxu0 0
      %620 = vmatpush.bf16.msra.mxu0 0
      %621 = vmatpush.bf16.msra.mxu0 0
      %622 = vmatpush.bf16.msra.mxu0 0
      %623 = vmatpush.bf16.msra.mxu0 0
      %624 = vmatpush.bf16.msra.mxu0 0
      %625 = vmatpush.bf16.msra.mxu0 0
      %626 = vmatpush.bf16.msra.mxu0 %v617
      %627 = vmatmul.bf16.gmra.mxu0 %v614
      %v628 = vpop.f32.mrf.mxu0
      %v629 = vadd.f32 %v529, %v628
      %v630 = vpop.f32.mrf.mxu0
      %v631 = vadd.f32 %v531, %v630
      %632 = vmatmul.bf16.gmra.mxu0 %v468
      %v633 = vpop.f32.mrf.mxu0
      %v634 = vadd.f32 %v534, %v633
      %v635 = vpop.f32.mrf.mxu0
      %v636 = vadd.f32 %v536, %v635
      %637 = vmatmul.bf16.gmra.mxu0 %v471
      %v638 = vpop.f32.mrf.mxu0
      %v639 = vadd.f32 %v539, %v638
      %v640 = vpop.f32.mrf.mxu0
      %v641 = vadd.f32 %v541, %v640
      %642 = vmatmul.bf16.gmra.mxu0 %v474
      %v643 = vpop.f32.mrf.mxu0
      %v644 = vadd.f32 %v544, %v643
      %v645 = vpop.f32.mrf.mxu0
      %v646 = vadd.f32 %v546, %v645
      %647 = vmatmul.bf16.gmra.mxu0 %v477
      %v648 = vpop.f32.mrf.mxu0
      %v649 = vadd.f32 %v549, %v648
      %v650 = vpop.f32.mrf.mxu0
      %v651 = vadd.f32 %v551, %v650
      %652 = vmatmul.bf16.gmra.mxu0 %v480
      %v653 = vpop.f32.mrf.mxu0
      %v654 = vadd.f32 %v554, %v653
      %v655 = vpop.f32.mrf.mxu0
      %v656 = vadd.f32 %v556, %v655
      %657 = vmatmul.bf16.gmra.mxu0 %v483
      %v658 = vpop.f32.mrf.mxu0
      %v659 = vadd.f32 %v559, %v658
      %v660 = vpop.f32.mrf.mxu0
      %v661 = vadd.f32 %v561, %v660
      %662 = vmatmul.bf16.gmra.mxu0 %v486
      %v663 = vpop.f32.mrf.mxu0
      %v664 = vadd.f32 %v564, %v663
      %v665 = vpop.f32.mrf.mxu0
      %v666 = vadd.f32 %v566, %v665
      %667 = vmatmul.bf16.gmra.mxu0 %v489
      %v668 = vpop.f32.mrf.mxu0
      %v669 = vadd.f32 %v569, %v668
      %v670 = vpop.f32.mrf.mxu0
      %v671 = vadd.f32 %v571, %v670
      %672 = vmatmul.bf16.gmra.mxu0 %v492
      %v673 = vpop.f32.mrf.mxu0
      %v674 = vadd.f32 %v574, %v673
      %v675 = vpop.f32.mrf.mxu0
      %v676 = vadd.f32 %v576, %v675
      %677 = vmatmul.bf16.gmra.mxu0 %v495
      %v678 = vpop.f32.mrf.mxu0
      %v679 = vadd.f32 %v579, %v678
      %v680 = vpop.f32.mrf.mxu0
      %v681 = vadd.f32 %v581, %v680
      %682 = vmatmul.bf16.gmra.mxu0 %v498
      %v683 = vpop.f32.mrf.mxu0
      %v684 = vadd.f32 %v584, %v683
      %v685 = vpop.f32.mrf.mxu0
      %v686 = vadd.f32 %v586, %v685
      %687 = vmatmul.bf16.gmra.mxu0 %v501
      %v688 = vpop.f32.mrf.mxu0
      %v689 = vadd.f32 %v589, %v688
      %v690 = vpop.f32.mrf.mxu0
      %v691 = vadd.f32 %v591, %v690
      %692 = vmatmul.bf16.gmra.mxu0 %v504
      %v693 = vpop.f32.mrf.mxu0
      %v694 = vadd.f32 %v594, %v693
      %v695 = vpop.f32.mrf.mxu0
      %v696 = vadd.f32 %v596, %v695
      %697 = vmatmul.bf16.gmra.mxu0 %v507
      %v698 = vpop.f32.mrf.mxu0
      %v699 = vadd.f32 %v599, %v698
      %v700 = vpop.f32.mrf.mxu0
      %v701 = vadd.f32 %v601, %v700
      %702 = vmatmul.bf16.gmra.mxu0 %v510
      %v703 = vpop.f32.mrf.mxu0
      %v704 = vadd.f32 %v604, %v703
      %v705 = vpop.f32.mrf.mxu0
      %v706 = vadd.f32 %v606, %v705
      %707 = vdwg.mxu0
      %v709 = vsel %vm515, %v381, 0
      %711 = vmatpush.bf16.msra.mxu0 0
      %712 = vmatpush.bf16.msra.mxu0 0
      %713 = vmatpush.bf16.msra.mxu0 0
      %714 = vmatpush.bf16.msra.mxu0 0
      %715 = vmatpush.bf16.msra.mxu0 0
      %716 = vmatpush.bf16.msra.mxu0 0
      %717 = vmatpush.bf16.msra.mxu0 0
      %718 = vmatpush.bf16.msra.mxu0 %v709
      %719 = vmatmul.bf16.gmra.mxu0 %v468
      %v720 = vpop.f32.mrf.mxu0
      %v721 = vadd.f32 0.0, %v720
      %v722 = vpop.f32.mrf.mxu0
      %v723 = vadd.f32 0.0, %v722
      %724 = vmatmul.bf16.gmra.mxu0 %v471
      %v725 = vpop.f32.mrf.mxu0
      %v726 = vadd.f32 0.0, %v725
      %v727 = vpop.f32.mrf.mxu0
      %v728 = vadd.f32 0.0, %v727
      %729 = vmatmul.bf16.gmra.mxu0 %v474
      %v730 = vpop.f32.mrf.mxu0
      %v731 = vadd.f32 0.0, %v730
      %v732 = vpop.f32.mrf.mxu0
      %v733 = vadd.f32 0.0, %v732
      %734 = vmatmul.bf16.gmra.mxu0 %v477
      %v735 = vpop.f32.mrf.mxu0
      %v736 = vadd.f32 0.0, %v735
      %v737 = vpop.f32.mrf.mxu0
      %v738 = vadd.f32 0.0, %v737
      %739 = vmatmul.bf16.gmra.mxu0 %v480
      %v740 = vpop.f32.mrf.mxu0
      %v741 = vadd.f32 0.0, %v740
      %v742 = vpop.f32.mrf.mxu0
      %v743 = vadd.f32 0.0, %v742
      %744 = vmatmul.bf16.gmra.mxu0 %v483
      %v745 = vpop.f32.mrf.mxu0
      %v746 = vadd.f32 0.0, %v745
      %v747 = vpop.f32.mrf.mxu0
      %v748 = vadd.f32 0.0, %v747
      %749 = vmatmul.bf16.gmra.mxu0 %v486
      %v750 = vpop.f32.mrf.mxu0
      %v751 = vadd.f32 0.0, %v750
      %v752 = vpop.f32.mrf.mxu0
      %v753 = vadd.f32 0.0, %v752
      %754 = vmatmul.bf16.gmra.mxu0 %v489
      %v755 = vpop.f32.mrf.mxu0
      %v756 = vadd.f32 0.0, %v755
      %v757 = vpop.f32.mrf.mxu0
      %v758 = vadd.f32 0.0, %v757
      %759 = vmatmul.bf16.gmra.mxu0 %v492
      %v760 = vpop.f32.mrf.mxu0
      %v761 = vadd.f32 0.0, %v760
      %v762 = vpop.f32.mrf.mxu0
      %v763 = vadd.f32 0.0, %v762
      %764 = vmatmul.bf16.gmra.mxu0 %v495
      %v765 = vpop.f32.mrf.mxu0
      %v766 = vadd.f32 0.0, %v765
      %v767 = vpop.f32.mrf.mxu0
      %v768 = vadd.f32 0.0, %v767
      %769 = vmatmul.bf16.gmra.mxu0 %v498
      %v770 = vpop.f32.mrf.mxu0
      %v771 = vadd.f32 0.0, %v770
      %v772 = vpop.f32.mrf.mxu0
      %v773 = vadd.f32 0.0, %v772
      %774 = vmatmul.bf16.gmra.mxu0 %v501
      %v775 = vpop.f32.mrf.mxu0
      %v776 = vadd.f32 0.0, %v775
      %v777 = vpop.f32.mrf.mxu0
      %v778 = vadd.f32 0.0, %v777
      %779 = vmatmul.bf16.gmra.mxu0 %v504
      %v780 = vpop.f32.mrf.mxu0
      %v781 = vadd.f32 0.0, %v780
      %v782 = vpop.f32.mrf.mxu0
      %v783 = vadd.f32 0.0, %v782
      %784 = vmatmul.bf16.gmra.mxu0 %v507
      %v785 = vpop.f32.mrf.mxu0
      %v786 = vadd.f32 0.0, %v785
      %v787 = vpop.f32.mrf.mxu0
      %v788 = vadd.f32 0.0, %v787
      %789 = vmatmul.bf16.gmra.mxu0 %v510
      %v790 = vpop.f32.mrf.mxu0
      %v791 = vadd.f32 0.0, %v790
      %v792 = vpop.f32.mrf.mxu0
      %v793 = vadd.f32 0.0, %v792
      %794 = vmatmul.bf16.gmra.mxu0 %v513
      %v795 = vpop.f32.mrf.mxu0
      %v796 = vadd.f32 0.0, %v795
      %v797 = vpop.f32.mrf.mxu0
      %v798 = vadd.f32 0.0, %v797
      %799 = vdwg.mxu0
      %v801 = vsel %vm515, %v378, 0
      %803 = vmatpush.bf16.msra.mxu0 0
      %804 = vmatpush.bf16.msra.mxu0 0
      %805 = vmatpush.bf16.msra.mxu0 0
      %806 = vmatpush.bf16.msra.mxu0 0
      %807 = vmatpush.bf16.msra.mxu0 0
      %808 = vmatpush.bf16.msra.mxu0 0
      %809 = vmatpush.bf16.msra.mxu0 0
      %810 = vmatpush.bf16.msra.mxu0 %v801
      %811 = vmatmul.bf16.gmra.mxu0 %v614
      %v812 = vpop.f32.mrf.mxu0
      %v813 = vadd.f32 %v721, %v812
      %v814 = vpop.f32.mrf.mxu0
      %v815 = vadd.f32 %v723, %v814
      %816 = vmatmul.bf16.gmra.mxu0 %v468
      %v817 = vpop.f32.mrf.mxu0
      %v818 = vadd.f32 %v726, %v817
      %v819 = vpop.f32.mrf.mxu0
      %v820 = vadd.f32 %v728, %v819
      %821 = vmatmul.bf16.gmra.mxu0 %v471
      %v822 = vpop.f32.mrf.mxu0
      %v823 = vadd.f32 %v731, %v822
      %v824 = vpop.f32.mrf.mxu0
      %v825 = vadd.f32 %v733, %v824
      %826 = vmatmul.bf16.gmra.mxu0 %v474
      %v827 = vpop.f32.mrf.mxu0
      %v828 = vadd.f32 %v736, %v827
      %v829 = vpop.f32.mrf.mxu0
      %v830 = vadd.f32 %v738, %v829
      %831 = vmatmul.bf16.gmra.mxu0 %v477
      %v832 = vpop.f32.mrf.mxu0
      %v833 = vadd.f32 %v741, %v832
      %v834 = vpop.f32.mrf.mxu0
      %v835 = vadd.f32 %v743, %v834
      %836 = vmatmul.bf16.gmra.mxu0 %v480
      %v837 = vpop.f32.mrf.mxu0
      %v838 = vadd.f32 %v746, %v837
      %v839 = vpop.f32.mrf.mxu0
      %v840 = vadd.f32 %v748, %v839
      %841 = vmatmul.bf16.gmra.mxu0 %v483
      %v842 = vpop.f32.mrf.mxu0
      %v843 = vadd.f32 %v751, %v842
      %v844 = vpop.f32.mrf.mxu0
      %v845 = vadd.f32 %v753, %v844
      %846 = vmatmul.bf16.gmra.mxu0 %v486
      %v847 = vpop.f32.mrf.mxu0
      %v848 = vadd.f32 %v756, %v847
      %v849 = vpop.f32.mrf.mxu0
      %v850 = vadd.f32 %v758, %v849
      %851 = vmatmul.bf16.gmra.mxu0 %v489
      %v852 = vpop.f32.mrf.mxu0
      %v853 = vadd.f32 %v761, %v852
      %v854 = vpop.f32.mrf.mxu0
      %v855 = vadd.f32 %v763, %v854
      %856 = vmatmul.bf16.gmra.mxu0 %v492
      %v857 = vpop.f32.mrf.mxu0
      %v858 = vadd.f32 %v766, %v857
      %v859 = vpop.f32.mrf.mxu0
      %v860 = vadd.f32 %v768, %v859
      %861 = vmatmul.bf16.gmra.mxu0 %v495
      %v862 = vpop.f32.mrf.mxu0
      %v863 = vadd.f32 %v771, %v862
      %v864 = vpop.f32.mrf.mxu0
      %v865 = vadd.f32 %v773, %v864
      %866 = vmatmul.bf16.gmra.mxu0 %v498
      %v867 = vpop.f32.mrf.mxu0
      %v868 = vadd.f32 %v776, %v867
      %v869 = vpop.f32.mrf.mxu0
      %v870 = vadd.f32 %v778, %v869
      %871 = vmatmul.bf16.gmra.mxu0 %v501
      %v872 = vpop.f32.mrf.mxu0
      %v873 = vadd.f32 %v781, %v872
      %v874 = vpop.f32.mrf.mxu0
      %v875 = vadd.f32 %v783, %v874
      %876 = vmatmul.bf16.gmra.mxu0 %v504
      %v877 = vpop.f32.mrf.mxu0
      %v878 = vadd.f32 %v786, %v877
      %v879 = vpop.f32.mrf.mxu0
      %v880 = vadd.f32 %v788, %v879
      %881 = vmatmul.bf16.gmra.mxu0 %v507
      %v882 = vpop.f32.mrf.mxu0
      %v883 = vadd.f32 %v791, %v882
      %v884 = vpop.f32.mrf.mxu0
      %v885 = vadd.f32 %v793, %v884
      %886 = vmatmul.bf16.gmra.mxu0 %v510
      %v887 = vpop.f32.mrf.mxu0
      %v888 = vadd.f32 %v796, %v887
      %v889 = vpop.f32.mrf.mxu0
      %v890 = vadd.f32 %v798, %v889
      %891 = vdwg.mxu0
      %v893 = vsel %vm515, %v382, 0
      %895 = vmatpush.bf16.msra.mxu0 0
      %896 = vmatpush.bf16.msra.mxu0 0
      %897 = vmatpush.bf16.msra.mxu0 0
      %898 = vmatpush.bf16.msra.mxu0 0
      %899 = vmatpush.bf16.msra.mxu0 0
      %900 = vmatpush.bf16.msra.mxu0 0
      %901 = vmatpush.bf16.msra.mxu0 0
      %902 = vmatpush.bf16.msra.mxu0 %v893
      %903 = vmatmul.bf16.gmra.mxu0 %v468
      %v904 = vpop.f32.mrf.mxu0
      %v905 = vadd.f32 0.0, %v904
      %v906 = vpop.f32.mrf.mxu0
      %v907 = vadd.f32 0.0, %v906
      %908 = vmatmul.bf16.gmra.mxu0 %v471
      %v909 = vpop.f32.mrf.mxu0
      %v910 = vadd.f32 0.0, %v909
      %v911 = vpop.f32.mrf.mxu0
      %v912 = vadd.f32 0.0, %v911
      %913 = vmatmul.bf16.gmra.mxu0 %v474
      %v914 = vpop.f32.mrf.mxu0
      %v915 = vadd.f32 0.0, %v914
      %v916 = vpop.f32.mrf.mxu0
      %v917 = vadd.f32 0.0, %v916
      %918 = vmatmul.bf16.gmra.mxu0 %v477
      %v919 = vpop.f32.mrf.mxu0
      %v920 = vadd.f32 0.0, %v919
      %v921 = vpop.f32.mrf.mxu0
      %v922 = vadd.f32 0.0, %v921
      %923 = vmatmul.bf16.gmra.mxu0 %v480
      %v924 = vpop.f32.mrf.mxu0
      %v925 = vadd.f32 0.0, %v924
      %v926 = vpop.f32.mrf.mxu0
      %v927 = vadd.f32 0.0, %v926
      %928 = vmatmul.bf16.gmra.mxu0 %v483
      %v929 = vpop.f32.mrf.mxu0
      %v930 = vadd.f32 0.0, %v929
      %v931 = vpop.f32.mrf.mxu0
      %v932 = vadd.f32 0.0, %v931
      %933 = vmatmul.bf16.gmra.mxu0 %v486
      %v934 = vpop.f32.mrf.mxu0
      %v935 = vadd.f32 0.0, %v934
      %v936 = vpop.f32.mrf.mxu0
      %v937 = vadd.f32 0.0, %v936
      %938 = vmatmul.bf16.gmra.mxu0 %v489
      %v939 = vpop.f32.mrf.mxu0
      %v940 = vadd.f32 0.0, %v939
      %v941 = vpop.f32.mrf.mxu0
      %v942 = vadd.f32 0.0, %v941
      %943 = vmatmul.bf16.gmra.mxu0 %v492
      %v944 = vpop.f32.mrf.mxu0
      %v945 = vadd.f32 0.0, %v944
      %v946 = vpop.f32.mrf.mxu0
      %v947 = vadd.f32 0.0, %v946
      %948 = vmatmul.bf16.gmra.mxu0 %v495
      %v949 = vpop.f32.mrf.mxu0
      %v950 = vadd.f32 0.0, %v949
      %v951 = vpop.f32.mrf.mxu0
      %v952 = vadd.f32 0.0, %v951
      %953 = vmatmul.bf16.gmra.mxu0 %v498
      %v954 = vpop.f32.mrf.mxu0
      %v955 = vadd.f32 0.0, %v954
      %v956 = vpop.f32.mrf.mxu0
      %v957 = vadd.f32 0.0, %v956
      %958 = vmatmul.bf16.gmra.mxu0 %v501
      %v959 = vpop.f32.mrf.mxu0
      %v960 = vadd.f32 0.0, %v959
      %v961 = vpop.f32.mrf.mxu0
      %v962 = vadd.f32 0.0, %v961
      %963 = vmatmul.bf16.gmra.mxu0 %v504
      %v964 = vpop.f32.mrf.mxu0
      %v965 = vadd.f32 0.0, %v964
      %v966 = vpop.f32.mrf.mxu0
      %v967 = vadd.f32 0.0, %v966
      %968 = vmatmul.bf16.gmra.mxu0 %v507
      %v969 = vpop.f32.mrf.mxu0
      %v970 = vadd.f32 0.0, %v969
      %v971 = vpop.f32.mrf.mxu0
      %v972 = vadd.f32 0.0, %v971
      %973 = vmatmul.bf16.gmra.mxu0 %v510
      %v974 = vpop.f32.mrf.mxu0
      %v975 = vadd.f32 0.0, %v974
      %v976 = vpop.f32.mrf.mxu0
      %v977 = vadd.f32 0.0, %v976
      %978 = vmatmul.bf16.gmra.mxu0 %v513
      %v979 = vpop.f32.mrf.mxu0
      %v980 = vadd.f32 0.0, %v979
      %v981 = vpop.f32.mrf.mxu0
      %v982 = vadd.f32 0.0, %v981
      %983 = vdwg.mxu0
      %v985 = vsel %vm515, %v379, 0
      %987 = vmatpush.bf16.msra.mxu0 0
      %988 = vmatpush.bf16.msra.mxu0 0
      %989 = vmatpush.bf16.msra.mxu0 0
      %990 = vmatpush.bf16.msra.mxu0 0
      %991 = vmatpush.bf16.msra.mxu0 0
      %992 = vmatpush.bf16.msra.mxu0 0
      %993 = vmatpush.bf16.msra.mxu0 0
      %994 = vmatpush.bf16.msra.mxu0 %v985
      %995 = vmatmul.bf16.gmra.mxu0 %v614
      %v996 = vpop.f32.mrf.mxu0
      %v997 = vadd.f32 %v905, %v996
      %v998 = vpop.f32.mrf.mxu0
      %v999 = vadd.f32 %v907, %v998
      %1000 = vmatmul.bf16.gmra.mxu0 %v468
      %v1001 = vpop.f32.mrf.mxu0
      %v1002 = vadd.f32 %v910, %v1001
      %v1003 = vpop.f32.mrf.mxu0
      %v1004 = vadd.f32 %v912, %v1003
      %1005 = vmatmul.bf16.gmra.mxu0 %v471
      %v1006 = vpop.f32.mrf.mxu0
      %v1007 = vadd.f32 %v915, %v1006
      %v1008 = vpop.f32.mrf.mxu0
      %v1009 = vadd.f32 %v917, %v1008
      %1010 = vmatmul.bf16.gmra.mxu0 %v474
      %v1011 = vpop.f32.mrf.mxu0
      %v1012 = vadd.f32 %v920, %v1011
      %v1013 = vpop.f32.mrf.mxu0
      %v1014 = vadd.f32 %v922, %v1013
      %1015 = vmatmul.bf16.gmra.mxu0 %v477
      %v1016 = vpop.f32.mrf.mxu0
      %v1017 = vadd.f32 %v925, %v1016
      %v1018 = vpop.f32.mrf.mxu0
      %v1019 = vadd.f32 %v927, %v1018
      %1020 = vmatmul.bf16.gmra.mxu0 %v480
      %v1021 = vpop.f32.mrf.mxu0
      %v1022 = vadd.f32 %v930, %v1021
      %v1023 = vpop.f32.mrf.mxu0
      %v1024 = vadd.f32 %v932, %v1023
      %1025 = vmatmul.bf16.gmra.mxu0 %v483
      %v1026 = vpop.f32.mrf.mxu0
      %v1027 = vadd.f32 %v935, %v1026
      %v1028 = vpop.f32.mrf.mxu0
      %v1029 = vadd.f32 %v937, %v1028
      %1030 = vmatmul.bf16.gmra.mxu0 %v486
      %v1031 = vpop.f32.mrf.mxu0
      %v1032 = vadd.f32 %v940, %v1031
      %v1033 = vpop.f32.mrf.mxu0
      %v1034 = vadd.f32 %v942, %v1033
      %1035 = vmatmul.bf16.gmra.mxu0 %v489
      %v1036 = vpop.f32.mrf.mxu0
      %v1037 = vadd.f32 %v945, %v1036
      %v1038 = vpop.f32.mrf.mxu0
      %v1039 = vadd.f32 %v947, %v1038
      %1040 = vmatmul.bf16.gmra.mxu0 %v492
      %v1041 = vpop.f32.mrf.mxu0
      %v1042 = vadd.f32 %v950, %v1041
      %v1043 = vpop.f32.mrf.mxu0
      %v1044 = vadd.f32 %v952, %v1043
      %1045 = vmatmul.bf16.gmra.mxu0 %v495
      %v1046 = vpop.f32.mrf.mxu0
      %v1047 = vadd.f32 %v955, %v1046
      %v1048 = vpop.f32.mrf.mxu0
      %v1049 = vadd.f32 %v957, %v1048
      %1050 = vmatmul.bf16.gmra.mxu0 %v498
      %v1051 = vpop.f32.mrf.mxu0
      %v1052 = vadd.f32 %v960, %v1051
      %v1053 = vpop.f32.mrf.mxu0
      %v1054 = vadd.f32 %v962, %v1053
      %1055 = vmatmul.bf16.gmra.mxu0 %v501
      %v1056 = vpop.f32.mrf.mxu0
      %v1057 = vadd.f32 %v965, %v1056
      %v1058 = vpop.f32.mrf.mxu0
      %v1059 = vadd.f32 %v967, %v1058
      %1060 = vmatmul.bf16.gmra.mxu0 %v504
      %v1061 = vpop.f32.mrf.mxu0
      %v1062 = vadd.f32 %v970, %v1061
      %v1063 = vpop.f32.mrf.mxu0
      %v1064 = vadd.f32 %v972, %v1063
      %1065 = vmatmul.bf16.gmra.mxu0 %v507
      %v1066 = vpop.f32.mrf.mxu0
      %v1067 = vadd.f32 %v975, %v1066
      %v1068 = vpop.f32.mrf.mxu0
      %v1069 = vadd.f32 %v977, %v1068
      %1070 = vmatmul.bf16.gmra.mxu0 %v510
      %v1071 = vpop.f32.mrf.mxu0
      %v1072 = vadd.f32 %v980, %v1071
      %v1073 = vpop.f32.mrf.mxu0
      %v1074 = vadd.f32 %v982, %v1073
      %1075 = vdwg.mxu0
      %v1078 = vunpack.c.l.b16 %v375
      %v1079 = vunpack.c.l.b16 %v376
      %v1080 = vpack.c.b16 %v1079, %v1078
      %v1082 = vsel %vm466, %v1080, 0
      %v1085 = vsel %vm515, %v383, 0
      %1087 = vmatpush.bf16.msra.mxu0 0
      %1088 = vmatpush.bf16.msra.mxu0 0
      %1089 = vmatpush.bf16.msra.mxu0 0
      %1090 = vmatpush.bf16.msra.mxu0 0
      %1091 = vmatpush.bf16.msra.mxu0 0
      %1092 = vmatpush.bf16.msra.mxu0 0
      %1093 = vmatpush.bf16.msra.mxu0 0
      %1094 = vmatpush.bf16.msra.mxu0 %v1085
      %1095 = vmatmul.bf16.gmra.mxu0 %v471
      %v1096 = vpop.f32.mrf.mxu0
      %v1097 = vadd.f32 0.0, %v1096
      %v1098 = vpop.f32.mrf.mxu0
      %v1099 = vadd.f32 0.0, %v1098
      %1100 = vmatmul.bf16.gmra.mxu0 %v474
      %v1101 = vpop.f32.mrf.mxu0
      %v1102 = vadd.f32 0.0, %v1101
      %v1103 = vpop.f32.mrf.mxu0
      %v1104 = vadd.f32 0.0, %v1103
      %1105 = vmatmul.bf16.gmra.mxu0 %v477
      %v1106 = vpop.f32.mrf.mxu0
      %v1107 = vadd.f32 0.0, %v1106
      %v1108 = vpop.f32.mrf.mxu0
      %v1109 = vadd.f32 0.0, %v1108
      %1110 = vmatmul.bf16.gmra.mxu0 %v480
      %v1111 = vpop.f32.mrf.mxu0
      %v1112 = vadd.f32 0.0, %v1111
      %v1113 = vpop.f32.mrf.mxu0
      %v1114 = vadd.f32 0.0, %v1113
      %1115 = vmatmul.bf16.gmra.mxu0 %v483
      %v1116 = vpop.f32.mrf.mxu0
      %v1117 = vadd.f32 0.0, %v1116
      %v1118 = vpop.f32.mrf.mxu0
      %v1119 = vadd.f32 0.0, %v1118
      %1120 = vmatmul.bf16.gmra.mxu0 %v486
      %v1121 = vpop.f32.mrf.mxu0
      %v1122 = vadd.f32 0.0, %v1121
      %v1123 = vpop.f32.mrf.mxu0
      %v1124 = vadd.f32 0.0, %v1123
      %1125 = vmatmul.bf16.gmra.mxu0 %v489
      %v1126 = vpop.f32.mrf.mxu0
      %v1127 = vadd.f32 0.0, %v1126
      %v1128 = vpop.f32.mrf.mxu0
      %v1129 = vadd.f32 0.0, %v1128
      %1130 = vmatmul.bf16.gmra.mxu0 %v492
      %v1131 = vpop.f32.mrf.mxu0
      %v1132 = vadd.f32 0.0, %v1131
      %v1133 = vpop.f32.mrf.mxu0
      %v1134 = vadd.f32 0.0, %v1133
      %1135 = vmatmul.bf16.gmra.mxu0 %v495
      %v1136 = vpop.f32.mrf.mxu0
      %v1137 = vadd.f32 0.0, %v1136
      %v1138 = vpop.f32.mrf.mxu0
      %v1139 = vadd.f32 0.0, %v1138
      %1140 = vmatmul.bf16.gmra.mxu0 %v498
      %v1141 = vpop.f32.mrf.mxu0
      %v1142 = vadd.f32 0.0, %v1141
      %v1143 = vpop.f32.mrf.mxu0
      %v1144 = vadd.f32 0.0, %v1143
      %1145 = vmatmul.bf16.gmra.mxu0 %v501
      %v1146 = vpop.f32.mrf.mxu0
      %v1147 = vadd.f32 0.0, %v1146
      %v1148 = vpop.f32.mrf.mxu0
      %v1149 = vadd.f32 0.0, %v1148
      %1150 = vmatmul.bf16.gmra.mxu0 %v504
      %v1151 = vpop.f32.mrf.mxu0
      %v1152 = vadd.f32 0.0, %v1151
      %v1153 = vpop.f32.mrf.mxu0
      %v1154 = vadd.f32 0.0, %v1153
      %1155 = vmatmul.bf16.gmra.mxu0 %v507
      %v1156 = vpop.f32.mrf.mxu0
      %v1157 = vadd.f32 0.0, %v1156
      %v1158 = vpop.f32.mrf.mxu0
      %v1159 = vadd.f32 0.0, %v1158
      %1160 = vmatmul.bf16.gmra.mxu0 %v510
      %v1161 = vpop.f32.mrf.mxu0
      %v1162 = vadd.f32 0.0, %v1161
      %v1163 = vpop.f32.mrf.mxu0
      %v1164 = vadd.f32 0.0, %v1163
      %1165 = vmatmul.bf16.gmra.mxu0 %v513
      %v1166 = vpop.f32.mrf.mxu0
      %v1167 = vadd.f32 0.0, %v1166
      %v1168 = vpop.f32.mrf.mxu0
      %v1169 = vadd.f32 0.0, %v1168
      %1170 = vmatmul.bf16.gmra.mxu0 %v1082
      %v1171 = vpop.f32.mrf.mxu0
      %v1172 = vadd.f32 0.0, %v1171
      %v1173 = vpop.f32.mrf.mxu0
      %v1174 = vadd.f32 0.0, %v1173
      %1175 = vdwg.mxu0
      %v1176 = vadd.f32 %v629, %v1097
      %v1177 = vadd.f32 %v631, %v1099
      %v1178 = vadd.f32 %v634, %v1102
      %v1179 = vadd.f32 %v636, %v1104
      %v1180 = vadd.f32 %v639, %v1107
      %v1181 = vadd.f32 %v641, %v1109
      %v1182 = vadd.f32 %v644, %v1112
      %v1183 = vadd.f32 %v646, %v1114
      %v1184 = vadd.f32 %v649, %v1117
      %v1185 = vadd.f32 %v651, %v1119
      %v1186 = vadd.f32 %v654, %v1122
      %v1187 = vadd.f32 %v656, %v1124
      %v1188 = vadd.f32 %v659, %v1127
      %v1189 = vadd.f32 %v661, %v1129
      %v1190 = vadd.f32 %v664, %v1132
      %v1191 = vadd.f32 %v666, %v1134
      %v1192 = vadd.f32 %v669, %v1137
      %v1193 = vadd.f32 %v671, %v1139
      %v1194 = vadd.f32 %v674, %v1142
      %v1195 = vadd.f32 %v676, %v1144
      %v1196 = vadd.f32 %v679, %v1147
      %v1197 = vadd.f32 %v681, %v1149
      %v1198 = vadd.f32 %v684, %v1152
      %v1199 = vadd.f32 %v686, %v1154
      %v1200 = vadd.f32 %v689, %v1157
      %v1201 = vadd.f32 %v691, %v1159
      %v1202 = vadd.f32 %v694, %v1162
      %v1203 = vadd.f32 %v696, %v1164
      %v1204 = vadd.f32 %v699, %v1167
      %v1205 = vadd.f32 %v701, %v1169
      %v1206 = vadd.f32 %v704, %v1172
      %v1207 = vadd.f32 %v706, %v1174
      %v1209 = vsel %vm515, %v384, 0
      %1211 = vmatpush.bf16.msra.mxu0 0
      %1212 = vmatpush.bf16.msra.mxu0 0
      %1213 = vmatpush.bf16.msra.mxu0 0
      %1214 = vmatpush.bf16.msra.mxu0 0
      %1215 = vmatpush.bf16.msra.mxu0 0
      %1216 = vmatpush.bf16.msra.mxu0 0
      %1217 = vmatpush.bf16.msra.mxu0 0
      %1218 = vmatpush.bf16.msra.mxu0 %v1209
      %1219 = vmatmul.bf16.gmra.mxu0 %v471
      %v1220 = vpop.f32.mrf.mxu0
      %v1221 = vadd.f32 0.0, %v1220
      %v1222 = vpop.f32.mrf.mxu0
      %v1223 = vadd.f32 0.0, %v1222
      %1224 = vmatmul.bf16.gmra.mxu0 %v474
      %v1225 = vpop.f32.mrf.mxu0
      %v1226 = vadd.f32 0.0, %v1225
      %v1227 = vpop.f32.mrf.mxu0
      %v1228 = vadd.f32 0.0, %v1227
      %1229 = vmatmul.bf16.gmra.mxu0 %v477
      %v1230 = vpop.f32.mrf.mxu0
      %v1231 = vadd.f32 0.0, %v1230
      %v1232 = vpop.f32.mrf.mxu0
      %v1233 = vadd.f32 0.0, %v1232
      %1234 = vmatmul.bf16.gmra.mxu0 %v480
      %v1235 = vpop.f32.mrf.mxu0
      %v1236 = vadd.f32 0.0, %v1235
      %v1237 = vpop.f32.mrf.mxu0
      %v1238 = vadd.f32 0.0, %v1237
      %1239 = vmatmul.bf16.gmra.mxu0 %v483
      %v1240 = vpop.f32.mrf.mxu0
      %v1241 = vadd.f32 0.0, %v1240
      %v1242 = vpop.f32.mrf.mxu0
      %v1243 = vadd.f32 0.0, %v1242
      %1244 = vmatmul.bf16.gmra.mxu0 %v486
      %v1245 = vpop.f32.mrf.mxu0
      %v1246 = vadd.f32 0.0, %v1245
      %v1247 = vpop.f32.mrf.mxu0
      %v1248 = vadd.f32 0.0, %v1247
      %1249 = vmatmul.bf16.gmra.mxu0 %v489
      %v1250 = vpop.f32.mrf.mxu0
      %v1251 = vadd.f32 0.0, %v1250
      %v1252 = vpop.f32.mrf.mxu0
      %v1253 = vadd.f32 0.0, %v1252
      %1254 = vmatmul.bf16.gmra.mxu0 %v492
      %v1255 = vpop.f32.mrf.mxu0
      %v1256 = vadd.f32 0.0, %v1255
      %v1257 = vpop.f32.mrf.mxu0
      %v1258 = vadd.f32 0.0, %v1257
      %1259 = vmatmul.bf16.gmra.mxu0 %v495
      %v1260 = vpop.f32.mrf.mxu0
      %v1261 = vadd.f32 0.0, %v1260
      %v1262 = vpop.f32.mrf.mxu0
      %v1263 = vadd.f32 0.0, %v1262
      %1264 = vmatmul.bf16.gmra.mxu0 %v498
      %v1265 = vpop.f32.mrf.mxu0
      %v1266 = vadd.f32 0.0, %v1265
      %v1267 = vpop.f32.mrf.mxu0
      %v1268 = vadd.f32 0.0, %v1267
      %1269 = vmatmul.bf16.gmra.mxu0 %v501
      %v1270 = vpop.f32.mrf.mxu0
      %v1271 = vadd.f32 0.0, %v1270
      %v1272 = vpop.f32.mrf.mxu0
      %v1273 = vadd.f32 0.0, %v1272
      %1274 = vmatmul.bf16.gmra.mxu0 %v504
      %v1275 = vpop.f32.mrf.mxu0
      %v1276 = vadd.f32 0.0, %v1275
      %v1277 = vpop.f32.mrf.mxu0
      %v1278 = vadd.f32 0.0, %v1277
      %1279 = vmatmul.bf16.gmra.mxu0 %v507
      %v1280 = vpop.f32.mrf.mxu0
      %v1281 = vadd.f32 0.0, %v1280
      %v1282 = vpop.f32.mrf.mxu0
      %v1283 = vadd.f32 0.0, %v1282
      %1284 = vmatmul.bf16.gmra.mxu0 %v510
      %v1285 = vpop.f32.mrf.mxu0
      %v1286 = vadd.f32 0.0, %v1285
      %v1287 = vpop.f32.mrf.mxu0
      %v1288 = vadd.f32 0.0, %v1287
      %1289 = vmatmul.bf16.gmra.mxu0 %v513
      %v1290 = vpop.f32.mrf.mxu0
      %v1291 = vadd.f32 0.0, %v1290
      %v1292 = vpop.f32.mrf.mxu0
      %v1293 = vadd.f32 0.0, %v1292
      %1294 = vmatmul.bf16.gmra.mxu0 %v1082
      %v1295 = vpop.f32.mrf.mxu0
      %v1296 = vadd.f32 0.0, %v1295
      %v1297 = vpop.f32.mrf.mxu0
      %v1298 = vadd.f32 0.0, %v1297
      %1299 = vdwg.mxu0
      %v1300 = vadd.f32 %v813, %v1221
      %v1301 = vadd.f32 %v815, %v1223
      %v1302 = vadd.f32 %v818, %v1226
      %v1303 = vadd.f32 %v820, %v1228
      %v1304 = vadd.f32 %v823, %v1231
      %v1305 = vadd.f32 %v825, %v1233
      %v1306 = vadd.f32 %v828, %v1236
      %v1307 = vadd.f32 %v830, %v1238
      %v1308 = vadd.f32 %v833, %v1241
      %v1309 = vadd.f32 %v835, %v1243
      %v1310 = vadd.f32 %v838, %v1246
      %v1311 = vadd.f32 %v840, %v1248
      %v1312 = vadd.f32 %v843, %v1251
      %v1313 = vadd.f32 %v845, %v1253
      %v1314 = vadd.f32 %v848, %v1256
      %v1315 = vadd.f32 %v850, %v1258
      %v1316 = vadd.f32 %v853, %v1261
      %v1317 = vadd.f32 %v855, %v1263
      %v1318 = vadd.f32 %v858, %v1266
      %v1319 = vadd.f32 %v860, %v1268
      %v1320 = vadd.f32 %v863, %v1271
      %v1321 = vadd.f32 %v865, %v1273
      %v1322 = vadd.f32 %v868, %v1276
      %v1323 = vadd.f32 %v870, %v1278
      %v1324 = vadd.f32 %v873, %v1281
      %v1325 = vadd.f32 %v875, %v1283
      %v1326 = vadd.f32 %v878, %v1286
      %v1327 = vadd.f32 %v880, %v1288
      %v1328 = vadd.f32 %v883, %v1291
      %v1329 = vadd.f32 %v885, %v1293
      %v1330 = vadd.f32 %v888, %v1296
      %v1331 = vadd.f32 %v890, %v1298
      %v1333 = vsel %vm515, %v385, 0
      %1335 = vmatpush.bf16.msra.mxu0 0
      %1336 = vmatpush.bf16.msra.mxu0 0
      %1337 = vmatpush.bf16.msra.mxu0 0
      %1338 = vmatpush.bf16.msra.mxu0 0
      %1339 = vmatpush.bf16.msra.mxu0 0
      %1340 = vmatpush.bf16.msra.mxu0 0
      %1341 = vmatpush.bf16.msra.mxu0 0
      %1342 = vmatpush.bf16.msra.mxu0 %v1333
      %1343 = vmatmul.bf16.gmra.mxu0 %v471
      %v1344 = vpop.f32.mrf.mxu0
      %v1345 = vadd.f32 0.0, %v1344
      %v1346 = vpop.f32.mrf.mxu0
      %v1347 = vadd.f32 0.0, %v1346
      %1348 = vmatmul.bf16.gmra.mxu0 %v474
      %v1349 = vpop.f32.mrf.mxu0
      %v1350 = vadd.f32 0.0, %v1349
      %v1351 = vpop.f32.mrf.mxu0
      %v1352 = vadd.f32 0.0, %v1351
      %1353 = vmatmul.bf16.gmra.mxu0 %v477
      %v1354 = vpop.f32.mrf.mxu0
      %v1355 = vadd.f32 0.0, %v1354
      %v1356 = vpop.f32.mrf.mxu0
      %v1357 = vadd.f32 0.0, %v1356
      %1358 = vmatmul.bf16.gmra.mxu0 %v480
      %v1359 = vpop.f32.mrf.mxu0
      %v1360 = vadd.f32 0.0, %v1359
      %v1361 = vpop.f32.mrf.mxu0
      %v1362 = vadd.f32 0.0, %v1361
      %1363 = vmatmul.bf16.gmra.mxu0 %v483
      %v1364 = vpop.f32.mrf.mxu0
      %v1365 = vadd.f32 0.0, %v1364
      %v1366 = vpop.f32.mrf.mxu0
      %v1367 = vadd.f32 0.0, %v1366
      %1368 = vmatmul.bf16.gmra.mxu0 %v486
      %v1369 = vpop.f32.mrf.mxu0
      %v1370 = vadd.f32 0.0, %v1369
      %v1371 = vpop.f32.mrf.mxu0
      %v1372 = vadd.f32 0.0, %v1371
      %1373 = vmatmul.bf16.gmra.mxu0 %v489
      %v1374 = vpop.f32.mrf.mxu0
      %v1375 = vadd.f32 0.0, %v1374
      %v1376 = vpop.f32.mrf.mxu0
      %v1377 = vadd.f32 0.0, %v1376
      %1378 = vmatmul.bf16.gmra.mxu0 %v492
      %v1379 = vpop.f32.mrf.mxu0
      %v1380 = vadd.f32 0.0, %v1379
      %v1381 = vpop.f32.mrf.mxu0
      %v1382 = vadd.f32 0.0, %v1381
      %1383 = vmatmul.bf16.gmra.mxu0 %v495
      %v1384 = vpop.f32.mrf.mxu0
      %v1385 = vadd.f32 0.0, %v1384
      %v1386 = vpop.f32.mrf.mxu0
      %v1387 = vadd.f32 0.0, %v1386
      %1388 = vmatmul.bf16.gmra.mxu0 %v498
      %v1389 = vpop.f32.mrf.mxu0
      %v1390 = vadd.f32 0.0, %v1389
      %v1391 = vpop.f32.mrf.mxu0
      %v1392 = vadd.f32 0.0, %v1391
      %1393 = vmatmul.bf16.gmra.mxu0 %v501
      %v1394 = vpop.f32.mrf.mxu0
      %v1395 = vadd.f32 0.0, %v1394
      %v1396 = vpop.f32.mrf.mxu0
      %v1397 = vadd.f32 0.0, %v1396
      %1398 = vmatmul.bf16.gmra.mxu0 %v504
      %v1399 = vpop.f32.mrf.mxu0
      %v1400 = vadd.f32 0.0, %v1399
      %v1401 = vpop.f32.mrf.mxu0
      %v1402 = vadd.f32 0.0, %v1401
      %1403 = vmatmul.bf16.gmra.mxu0 %v507
      %v1404 = vpop.f32.mrf.mxu0
      %v1405 = vadd.f32 0.0, %v1404
      %v1406 = vpop.f32.mrf.mxu0
      %v1407 = vadd.f32 0.0, %v1406
      %1408 = vmatmul.bf16.gmra.mxu0 %v510
      %v1409 = vpop.f32.mrf.mxu0
      %v1410 = vadd.f32 0.0, %v1409
      %v1411 = vpop.f32.mrf.mxu0
      %v1412 = vadd.f32 0.0, %v1411
      %1413 = vmatmul.bf16.gmra.mxu0 %v513
      %v1414 = vpop.f32.mrf.mxu0
      %v1415 = vadd.f32 0.0, %v1414
      %v1416 = vpop.f32.mrf.mxu0
      %v1417 = vadd.f32 0.0, %v1416
      %1418 = vmatmul.bf16.gmra.mxu0 %v1082
      %v1419 = vpop.f32.mrf.mxu0
      %v1420 = vadd.f32 0.0, %v1419
      %v1421 = vpop.f32.mrf.mxu0
      %v1422 = vadd.f32 0.0, %v1421
      %1423 = vdwg.mxu0
      %v1424 = vadd.f32 %v997, %v1345
      %v1425 = vadd.f32 %v999, %v1347
      %v1426 = vadd.f32 %v1002, %v1350
      %v1427 = vadd.f32 %v1004, %v1352
      %v1428 = vadd.f32 %v1007, %v1355
      %v1429 = vadd.f32 %v1009, %v1357
      %v1430 = vadd.f32 %v1012, %v1360
      %v1431 = vadd.f32 %v1014, %v1362
      %v1432 = vadd.f32 %v1017, %v1365
      %v1433 = vadd.f32 %v1019, %v1367
      %v1434 = vadd.f32 %v1022, %v1370
      %v1435 = vadd.f32 %v1024, %v1372
      %v1436 = vadd.f32 %v1027, %v1375
      %v1437 = vadd.f32 %v1029, %v1377
      %v1438 = vadd.f32 %v1032, %v1380
      %v1439 = vadd.f32 %v1034, %v1382
      %v1440 = vadd.f32 %v1037, %v1385
      %v1441 = vadd.f32 %v1039, %v1387
      %v1442 = vadd.f32 %v1042, %v1390
      %v1443 = vadd.f32 %v1044, %v1392
      %v1444 = vadd.f32 %v1047, %v1395
      %v1445 = vadd.f32 %v1049, %v1397
      %v1446 = vadd.f32 %v1052, %v1400
      %v1447 = vadd.f32 %v1054, %v1402
      %v1448 = vadd.f32 %v1057, %v1405
      %v1449 = vadd.f32 %v1059, %v1407
      %v1450 = vadd.f32 %v1062, %v1410
      %v1451 = vadd.f32 %v1064, %v1412
      %v1452 = vadd.f32 %v1067, %v1415
      %v1453 = vadd.f32 %v1069, %v1417
      %v1454 = vadd.f32 %v1072, %v1420
      %v1455 = vadd.f32 %v1074, %v1422
      %v1456 = vrot.slane %v1176, 7
      %v1457 = vrot.slane %v1177, 7
      %v1458 = vrot.slane %v1178, 7
      %v1459 = vrot.slane %v1179, 7
      %v1460 = vrot.slane %v1180, 7
      %v1461 = vrot.slane %v1181, 7
      %v1462 = vrot.slane %v1182, 7
      %v1463 = vrot.slane %v1183, 7
      %v1464 = vrot.slane %v1184, 7
      %v1465 = vrot.slane %v1185, 7
      %v1466 = vrot.slane %v1186, 7
      %v1467 = vrot.slane %v1187, 7
      %v1468 = vrot.slane %v1188, 7
      %v1469 = vrot.slane %v1189, 7
      %v1470 = vrot.slane %v1190, 7
      %v1471 = vrot.slane %v1191, 7
      %v1472 = vrot.slane %v1192, 7
      %v1473 = vrot.slane %v1193, 7
      %v1474 = vrot.slane %v1194, 7
      %v1475 = vrot.slane %v1195, 7
      %v1476 = vrot.slane %v1196, 7
      %v1477 = vrot.slane %v1197, 7
      %v1478 = vrot.slane %v1198, 7
      %v1479 = vrot.slane %v1199, 7
      %v1480 = vrot.slane %v1200, 7
      %v1481 = vrot.slane %v1201, 7
      %v1482 = vrot.slane %v1202, 7
      %v1483 = vrot.slane %v1203, 7
      %v1484 = vrot.slane %v1204, 7
      %v1485 = vrot.slane %v1205, 7
      %v1486 = vrot.slane %v1206, 7
      %v1487 = vrot.slane %v1207, 7
      %vm1488 = vcmp.lt.s32.totalorder %v335, 1
      %v1489 = vsel %vm1488, %v1486, %v1487
      %v1490 = vsel %vm1488, %v1485, %v1486
      %v1491 = vsel %vm1488, %v1484, %v1485
      %v1492 = vsel %vm1488, %v1483, %v1484
      %v1493 = vsel %vm1488, %v1482, %v1483
      %v1494 = vsel %vm1488, %v1481, %v1482
      %v1495 = vsel %vm1488, %v1480, %v1481
      %v1496 = vsel %vm1488, %v1479, %v1480
      %v1497 = vsel %vm1488, %v1478, %v1479
      %v1498 = vsel %vm1488, %v1477, %v1478
      %v1499 = vsel %vm1488, %v1476, %v1477
      %v1500 = vsel %vm1488, %v1475, %v1476
      %v1501 = vsel %vm1488, %v1474, %v1475
      %v1502 = vsel %vm1488, %v1473, %v1474
      %v1503 = vsel %vm1488, %v1472, %v1473
      %v1504 = vsel %vm1488, %v1471, %v1472
      %v1505 = vsel %vm1488, %v1470, %v1471
      %v1506 = vsel %vm1488, %v1469, %v1470
      %v1507 = vsel %vm1488, %v1468, %v1469
      %v1508 = vsel %vm1488, %v1467, %v1468
      %v1509 = vsel %vm1488, %v1466, %v1467
      %v1510 = vsel %vm1488, %v1465, %v1466
      %v1511 = vsel %vm1488, %v1464, %v1465
      %v1512 = vsel %vm1488, %v1463, %v1464
      %v1513 = vsel %vm1488, %v1462, %v1463
      %v1514 = vsel %vm1488, %v1461, %v1462
      %v1515 = vsel %vm1488, %v1460, %v1461
      %v1516 = vsel %vm1488, %v1459, %v1460
      %v1517 = vsel %vm1488, %v1458, %v1459
      %v1518 = vsel %vm1488, %v1457, %v1458
      %v1519 = vsel %vm1488, %v1456, %v1457
      %v1520 = vsel %vm1488, %v1487, %v1456
      %v1521 = vsel %vm337, %v1520, 0.0
      %v1522 = vsel %vm338, %v1519, 0.0
      %v1523 = vsel %vm337, %v1518, 0.0
      %v1524 = vsel %vm338, %v1517, 0.0
      %v1525 = vsel %vm337, %v1516, 0.0
      %v1526 = vsel %vm338, %v1515, 0.0
      %v1527 = vsel %vm337, %v1514, 0.0
      %v1528 = vsel %vm338, %v1513, 0.0
      %v1529 = vsel %vm337, %v1512, 0.0
      %v1530 = vsel %vm338, %v1511, 0.0
      %v1531 = vsel %vm337, %v1510, 0.0
      %v1532 = vsel %vm338, %v1509, 0.0
      %v1533 = vsel %vm337, %v1508, 0.0
      %v1534 = vsel %vm338, %v1507, 0.0
      %v1535 = vsel %vm337, %v1506, 0.0
      %v1536 = vsel %vm338, %v1505, 0.0
      %v1537 = vsel %vm337, %v1504, 0.0
      %v1538 = vsel %vm338, %v1503, 0.0
      %v1539 = vsel %vm337, %v1502, 0.0
      %v1540 = vsel %vm338, %v1501, 0.0
      %v1541 = vsel %vm337, %v1500, 0.0
      %v1542 = vsel %vm338, %v1499, 0.0
      %v1543 = vsel %vm337, %v1498, 0.0
      %v1544 = vsel %vm338, %v1497, 0.0
      %v1545 = vsel %vm337, %v1496, 0.0
      %v1546 = vsel %vm338, %v1495, 0.0
      %v1547 = vsel %vm337, %v1494, 0.0
      %v1548 = vsel %vm338, %v1493, 0.0
      %v1549 = vsel %vm337, %v1492, 0.0
      %v1550 = vsel %vm338, %v1491, 0.0
      %v1551 = vsel %vm337, %v1490, 0.0
      %v1552 = vsel %vm338, %v1489, 0.0
      %v1553 = vrot.slane %v1424, 1
      %v1554 = vrot.slane %v1425, 1
      %v1555 = vrot.slane %v1426, 1
      %v1556 = vrot.slane %v1427, 1
      %v1557 = vrot.slane %v1428, 1
      %v1558 = vrot.slane %v1429, 1
      %v1559 = vrot.slane %v1430, 1
      %v1560 = vrot.slane %v1431, 1
      %v1561 = vrot.slane %v1432, 1
      %v1562 = vrot.slane %v1433, 1
      %v1563 = vrot.slane %v1434, 1
      %v1564 = vrot.slane %v1435, 1
      %v1565 = vrot.slane %v1436, 1
      %v1566 = vrot.slane %v1437, 1
      %v1567 = vrot.slane %v1438, 1
      %v1568 = vrot.slane %v1439, 1
      %v1569 = vrot.slane %v1440, 1
      %v1570 = vrot.slane %v1441, 1
      %v1571 = vrot.slane %v1442, 1
      %v1572 = vrot.slane %v1443, 1
      %v1573 = vrot.slane %v1444, 1
      %v1574 = vrot.slane %v1445, 1
      %v1575 = vrot.slane %v1446, 1
      %v1576 = vrot.slane %v1447, 1
      %v1577 = vrot.slane %v1448, 1
      %v1578 = vrot.slane %v1449, 1
      %v1579 = vrot.slane %v1450, 1
      %v1580 = vrot.slane %v1451, 1
      %v1581 = vrot.slane %v1452, 1
      %v1582 = vrot.slane %v1453, 1
      %v1583 = vrot.slane %v1454, 1
      %v1584 = vrot.slane %v1455, 1
      %vm1585 = vcmp.lt.s32.totalorder %v335, 7
      %v1586 = vsel %vm1585, %v1583, %v1584
      %v1587 = vsel %vm1585, %v1582, %v1583
      %v1588 = vsel %vm1585, %v1581, %v1582
      %v1589 = vsel %vm1585, %v1580, %v1581
      %v1590 = vsel %vm1585, %v1579, %v1580
      %v1591 = vsel %vm1585, %v1578, %v1579
      %v1592 = vsel %vm1585, %v1577, %v1578
      %v1593 = vsel %vm1585, %v1576, %v1577
      %v1594 = vsel %vm1585, %v1575, %v1576
      %v1595 = vsel %vm1585, %v1574, %v1575
      %v1596 = vsel %vm1585, %v1573, %v1574
      %v1597 = vsel %vm1585, %v1572, %v1573
      %v1598 = vsel %vm1585, %v1571, %v1572
      %v1599 = vsel %vm1585, %v1570, %v1571
      %v1600 = vsel %vm1585, %v1569, %v1570
      %v1601 = vsel %vm1585, %v1568, %v1569
      %v1602 = vsel %vm1585, %v1567, %v1568
      %v1603 = vsel %vm1585, %v1566, %v1567
      %v1604 = vsel %vm1585, %v1565, %v1566
      %v1605 = vsel %vm1585, %v1564, %v1565
      %v1606 = vsel %vm1585, %v1563, %v1564
      %v1607 = vsel %vm1585, %v1562, %v1563
      %v1608 = vsel %vm1585, %v1561, %v1562
      %v1609 = vsel %vm1585, %v1560, %v1561
      %v1610 = vsel %vm1585, %v1559, %v1560
      %v1611 = vsel %vm1585, %v1558, %v1559
      %v1612 = vsel %vm1585, %v1557, %v1558
      %v1613 = vsel %vm1585, %v1556, %v1557
      %v1614 = vsel %vm1585, %v1555, %v1556
      %v1615 = vsel %vm1585, %v1554, %v1555
      %v1616 = vsel %vm1585, %v1553, %v1554
      %v1617 = vsel %vm1585, %v1584, %v1553
      %v1618 = vsel %vm339, %v1616, 0.0
      %v1619 = vsel %vm340, %v1615, 0.0
      %v1620 = vsel %vm339, %v1614, 0.0
      %v1621 = vsel %vm340, %v1613, 0.0
      %v1622 = vsel %vm339, %v1612, 0.0
      %v1623 = vsel %vm340, %v1611, 0.0
      %v1624 = vsel %vm339, %v1610, 0.0
      %v1625 = vsel %vm340, %v1609, 0.0
      %v1626 = vsel %vm339, %v1608, 0.0
      %v1627 = vsel %vm340, %v1607, 0.0
      %v1628 = vsel %vm339, %v1606, 0.0
      %v1629 = vsel %vm340, %v1605, 0.0
      %v1630 = vsel %vm339, %v1604, 0.0
      %v1631 = vsel %vm340, %v1603, 0.0
      %v1632 = vsel %vm339, %v1602, 0.0
      %v1633 = vsel %vm340, %v1601, 0.0
      %v1634 = vsel %vm339, %v1600, 0.0
      %v1635 = vsel %vm340, %v1599, 0.0
      %v1636 = vsel %vm339, %v1598, 0.0
      %v1637 = vsel %vm340, %v1597, 0.0
      %v1638 = vsel %vm339, %v1596, 0.0
      %v1639 = vsel %vm340, %v1595, 0.0
      %v1640 = vsel %vm339, %v1594, 0.0
      %v1641 = vsel %vm340, %v1593, 0.0
      %v1642 = vsel %vm339, %v1592, 0.0
      %v1643 = vsel %vm340, %v1591, 0.0
      %v1644 = vsel %vm339, %v1590, 0.0
      %v1645 = vsel %vm340, %v1589, 0.0
      %v1646 = vsel %vm339, %v1588, 0.0
      %v1647 = vsel %vm340, %v1587, 0.0
      %v1648 = vsel %vm339, %v1586, 0.0
      %v1649 = vsel %vm340, %v1617, 0.0
      %v1650 = vadd.f32 %v1300, %v1521
      %v1651 = vadd.f32 %v1301, %v1522
      %v1652 = vadd.f32 %v1302, %v1523
      %v1653 = vadd.f32 %v1303, %v1524
      %v1654 = vadd.f32 %v1304, %v1525
      %v1655 = vadd.f32 %v1305, %v1526
      %v1656 = vadd.f32 %v1306, %v1527
      %v1657 = vadd.f32 %v1307, %v1528
      %v1658 = vadd.f32 %v1308, %v1529
      %v1659 = vadd.f32 %v1309, %v1530
      %v1660 = vadd.f32 %v1310, %v1531
      %v1661 = vadd.f32 %v1311, %v1532
      %v1662 = vadd.f32 %v1312, %v1533
      %v1663 = vadd.f32 %v1313, %v1534
      %v1664 = vadd.f32 %v1314, %v1535
      %v1665 = vadd.f32 %v1315, %v1536
      %v1666 = vadd.f32 %v1316, %v1537
      %v1667 = vadd.f32 %v1317, %v1538
      %v1668 = vadd.f32 %v1318, %v1539
      %v1669 = vadd.f32 %v1319, %v1540
      %v1670 = vadd.f32 %v1320, %v1541
      %v1671 = vadd.f32 %v1321, %v1542
      %v1672 = vadd.f32 %v1322, %v1543
      %v1673 = vadd.f32 %v1323, %v1544
      %v1674 = vadd.f32 %v1324, %v1545
      %v1675 = vadd.f32 %v1325, %v1546
      %v1676 = vadd.f32 %v1326, %v1547
      %v1677 = vadd.f32 %v1327, %v1548
      %v1678 = vadd.f32 %v1328, %v1549
      %v1679 = vadd.f32 %v1329, %v1550
      %v1680 = vadd.f32 %v1330, %v1551
      %v1681 = vadd.f32 %v1331, %v1552
      %v1682 = vadd.f32 %v1650, %v1618
      %v1683 = vadd.f32 %v1651, %v1619
      %v1684 = vadd.f32 %v1652, %v1620
      %v1685 = vadd.f32 %v1653, %v1621
      %v1686 = vadd.f32 %v1654, %v1622
      %v1687 = vadd.f32 %v1655, %v1623
      %v1688 = vadd.f32 %v1656, %v1624
      %v1689 = vadd.f32 %v1657, %v1625
      %v1690 = vadd.f32 %v1658, %v1626
      %v1691 = vadd.f32 %v1659, %v1627
      %v1692 = vadd.f32 %v1660, %v1628
      %v1693 = vadd.f32 %v1661, %v1629
      %v1694 = vadd.f32 %v1662, %v1630
      %v1695 = vadd.f32 %v1663, %v1631
      %v1696 = vadd.f32 %v1664, %v1632
      %v1697 = vadd.f32 %v1665, %v1633
      %v1698 = vadd.f32 %v1666, %v1634
      %v1699 = vadd.f32 %v1667, %v1635
      %v1700 = vadd.f32 %v1668, %v1636
      %v1701 = vadd.f32 %v1669, %v1637
      %v1702 = vadd.f32 %v1670, %v1638
      %v1703 = vadd.f32 %v1671, %v1639
      %v1704 = vadd.f32 %v1672, %v1640
      %v1705 = vadd.f32 %v1673, %v1641
      %v1706 = vadd.f32 %v1674, %v1642
      %v1707 = vadd.f32 %v1675, %v1643
      %v1708 = vadd.f32 %v1676, %v1644
      %v1709 = vadd.f32 %v1677, %v1645
      %v1710 = vadd.f32 %v1678, %v1646
      %v1711 = vadd.f32 %v1679, %v1647
      %v1712 = vadd.f32 %v1680, %v1648
      %v1713 = vadd.f32 %v1681, %v1649
      %v1714 = vld [vmem:[%s2] sm:$0x1]
      %v1716 = vperm.slane %v1714, 0
      %v1718 = vadd.f32 %v1682, %v1716
      %v1719 = vadd.f32 %v1683, %v1716
      %v1720 = vadd.f32 %v1684, %v1716
      %v1721 = vadd.f32 %v1685, %v1716
      %v1722 = vadd.f32 %v1686, %v1716
      %v1723 = vadd.f32 %v1687, %v1716
      %v1724 = vadd.f32 %v1688, %v1716
      %v1725 = vadd.f32 %v1689, %v1716
      %v1726 = vadd.f32 %v1690, %v1716
      %v1727 = vadd.f32 %v1691, %v1716
      %v1728 = vadd.f32 %v1692, %v1716
      %v1729 = vadd.f32 %v1693, %v1716
      %v1730 = vadd.f32 %v1694, %v1716
      %v1731 = vadd.f32 %v1695, %v1716
      %v1732 = vadd.f32 %v1696, %v1716
      %v1733 = vadd.f32 %v1697, %v1716
      %v1734 = vadd.f32 %v1698, %v1716
      %v1735 = vadd.f32 %v1699, %v1716
      %v1736 = vadd.f32 %v1700, %v1716
      %v1737 = vadd.f32 %v1701, %v1716
      %v1738 = vadd.f32 %v1702, %v1716
      %v1739 = vadd.f32 %v1703, %v1716
      %v1740 = vadd.f32 %v1704, %v1716
      %v1741 = vadd.f32 %v1705, %v1716
      %v1742 = vadd.f32 %v1706, %v1716
      %v1743 = vadd.f32 %v1707, %v1716
      %v1744 = vadd.f32 %v1708, %v1716
      %v1745 = vadd.f32 %v1709, %v1716
      %v1746 = vadd.f32 %v1710, %v1716
      %v1747 = vadd.f32 %v1711, %v1716
      %v1748 = vadd.f32 %v1712, %v1716
      %v1749 = vadd.f32 %v1713, %v1716
      %v1750 = vmax.f32 %v1718, 0.0
      %v1751 = vmax.f32 %v1719, 0.0
      %v1752 = vmax.f32 %v1720, 0.0
      %v1753 = vmax.f32 %v1721, 0.0
      %v1754 = vmax.f32 %v1722, 0.0
      %v1755 = vmax.f32 %v1723, 0.0
      %v1756 = vmax.f32 %v1724, 0.0
      %v1757 = vmax.f32 %v1725, 0.0
      %v1758 = vmax.f32 %v1726, 0.0
      %v1759 = vmax.f32 %v1727, 0.0
      %v1760 = vmax.f32 %v1728, 0.0
      %v1761 = vmax.f32 %v1729, 0.0
      %v1762 = vmax.f32 %v1730, 0.0
      %v1763 = vmax.f32 %v1731, 0.0
      %v1764 = vmax.f32 %v1732, 0.0
      %v1765 = vmax.f32 %v1733, 0.0
      %v1766 = vmax.f32 %v1734, 0.0
      %v1767 = vmax.f32 %v1735, 0.0
      %v1768 = vmax.f32 %v1736, 0.0
      %v1769 = vmax.f32 %v1737, 0.0
      %v1770 = vmax.f32 %v1738, 0.0
      %v1771 = vmax.f32 %v1739, 0.0
      %v1772 = vmax.f32 %v1740, 0.0
      %v1773 = vmax.f32 %v1741, 0.0
      %v1774 = vmax.f32 %v1742, 0.0
      %v1775 = vmax.f32 %v1743, 0.0
      %v1776 = vmax.f32 %v1744, 0.0
      %v1777 = vmax.f32 %v1745, 0.0
      %v1778 = vmax.f32 %v1746, 0.0
      %v1779 = vmax.f32 %v1747, 0.0
      %v1780 = vmax.f32 %v1748, 0.0
      %v1781 = vmax.f32 %v1749, 0.0
      %v1782 = vpack.c.bf16 %v1750, %v1750
      %v1783 = vpack.c.bf16 %v1751, %v1751
      %v1784 = vpack.c.bf16 %v1752, %v1752
      %v1785 = vpack.c.bf16 %v1753, %v1753
      %v1786 = vpack.c.bf16 %v1754, %v1754
      %v1787 = vpack.c.bf16 %v1755, %v1755
      %v1788 = vpack.c.bf16 %v1756, %v1756
      %v1789 = vpack.c.bf16 %v1757, %v1757
      %v1790 = vpack.c.bf16 %v1758, %v1758
      %v1791 = vpack.c.bf16 %v1759, %v1759
      %v1792 = vpack.c.bf16 %v1760, %v1760
      %v1793 = vpack.c.bf16 %v1761, %v1761
      %v1794 = vpack.c.bf16 %v1762, %v1762
      %v1795 = vpack.c.bf16 %v1763, %v1763
      %v1796 = vpack.c.bf16 %v1764, %v1764
      %v1797 = vpack.c.bf16 %v1765, %v1765
      %v1798 = vpack.c.bf16 %v1766, %v1766
      %v1799 = vpack.c.bf16 %v1767, %v1767
      %v1800 = vpack.c.bf16 %v1768, %v1768
      %v1801 = vpack.c.bf16 %v1769, %v1769
      %v1802 = vpack.c.bf16 %v1770, %v1770
      %v1803 = vpack.c.bf16 %v1771, %v1771
      %v1804 = vpack.c.bf16 %v1772, %v1772
      %v1805 = vpack.c.bf16 %v1773, %v1773
      %v1806 = vpack.c.bf16 %v1774, %v1774
      %v1807 = vpack.c.bf16 %v1775, %v1775
      %v1808 = vpack.c.bf16 %v1776, %v1776
      %v1809 = vpack.c.bf16 %v1777, %v1777
      %v1810 = vpack.c.bf16 %v1778, %v1778
      %v1811 = vpack.c.bf16 %v1779, %v1779
      %v1812 = vpack.c.bf16 %v1780, %v1780
      %v1813 = vpack.c.bf16 %v1781, %v1781
      %s1814 = scalar_lea.vmem [#allocation3], 8
      %1815 = vst.msk [vmem:[%s1814] sm:$0xf] %vm258, %v1782
      %1816 = vst.msk [vmem:[%s1814 + $0x4] sm:$0xf] %vm258, %v1783
      %1817 = vst.msk [vmem:[%s1814 + $0x8] sm:$0xf] %vm258, %v1784
      %1818 = vst.msk [vmem:[%s1814 + $0xc] sm:$0xf] %vm258, %v1785
      %1819 = vst.msk [vmem:[%s1814 + $0x10] sm:$0xf] %vm258, %v1786
      %1820 = vst.msk [vmem:[%s1814 + $0x14] sm:$0xf] %vm258, %v1787
      %1821 = vst.msk [vmem:[%s1814 + $0x18] sm:$0xf] %vm258, %v1788
      %1822 = vst.msk [vmem:[%s1814 + $0x1c] sm:$0xf] %vm258, %v1789
      %1823 = vst.msk [vmem:[%s1814 + $0x20] sm:$0xf] %vm258, %v1790
      %1824 = vst.msk [vmem:[%s1814 + $0x24] sm:$0xf] %vm258, %v1791
      %1825 = vst.msk [vmem:[%s1814 + $0x28] sm:$0xf] %vm258, %v1792
      %1826 = vst.msk [vmem:[%s1814 + $0x2c] sm:$0xf] %vm258, %v1793
      %1827 = vst.msk [vmem:[%s1814 + $0x30] sm:$0xf] %vm258, %v1794
      %1828 = vst.msk [vmem:[%s1814 + $0x34] sm:$0xf] %vm258, %v1795
      %1829 = vst.msk [vmem:[%s1814 + $0x38] sm:$0xf] %vm258, %v1796
      %1830 = vst.msk [vmem:[%s1814 + $0x3c] sm:$0xf] %vm258, %v1797
      %1831 = vst.msk [vmem:[%s1814 + $0x40] sm:$0xf] %vm258, %v1798
      %1832 = vst.msk [vmem:[%s1814 + $0x44] sm:$0xf] %vm258, %v1799
      %1833 = vst.msk [vmem:[%s1814 + $0x48] sm:$0xf] %vm258, %v1800
      %1834 = vst.msk [vmem:[%s1814 + $0x4c] sm:$0xf] %vm258, %v1801
      %1835 = vst.msk [vmem:[%s1814 + $0x50] sm:$0xf] %vm258, %v1802
      %1836 = vst.msk [vmem:[%s1814 + $0x54] sm:$0xf] %vm258, %v1803
      %1837 = vst.msk [vmem:[%s1814 + $0x58] sm:$0xf] %vm258, %v1804
      %1838 = vst.msk [vmem:[%s1814 + $0x5c] sm:$0xf] %vm258, %v1805
      %1839 = vst.msk [vmem:[%s1814 + $0x60] sm:$0xf] %vm258, %v1806
      %1840 = vst.msk [vmem:[%s1814 + $0x64] sm:$0xf] %vm258, %v1807
      %1841 = vst.msk [vmem:[%s1814 + $0x68] sm:$0xf] %vm258, %v1808
      %1842 = vst.msk [vmem:[%s1814 + $0x6c] sm:$0xf] %vm258, %v1809
      %1843 = vst.msk [vmem:[%s1814 + $0x70] sm:$0xf] %vm258, %v1810
      %1844 = vst.msk [vmem:[%s1814 + $0x74] sm:$0xf] %vm258, %v1811
      %1845 = vst.msk [vmem:[%s1814 + $0x78] sm:$0xf] %vm258, %v1812
      %1846 = vst.msk [vmem:[%s1814 + $0x7c] sm:$0xf] %vm258, %v1813
      %v1847 = vld [vmem:[#allocation3] sm:$0xf]
      %v1848 = vld [vmem:[#allocation3 + $0x4] sm:$0xf]
      %v1849 = vld [vmem:[#allocation3 + $0x8] sm:$0xf]
      %v1850 = vld [vmem:[#allocation3 + $0xc] sm:$0xf]
      %v1851 = vld [vmem:[#allocation3 + $0x10] sm:$0xf]
      %v1852 = vld [vmem:[#allocation3 + $0x14] sm:$0xf]
      %v1853 = vld [vmem:[#allocation3 + $0x18] sm:$0xf]
      %v1854 = vld [vmem:[#allocation3 + $0x1c] sm:$0xf]
      %v1855 = vld [vmem:[#allocation3 + $0x20] sm:$0xf]
      %v1856 = vld [vmem:[#allocation3 + $0x24] sm:$0xf]
      %v1857 = vld [vmem:[#allocation3 + $0x28] sm:$0xf]
      %v1858 = vld [vmem:[#allocation3 + $0x2c] sm:$0xf]
      %v1859 = vld [vmem:[#allocation3 + $0x30] sm:$0xf]
      %v1860 = vld [vmem:[#allocation3 + $0x34] sm:$0xf]
      %v1861 = vld [vmem:[#allocation3 + $0x38] sm:$0xf]
      %v1862 = vld [vmem:[#allocation3 + $0x3c] sm:$0xf]
      %v1863 = vld [vmem:[#allocation3 + $0x40] sm:$0xf]
      %v1864 = vld [vmem:[#allocation3 + $0x44] sm:$0xf]
      %v1865 = vld [vmem:[#allocation3 + $0x48] sm:$0xf]
      %v1866 = vld [vmem:[#allocation3 + $0x4c] sm:$0xf]
      %v1867 = vld [vmem:[#allocation3 + $0x50] sm:$0xf]
      %v1868 = vld [vmem:[#allocation3 + $0x54] sm:$0xf]
      %v1869 = vld [vmem:[#allocation3 + $0x58] sm:$0xf]
      %v1870 = vld [vmem:[#allocation3 + $0x5c] sm:$0xf]
      %v1871 = vld [vmem:[#allocation3 + $0x60] sm:$0xf]
      %v1872 = vld [vmem:[#allocation3 + $0x64] sm:$0xf]
      %v1873 = vld [vmem:[#allocation3 + $0x68] sm:$0xf]
      %v1874 = vld [vmem:[#allocation3 + $0x6c] sm:$0xf]
      %v1875 = vld [vmem:[#allocation3 + $0x70] sm:$0xf]
      %v1876 = vld [vmem:[#allocation3 + $0x74] sm:$0xf]
      %v1877 = vld [vmem:[#allocation3 + $0x78] sm:$0xf]
      %v1878 = vld [vmem:[#allocation3 + $0x7c] sm:$0xf]
      %v1879 = vld [vmem:[#allocation3 + $0x80] sm:$0xf]
      %v1880 = vld [vmem:[#allocation3 + $0x84] sm:$0xf]
      %v1881 = vld [vmem:[#allocation3 + $0x88] sm:$0xf]
      %v1882 = vld [vmem:[#allocation3 + $0x8c] sm:$0xf]
      %v1883 = vld [vmem:[%s3] sm:$0x3]
      %v1884 = vld [vmem:[%s3 + $0x2] sm:$0x3]
      %v1885 = vld [vmem:[%s3 + $0x4] sm:$0x3]
      %v1886 = vld [vmem:[%s3 + $0x6] sm:$0x3]
      %v1887 = vld [vmem:[%s3 + $0x8] sm:$0x3]
      %v1888 = vld [vmem:[%s3 + $0xa] sm:$0x3]
      %v1889 = vld [vmem:[%s3 + $0xc] sm:$0x3]
      %v1890 = vld [vmem:[%s3 + $0xe] sm:$0x3]
      %v1891 = vld [vmem:[%s3 + $0x10] sm:$0x3]
      %v1924 = vunpack.c.l.b16 %v1849
      %v1925 = vunpack.c.l.b16 %v1850
      %v1926 = vunpack.c.l.b16 %v1851
      %v1927 = vunpack.c.l.b16 %v1852
      %v1928 = vunpack.c.l.b16 %v1853
      %v1929 = vunpack.c.l.b16 %v1854
      %v1930 = vunpack.c.l.b16 %v1855
      %v1931 = vunpack.c.l.b16 %v1856
      %v1932 = vunpack.c.l.b16 %v1857
      %v1933 = vunpack.c.l.b16 %v1858
      %v1934 = vunpack.c.l.b16 %v1859
      %v1935 = vunpack.c.l.b16 %v1860
      %v1936 = vunpack.c.l.b16 %v1861
      %v1937 = vunpack.c.l.b16 %v1862
      %v1938 = vunpack.c.l.b16 %v1863
      %v1939 = vunpack.c.l.b16 %v1864
      %v1940 = vunpack.c.l.b16 %v1865
      %v1941 = vunpack.c.l.b16 %v1866
      %v1942 = vunpack.c.l.b16 %v1867
      %v1943 = vunpack.c.l.b16 %v1868
      %v1944 = vunpack.c.l.b16 %v1869
      %v1945 = vunpack.c.l.b16 %v1870
      %v1946 = vunpack.c.l.b16 %v1871
      %v1947 = vunpack.c.l.b16 %v1872
      %v1948 = vunpack.c.l.b16 %v1873
      %v1949 = vunpack.c.l.b16 %v1874
      %v1950 = vunpack.c.l.b16 %v1875
      %v1951 = vunpack.c.l.b16 %v1876
      %v1952 = vunpack.c.l.b16 %v1877
      %v1953 = vunpack.c.l.b16 %v1878
      %v1954 = vunpack.c.l.b16 %v1879
      %v1955 = vunpack.c.l.b16 %v1880
      %v1956 = vpack.c.b16 %v1925, %v1924
      %v1957 = vpack.c.b16 %v1927, %v1926
      %v1958 = vpack.c.b16 %v1929, %v1928
      %v1959 = vpack.c.b16 %v1931, %v1930
      %v1960 = vpack.c.b16 %v1933, %v1932
      %v1961 = vpack.c.b16 %v1935, %v1934
      %v1962 = vpack.c.b16 %v1937, %v1936
      %v1963 = vpack.c.b16 %v1939, %v1938
      %v1964 = vpack.c.b16 %v1941, %v1940
      %v1965 = vpack.c.b16 %v1943, %v1942
      %v1966 = vpack.c.b16 %v1945, %v1944
      %v1967 = vpack.c.b16 %v1947, %v1946
      %v1968 = vpack.c.b16 %v1949, %v1948
      %v1969 = vpack.c.b16 %v1951, %v1950
      %v1970 = vpack.c.b16 %v1953, %v1952
      %v1971 = vpack.c.b16 %v1955, %v1954
      %v1973 = vsel %vm466, %v1956, 0
      %v1976 = vsel %vm466, %v1957, 0
      %v1979 = vsel %vm466, %v1958, 0
      %v1982 = vsel %vm466, %v1959, 0
      %v1985 = vsel %vm466, %v1960, 0
      %v1988 = vsel %vm466, %v1961, 0
      %v1991 = vsel %vm466, %v1962, 0
      %v1994 = vsel %vm466, %v1963, 0
      %v1997 = vsel %vm466, %v1964, 0
      %v2000 = vsel %vm466, %v1965, 0
      %v2003 = vsel %vm466, %v1966, 0
      %v2006 = vsel %vm466, %v1967, 0
      %v2009 = vsel %vm466, %v1968, 0
      %v2012 = vsel %vm466, %v1969, 0
      %v2015 = vsel %vm466, %v1970, 0
      %v2018 = vsel %vm466, %v1971, 0
      %v2021 = vsel %vm515, %v1886, 0
      %2023 = vmatpush.bf16.msra.mxu0 0
      %2024 = vmatpush.bf16.msra.mxu0 0
      %2025 = vmatpush.bf16.msra.mxu0 0
      %2026 = vmatpush.bf16.msra.mxu0 0
      %2027 = vmatpush.bf16.msra.mxu0 0
      %2028 = vmatpush.bf16.msra.mxu0 0
      %2029 = vmatpush.bf16.msra.mxu0 0
      %2030 = vmatpush.bf16.msra.mxu0 %v2021
      %2031 = vmatmul.bf16.gmra.mxu0 %v1973
      %v2032 = vpop.f32.mrf.mxu0
      %v2033 = vadd.f32 0.0, %v2032
      %v2034 = vpop.f32.mrf.mxu0
      %v2035 = vadd.f32 0.0, %v2034
      %2036 = vmatmul.bf16.gmra.mxu0 %v1976
      %v2037 = vpop.f32.mrf.mxu0
      %v2038 = vadd.f32 0.0, %v2037
      %v2039 = vpop.f32.mrf.mxu0
      %v2040 = vadd.f32 0.0, %v2039
      %2041 = vmatmul.bf16.gmra.mxu0 %v1979
      %v2042 = vpop.f32.mrf.mxu0
      %v2043 = vadd.f32 0.0, %v2042
      %v2044 = vpop.f32.mrf.mxu0
      %v2045 = vadd.f32 0.0, %v2044
      %2046 = vmatmul.bf16.gmra.mxu0 %v1982
      %v2047 = vpop.f32.mrf.mxu0
      %v2048 = vadd.f32 0.0, %v2047
      %v2049 = vpop.f32.mrf.mxu0
      %v2050 = vadd.f32 0.0, %v2049
      %2051 = vmatmul.bf16.gmra.mxu0 %v1985
      %v2052 = vpop.f32.mrf.mxu0
      %v2053 = vadd.f32 0.0, %v2052
      %v2054 = vpop.f32.mrf.mxu0
      %v2055 = vadd.f32 0.0, %v2054
      %2056 = vmatmul.bf16.gmra.mxu0 %v1988
      %v2057 = vpop.f32.mrf.mxu0
      %v2058 = vadd.f32 0.0, %v2057
      %v2059 = vpop.f32.mrf.mxu0
      %v2060 = vadd.f32 0.0, %v2059
      %2061 = vmatmul.bf16.gmra.mxu0 %v1991
      %v2062 = vpop.f32.mrf.mxu0
      %v2063 = vadd.f32 0.0, %v2062
      %v2064 = vpop.f32.mrf.mxu0
      %v2065 = vadd.f32 0.0, %v2064
      %2066 = vmatmul.bf16.gmra.mxu0 %v1994
      %v2067 = vpop.f32.mrf.mxu0
      %v2068 = vadd.f32 0.0, %v2067
      %v2069 = vpop.f32.mrf.mxu0
      %v2070 = vadd.f32 0.0, %v2069
      %2071 = vmatmul.bf16.gmra.mxu0 %v1997
      %v2072 = vpop.f32.mrf.mxu0
      %v2073 = vadd.f32 0.0, %v2072
      %v2074 = vpop.f32.mrf.mxu0
      %v2075 = vadd.f32 0.0, %v2074
      %2076 = vmatmul.bf16.gmra.mxu0 %v2000
      %v2077 = vpop.f32.mrf.mxu0
      %v2078 = vadd.f32 0.0, %v2077
      %v2079 = vpop.f32.mrf.mxu0
      %v2080 = vadd.f32 0.0, %v2079
      %2081 = vmatmul.bf16.gmra.mxu0 %v2003
      %v2082 = vpop.f32.mrf.mxu0
      %v2083 = vadd.f32 0.0, %v2082
      %v2084 = vpop.f32.mrf.mxu0
      %v2085 = vadd.f32 0.0, %v2084
      %2086 = vmatmul.bf16.gmra.mxu0 %v2006
      %v2087 = vpop.f32.mrf.mxu0
      %v2088 = vadd.f32 0.0, %v2087
      %v2089 = vpop.f32.mrf.mxu0
      %v2090 = vadd.f32 0.0, %v2089
      %2091 = vmatmul.bf16.gmra.mxu0 %v2009
      %v2092 = vpop.f32.mrf.mxu0
      %v2093 = vadd.f32 0.0, %v2092
      %v2094 = vpop.f32.mrf.mxu0
      %v2095 = vadd.f32 0.0, %v2094
      %2096 = vmatmul.bf16.gmra.mxu0 %v2012
      %v2097 = vpop.f32.mrf.mxu0
      %v2098 = vadd.f32 0.0, %v2097
      %v2099 = vpop.f32.mrf.mxu0
      %v2100 = vadd.f32 0.0, %v2099
      %2101 = vmatmul.bf16.gmra.mxu0 %v2015
      %v2102 = vpop.f32.mrf.mxu0
      %v2103 = vadd.f32 0.0, %v2102
      %v2104 = vpop.f32.mrf.mxu0
      %v2105 = vadd.f32 0.0, %v2104
      %2106 = vmatmul.bf16.gmra.mxu0 %v2018
      %v2107 = vpop.f32.mrf.mxu0
      %v2108 = vadd.f32 0.0, %v2107
      %v2109 = vpop.f32.mrf.mxu0
      %v2110 = vadd.f32 0.0, %v2109
      %2111 = vdwg.mxu0
      %v2114 = vunpack.c.l.b16 %v1847
      %v2115 = vunpack.c.l.b16 %v1848
      %v2116 = vpack.c.b16 %v2115, %v2114
      %v2118 = vsel %vm466, %v2116, 0
      %v2121 = vsel %vm515, %v1883, 0
      %2123 = vmatpush.bf16.msra.mxu0 0
      %2124 = vmatpush.bf16.msra.mxu0 0
      %2125 = vmatpush.bf16.msra.mxu0 0
      %2126 = vmatpush.bf16.msra.mxu0 0
      %2127 = vmatpush.bf16.msra.mxu0 0
      %2128 = vmatpush.bf16.msra.mxu0 0
      %2129 = vmatpush.bf16.msra.mxu0 0
      %2130 = vmatpush.bf16.msra.mxu0 %v2121
      %2131 = vmatmul.bf16.gmra.mxu0 %v2118
      %v2132 = vpop.f32.mrf.mxu0
      %v2133 = vadd.f32 %v2033, %v2132
      %v2134 = vpop.f32.mrf.mxu0
      %v2135 = vadd.f32 %v2035, %v2134
      %2136 = vmatmul.bf16.gmra.mxu0 %v1973
      %v2137 = vpop.f32.mrf.mxu0
      %v2138 = vadd.f32 %v2038, %v2137
      %v2139 = vpop.f32.mrf.mxu0
      %v2140 = vadd.f32 %v2040, %v2139
      %2141 = vmatmul.bf16.gmra.mxu0 %v1976
      %v2142 = vpop.f32.mrf.mxu0
      %v2143 = vadd.f32 %v2043, %v2142
      %v2144 = vpop.f32.mrf.mxu0
      %v2145 = vadd.f32 %v2045, %v2144
      %2146 = vmatmul.bf16.gmra.mxu0 %v1979
      %v2147 = vpop.f32.mrf.mxu0
      %v2148 = vadd.f32 %v2048, %v2147
      %v2149 = vpop.f32.mrf.mxu0
      %v2150 = vadd.f32 %v2050, %v2149
      %2151 = vmatmul.bf16.gmra.mxu0 %v1982
      %v2152 = vpop.f32.mrf.mxu0
      %v2153 = vadd.f32 %v2053, %v2152
      %v2154 = vpop.f32.mrf.mxu0
      %v2155 = vadd.f32 %v2055, %v2154
      %2156 = vmatmul.bf16.gmra.mxu0 %v1985
      %v2157 = vpop.f32.mrf.mxu0
      %v2158 = vadd.f32 %v2058, %v2157
      %v2159 = vpop.f32.mrf.mxu0
      %v2160 = vadd.f32 %v2060, %v2159
      %2161 = vmatmul.bf16.gmra.mxu0 %v1988
      %v2162 = vpop.f32.mrf.mxu0
      %v2163 = vadd.f32 %v2063, %v2162
      %v2164 = vpop.f32.mrf.mxu0
      %v2165 = vadd.f32 %v2065, %v2164
      %2166 = vmatmul.bf16.gmra.mxu0 %v1991
      %v2167 = vpop.f32.mrf.mxu0
      %v2168 = vadd.f32 %v2068, %v2167
      %v2169 = vpop.f32.mrf.mxu0
      %v2170 = vadd.f32 %v2070, %v2169
      %2171 = vmatmul.bf16.gmra.mxu0 %v1994
      %v2172 = vpop.f32.mrf.mxu0
      %v2173 = vadd.f32 %v2073, %v2172
      %v2174 = vpop.f32.mrf.mxu0
      %v2175 = vadd.f32 %v2075, %v2174
      %2176 = vmatmul.bf16.gmra.mxu0 %v1997
      %v2177 = vpop.f32.mrf.mxu0
      %v2178 = vadd.f32 %v2078, %v2177
      %v2179 = vpop.f32.mrf.mxu0
      %v2180 = vadd.f32 %v2080, %v2179
      %2181 = vmatmul.bf16.gmra.mxu0 %v2000
      %v2182 = vpop.f32.mrf.mxu0
      %v2183 = vadd.f32 %v2083, %v2182
      %v2184 = vpop.f32.mrf.mxu0
      %v2185 = vadd.f32 %v2085, %v2184
      %2186 = vmatmul.bf16.gmra.mxu0 %v2003
      %v2187 = vpop.f32.mrf.mxu0
      %v2188 = vadd.f32 %v2088, %v2187
      %v2189 = vpop.f32.mrf.mxu0
      %v2190 = vadd.f32 %v2090, %v2189
      %2191 = vmatmul.bf16.gmra.mxu0 %v2006
      %v2192 = vpop.f32.mrf.mxu0
      %v2193 = vadd.f32 %v2093, %v2192
      %v2194 = vpop.f32.mrf.mxu0
      %v2195 = vadd.f32 %v2095, %v2194
      %2196 = vmatmul.bf16.gmra.mxu0 %v2009
      %v2197 = vpop.f32.mrf.mxu0
      %v2198 = vadd.f32 %v2098, %v2197
      %v2199 = vpop.f32.mrf.mxu0
      %v2200 = vadd.f32 %v2100, %v2199
      %2201 = vmatmul.bf16.gmra.mxu0 %v2012
      %v2202 = vpop.f32.mrf.mxu0
      %v2203 = vadd.f32 %v2103, %v2202
      %v2204 = vpop.f32.mrf.mxu0
      %v2205 = vadd.f32 %v2105, %v2204
      %2206 = vmatmul.bf16.gmra.mxu0 %v2015
      %v2207 = vpop.f32.mrf.mxu0
      %v2208 = vadd.f32 %v2108, %v2207
      %v2209 = vpop.f32.mrf.mxu0
      %v2210 = vadd.f32 %v2110, %v2209
      %2211 = vdwg.mxu0
      %v2213 = vsel %vm515, %v1887, 0
      %2215 = vmatpush.bf16.msra.mxu0 0
      %2216 = vmatpush.bf16.msra.mxu0 0
      %2217 = vmatpush.bf16.msra.mxu0 0
      %2218 = vmatpush.bf16.msra.mxu0 0
      %2219 = vmatpush.bf16.msra.mxu0 0
      %2220 = vmatpush.bf16.msra.mxu0 0
      %2221 = vmatpush.bf16.msra.mxu0 0
      %2222 = vmatpush.bf16.msra.mxu0 %v2213
      %2223 = vmatmul.bf16.gmra.mxu0 %v1973
      %v2224 = vpop.f32.mrf.mxu0
      %v2225 = vadd.f32 0.0, %v2224
      %v2226 = vpop.f32.mrf.mxu0
      %v2227 = vadd.f32 0.0, %v2226
      %2228 = vmatmul.bf16.gmra.mxu0 %v1976
      %v2229 = vpop.f32.mrf.mxu0
      %v2230 = vadd.f32 0.0, %v2229
      %v2231 = vpop.f32.mrf.mxu0
      %v2232 = vadd.f32 0.0, %v2231
      %2233 = vmatmul.bf16.gmra.mxu0 %v1979
      %v2234 = vpop.f32.mrf.mxu0
      %v2235 = vadd.f32 0.0, %v2234
      %v2236 = vpop.f32.mrf.mxu0
      %v2237 = vadd.f32 0.0, %v2236
      %2238 = vmatmul.bf16.gmra.mxu0 %v1982
      %v2239 = vpop.f32.mrf.mxu0
      %v2240 = vadd.f32 0.0, %v2239
      %v2241 = vpop.f32.mrf.mxu0
      %v2242 = vadd.f32 0.0, %v2241
      %2243 = vmatmul.bf16.gmra.mxu0 %v1985
      %v2244 = vpop.f32.mrf.mxu0
      %v2245 = vadd.f32 0.0, %v2244
      %v2246 = vpop.f32.mrf.mxu0
      %v2247 = vadd.f32 0.0, %v2246
      %2248 = vmatmul.bf16.gmra.mxu0 %v1988
      %v2249 = vpop.f32.mrf.mxu0
      %v2250 = vadd.f32 0.0, %v2249
      %v2251 = vpop.f32.mrf.mxu0
      %v2252 = vadd.f32 0.0, %v2251
      %2253 = vmatmul.bf16.gmra.mxu0 %v1991
      %v2254 = vpop.f32.mrf.mxu0
      %v2255 = vadd.f32 0.0, %v2254
      %v2256 = vpop.f32.mrf.mxu0
      %v2257 = vadd.f32 0.0, %v2256
      %2258 = vmatmul.bf16.gmra.mxu0 %v1994
      %v2259 = vpop.f32.mrf.mxu0
      %v2260 = vadd.f32 0.0, %v2259
      %v2261 = vpop.f32.mrf.mxu0
      %v2262 = vadd.f32 0.0, %v2261
      %2263 = vmatmul.bf16.gmra.mxu0 %v1997
      %v2264 = vpop.f32.mrf.mxu0
      %v2265 = vadd.f32 0.0, %v2264
      %v2266 = vpop.f32.mrf.mxu0
      %v2267 = vadd.f32 0.0, %v2266
      %2268 = vmatmul.bf16.gmra.mxu0 %v2000
      %v2269 = vpop.f32.mrf.mxu0
      %v2270 = vadd.f32 0.0, %v2269
      %v2271 = vpop.f32.mrf.mxu0
      %v2272 = vadd.f32 0.0, %v2271
      %2273 = vmatmul.bf16.gmra.mxu0 %v2003
      %v2274 = vpop.f32.mrf.mxu0
      %v2275 = vadd.f32 0.0, %v2274
      %v2276 = vpop.f32.mrf.mxu0
      %v2277 = vadd.f32 0.0, %v2276
      %2278 = vmatmul.bf16.gmra.mxu0 %v2006
      %v2279 = vpop.f32.mrf.mxu0
      %v2280 = vadd.f32 0.0, %v2279
      %v2281 = vpop.f32.mrf.mxu0
      %v2282 = vadd.f32 0.0, %v2281
      %2283 = vmatmul.bf16.gmra.mxu0 %v2009
      %v2284 = vpop.f32.mrf.mxu0
      %v2285 = vadd.f32 0.0, %v2284
      %v2286 = vpop.f32.mrf.mxu0
      %v2287 = vadd.f32 0.0, %v2286
      %2288 = vmatmul.bf16.gmra.mxu0 %v2012
      %v2289 = vpop.f32.mrf.mxu0
      %v2290 = vadd.f32 0.0, %v2289
      %v2291 = vpop.f32.mrf.mxu0
      %v2292 = vadd.f32 0.0, %v2291
      %2293 = vmatmul.bf16.gmra.mxu0 %v2015
      %v2294 = vpop.f32.mrf.mxu0
      %v2295 = vadd.f32 0.0, %v2294
      %v2296 = vpop.f32.mrf.mxu0
      %v2297 = vadd.f32 0.0, %v2296
      %2298 = vmatmul.bf16.gmra.mxu0 %v2018
      %v2299 = vpop.f32.mrf.mxu0
      %v2300 = vadd.f32 0.0, %v2299
      %v2301 = vpop.f32.mrf.mxu0
      %v2302 = vadd.f32 0.0, %v2301
      %2303 = vdwg.mxu0
      %v2305 = vsel %vm515, %v1884, 0
      %2307 = vmatpush.bf16.msra.mxu0 0
      %2308 = vmatpush.bf16.msra.mxu0 0
      %2309 = vmatpush.bf16.msra.mxu0 0
      %2310 = vmatpush.bf16.msra.mxu0 0
      %2311 = vmatpush.bf16.msra.mxu0 0
      %2312 = vmatpush.bf16.msra.mxu0 0
      %2313 = vmatpush.bf16.msra.mxu0 0
      %2314 = vmatpush.bf16.msra.mxu0 %v2305
      %2315 = vmatmul.bf16.gmra.mxu0 %v2118
      %v2316 = vpop.f32.mrf.mxu0
      %v2317 = vadd.f32 %v2225, %v2316
      %v2318 = vpop.f32.mrf.mxu0
      %v2319 = vadd.f32 %v2227, %v2318
      %2320 = vmatmul.bf16.gmra.mxu0 %v1973
      %v2321 = vpop.f32.mrf.mxu0
      %v2322 = vadd.f32 %v2230, %v2321
      %v2323 = vpop.f32.mrf.mxu0
      %v2324 = vadd.f32 %v2232, %v2323
      %2325 = vmatmul.bf16.gmra.mxu0 %v1976
      %v2326 = vpop.f32.mrf.mxu0
      %v2327 = vadd.f32 %v2235, %v2326
      %v2328 = vpop.f32.mrf.mxu0
      %v2329 = vadd.f32 %v2237, %v2328
      %2330 = vmatmul.bf16.gmra.mxu0 %v1979
      %v2331 = vpop.f32.mrf.mxu0
      %v2332 = vadd.f32 %v2240, %v2331
      %v2333 = vpop.f32.mrf.mxu0
      %v2334 = vadd.f32 %v2242, %v2333
      %2335 = vmatmul.bf16.gmra.mxu0 %v1982
      %v2336 = vpop.f32.mrf.mxu0
      %v2337 = vadd.f32 %v2245, %v2336
      %v2338 = vpop.f32.mrf.mxu0
      %v2339 = vadd.f32 %v2247, %v2338
      %2340 = vmatmul.bf16.gmra.mxu0 %v1985
      %v2341 = vpop.f32.mrf.mxu0
      %v2342 = vadd.f32 %v2250, %v2341
      %v2343 = vpop.f32.mrf.mxu0
      %v2344 = vadd.f32 %v2252, %v2343
      %2345 = vmatmul.bf16.gmra.mxu0 %v1988
      %v2346 = vpop.f32.mrf.mxu0
      %v2347 = vadd.f32 %v2255, %v2346
      %v2348 = vpop.f32.mrf.mxu0
      %v2349 = vadd.f32 %v2257, %v2348
      %2350 = vmatmul.bf16.gmra.mxu0 %v1991
      %v2351 = vpop.f32.mrf.mxu0
      %v2352 = vadd.f32 %v2260, %v2351
      %v2353 = vpop.f32.mrf.mxu0
      %v2354 = vadd.f32 %v2262, %v2353
      %2355 = vmatmul.bf16.gmra.mxu0 %v1994
      %v2356 = vpop.f32.mrf.mxu0
      %v2357 = vadd.f32 %v2265, %v2356
      %v2358 = vpop.f32.mrf.mxu0
      %v2359 = vadd.f32 %v2267, %v2358
      %2360 = vmatmul.bf16.gmra.mxu0 %v1997
      %v2361 = vpop.f32.mrf.mxu0
      %v2362 = vadd.f32 %v2270, %v2361
      %v2363 = vpop.f32.mrf.mxu0
      %v2364 = vadd.f32 %v2272, %v2363
      %2365 = vmatmul.bf16.gmra.mxu0 %v2000
      %v2366 = vpop.f32.mrf.mxu0
      %v2367 = vadd.f32 %v2275, %v2366
      %v2368 = vpop.f32.mrf.mxu0
      %v2369 = vadd.f32 %v2277, %v2368
      %2370 = vmatmul.bf16.gmra.mxu0 %v2003
      %v2371 = vpop.f32.mrf.mxu0
      %v2372 = vadd.f32 %v2280, %v2371
      %v2373 = vpop.f32.mrf.mxu0
      %v2374 = vadd.f32 %v2282, %v2373
      %2375 = vmatmul.bf16.gmra.mxu0 %v2006
      %v2376 = vpop.f32.mrf.mxu0
      %v2377 = vadd.f32 %v2285, %v2376
      %v2378 = vpop.f32.mrf.mxu0
      %v2379 = vadd.f32 %v2287, %v2378
      %2380 = vmatmul.bf16.gmra.mxu0 %v2009
      %v2381 = vpop.f32.mrf.mxu0
      %v2382 = vadd.f32 %v2290, %v2381
      %v2383 = vpop.f32.mrf.mxu0
      %v2384 = vadd.f32 %v2292, %v2383
      %2385 = vmatmul.bf16.gmra.mxu0 %v2012
      %v2386 = vpop.f32.mrf.mxu0
      %v2387 = vadd.f32 %v2295, %v2386
      %v2388 = vpop.f32.mrf.mxu0
      %v2389 = vadd.f32 %v2297, %v2388
      %2390 = vmatmul.bf16.gmra.mxu0 %v2015
      %v2391 = vpop.f32.mrf.mxu0
      %v2392 = vadd.f32 %v2300, %v2391
      %v2393 = vpop.f32.mrf.mxu0
      %v2394 = vadd.f32 %v2302, %v2393
      %2395 = vdwg.mxu0
      %v2397 = vsel %vm515, %v1888, 0
      %2399 = vmatpush.bf16.msra.mxu0 0
      %2400 = vmatpush.bf16.msra.mxu0 0
      %2401 = vmatpush.bf16.msra.mxu0 0
      %2402 = vmatpush.bf16.msra.mxu0 0
      %2403 = vmatpush.bf16.msra.mxu0 0
      %2404 = vmatpush.bf16.msra.mxu0 0
      %2405 = vmatpush.bf16.msra.mxu0 0
      %2406 = vmatpush.bf16.msra.mxu0 %v2397
      %2407 = vmatmul.bf16.gmra.mxu0 %v1973
      %v2408 = vpop.f32.mrf.mxu0
      %v2409 = vadd.f32 0.0, %v2408
      %v2410 = vpop.f32.mrf.mxu0
      %v2411 = vadd.f32 0.0, %v2410
      %2412 = vmatmul.bf16.gmra.mxu0 %v1976
      %v2413 = vpop.f32.mrf.mxu0
      %v2414 = vadd.f32 0.0, %v2413
      %v2415 = vpop.f32.mrf.mxu0
      %v2416 = vadd.f32 0.0, %v2415
      %2417 = vmatmul.bf16.gmra.mxu0 %v1979
      %v2418 = vpop.f32.mrf.mxu0
      %v2419 = vadd.f32 0.0, %v2418
      %v2420 = vpop.f32.mrf.mxu0
      %v2421 = vadd.f32 0.0, %v2420
      %2422 = vmatmul.bf16.gmra.mxu0 %v1982
      %v2423 = vpop.f32.mrf.mxu0
      %v2424 = vadd.f32 0.0, %v2423
      %v2425 = vpop.f32.mrf.mxu0
      %v2426 = vadd.f32 0.0, %v2425
      %2427 = vmatmul.bf16.gmra.mxu0 %v1985
      %v2428 = vpop.f32.mrf.mxu0
      %v2429 = vadd.f32 0.0, %v2428
      %v2430 = vpop.f32.mrf.mxu0
      %v2431 = vadd.f32 0.0, %v2430
      %2432 = vmatmul.bf16.gmra.mxu0 %v1988
      %v2433 = vpop.f32.mrf.mxu0
      %v2434 = vadd.f32 0.0, %v2433
      %v2435 = vpop.f32.mrf.mxu0
      %v2436 = vadd.f32 0.0, %v2435
      %2437 = vmatmul.bf16.gmra.mxu0 %v1991
      %v2438 = vpop.f32.mrf.mxu0
      %v2439 = vadd.f32 0.0, %v2438
      %v2440 = vpop.f32.mrf.mxu0
      %v2441 = vadd.f32 0.0, %v2440
      %2442 = vmatmul.bf16.gmra.mxu0 %v1994
      %v2443 = vpop.f32.mrf.mxu0
      %v2444 = vadd.f32 0.0, %v2443
      %v2445 = vpop.f32.mrf.mxu0
      %v2446 = vadd.f32 0.0, %v2445
      %2447 = vmatmul.bf16.gmra.mxu0 %v1997
      %v2448 = vpop.f32.mrf.mxu0
      %v2449 = vadd.f32 0.0, %v2448
      %v2450 = vpop.f32.mrf.mxu0
      %v2451 = vadd.f32 0.0, %v2450
      %2452 = vmatmul.bf16.gmra.mxu0 %v2000
      %v2453 = vpop.f32.mrf.mxu0
      %v2454 = vadd.f32 0.0, %v2453
      %v2455 = vpop.f32.mrf.mxu0
      %v2456 = vadd.f32 0.0, %v2455
      %2457 = vmatmul.bf16.gmra.mxu0 %v2003
      %v2458 = vpop.f32.mrf.mxu0
      %v2459 = vadd.f32 0.0, %v2458
      %v2460 = vpop.f32.mrf.mxu0
      %v2461 = vadd.f32 0.0, %v2460
      %2462 = vmatmul.bf16.gmra.mxu0 %v2006
      %v2463 = vpop.f32.mrf.mxu0
      %v2464 = vadd.f32 0.0, %v2463
      %v2465 = vpop.f32.mrf.mxu0
      %v2466 = vadd.f32 0.0, %v2465
      %2467 = vmatmul.bf16.gmra.mxu0 %v2009
      %v2468 = vpop.f32.mrf.mxu0
      %v2469 = vadd.f32 0.0, %v2468
      %v2470 = vpop.f32.mrf.mxu0
      %v2471 = vadd.f32 0.0, %v2470
      %2472 = vmatmul.bf16.gmra.mxu0 %v2012
      %v2473 = vpop.f32.mrf.mxu0
      %v2474 = vadd.f32 0.0, %v2473
      %v2475 = vpop.f32.mrf.mxu0
      %v2476 = vadd.f32 0.0, %v2475
      %2477 = vmatmul.bf16.gmra.mxu0 %v2015
      %v2478 = vpop.f32.mrf.mxu0
      %v2479 = vadd.f32 0.0, %v2478
      %v2480 = vpop.f32.mrf.mxu0
      %v2481 = vadd.f32 0.0, %v2480
      %2482 = vmatmul.bf16.gmra.mxu0 %v2018
      %v2483 = vpop.f32.mrf.mxu0
      %v2484 = vadd.f32 0.0, %v2483
      %v2485 = vpop.f32.mrf.mxu0
      %v2486 = vadd.f32 0.0, %v2485
      %2487 = vdwg.mxu0
      %v2489 = vsel %vm515, %v1885, 0
      %2491 = vmatpush.bf16.msra.mxu0 0
      %2492 = vmatpush.bf16.msra.mxu0 0
      %2493 = vmatpush.bf16.msra.mxu0 0
      %2494 = vmatpush.bf16.msra.mxu0 0
      %2495 = vmatpush.bf16.msra.mxu0 0
      %2496 = vmatpush.bf16.msra.mxu0 0
      %2497 = vmatpush.bf16.msra.mxu0 0
      %2498 = vmatpush.bf16.msra.mxu0 %v2489
      %2499 = vmatmul.bf16.gmra.mxu0 %v2118
      %v2500 = vpop.f32.mrf.mxu0
      %v2501 = vadd.f32 %v2409, %v2500
      %v2502 = vpop.f32.mrf.mxu0
      %v2503 = vadd.f32 %v2411, %v2502
      %2504 = vmatmul.bf16.gmra.mxu0 %v1973
      %v2505 = vpop.f32.mrf.mxu0
      %v2506 = vadd.f32 %v2414, %v2505
      %v2507 = vpop.f32.mrf.mxu0
      %v2508 = vadd.f32 %v2416, %v2507
      %2509 = vmatmul.bf16.gmra.mxu0 %v1976
      %v2510 = vpop.f32.mrf.mxu0
      %v2511 = vadd.f32 %v2419, %v2510
      %v2512 = vpop.f32.mrf.mxu0
      %v2513 = vadd.f32 %v2421, %v2512
      %2514 = vmatmul.bf16.gmra.mxu0 %v1979
      %v2515 = vpop.f32.mrf.mxu0
      %v2516 = vadd.f32 %v2424, %v2515
      %v2517 = vpop.f32.mrf.mxu0
      %v2518 = vadd.f32 %v2426, %v2517
      %2519 = vmatmul.bf16.gmra.mxu0 %v1982
      %v2520 = vpop.f32.mrf.mxu0
      %v2521 = vadd.f32 %v2429, %v2520
      %v2522 = vpop.f32.mrf.mxu0
      %v2523 = vadd.f32 %v2431, %v2522
      %2524 = vmatmul.bf16.gmra.mxu0 %v1985
      %v2525 = vpop.f32.mrf.mxu0
      %v2526 = vadd.f32 %v2434, %v2525
      %v2527 = vpop.f32.mrf.mxu0
      %v2528 = vadd.f32 %v2436, %v2527
      %2529 = vmatmul.bf16.gmra.mxu0 %v1988
      %v2530 = vpop.f32.mrf.mxu0
      %v2531 = vadd.f32 %v2439, %v2530
      %v2532 = vpop.f32.mrf.mxu0
      %v2533 = vadd.f32 %v2441, %v2532
      %2534 = vmatmul.bf16.gmra.mxu0 %v1991
      %v2535 = vpop.f32.mrf.mxu0
      %v2536 = vadd.f32 %v2444, %v2535
      %v2537 = vpop.f32.mrf.mxu0
      %v2538 = vadd.f32 %v2446, %v2537
      %2539 = vmatmul.bf16.gmra.mxu0 %v1994
      %v2540 = vpop.f32.mrf.mxu0
      %v2541 = vadd.f32 %v2449, %v2540
      %v2542 = vpop.f32.mrf.mxu0
      %v2543 = vadd.f32 %v2451, %v2542
      %2544 = vmatmul.bf16.gmra.mxu0 %v1997
      %v2545 = vpop.f32.mrf.mxu0
      %v2546 = vadd.f32 %v2454, %v2545
      %v2547 = vpop.f32.mrf.mxu0
      %v2548 = vadd.f32 %v2456, %v2547
      %2549 = vmatmul.bf16.gmra.mxu0 %v2000
      %v2550 = vpop.f32.mrf.mxu0
      %v2551 = vadd.f32 %v2459, %v2550
      %v2552 = vpop.f32.mrf.mxu0
      %v2553 = vadd.f32 %v2461, %v2552
      %2554 = vmatmul.bf16.gmra.mxu0 %v2003
      %v2555 = vpop.f32.mrf.mxu0
      %v2556 = vadd.f32 %v2464, %v2555
      %v2557 = vpop.f32.mrf.mxu0
      %v2558 = vadd.f32 %v2466, %v2557
      %2559 = vmatmul.bf16.gmra.mxu0 %v2006
      %v2560 = vpop.f32.mrf.mxu0
      %v2561 = vadd.f32 %v2469, %v2560
      %v2562 = vpop.f32.mrf.mxu0
      %v2563 = vadd.f32 %v2471, %v2562
      %2564 = vmatmul.bf16.gmra.mxu0 %v2009
      %v2565 = vpop.f32.mrf.mxu0
      %v2566 = vadd.f32 %v2474, %v2565
      %v2567 = vpop.f32.mrf.mxu0
      %v2568 = vadd.f32 %v2476, %v2567
      %2569 = vmatmul.bf16.gmra.mxu0 %v2012
      %v2570 = vpop.f32.mrf.mxu0
      %v2571 = vadd.f32 %v2479, %v2570
      %v2572 = vpop.f32.mrf.mxu0
      %v2573 = vadd.f32 %v2481, %v2572
      %2574 = vmatmul.bf16.gmra.mxu0 %v2015
      %v2575 = vpop.f32.mrf.mxu0
      %v2576 = vadd.f32 %v2484, %v2575
      %v2577 = vpop.f32.mrf.mxu0
      %v2578 = vadd.f32 %v2486, %v2577
      %2579 = vdwg.mxu0
      %v2582 = vunpack.c.l.b16 %v1881
      %v2583 = vunpack.c.l.b16 %v1882
      %v2584 = vpack.c.b16 %v2583, %v2582
      %v2586 = vsel %vm466, %v2584, 0
      %v2589 = vsel %vm515, %v1889, 0
      %2591 = vmatpush.bf16.msra.mxu0 0
      %2592 = vmatpush.bf16.msra.mxu0 0
      %2593 = vmatpush.bf16.msra.mxu0 0
      %2594 = vmatpush.bf16.msra.mxu0 0
      %2595 = vmatpush.bf16.msra.mxu0 0
      %2596 = vmatpush.bf16.msra.mxu0 0
      %2597 = vmatpush.bf16.msra.mxu0 0
      %2598 = vmatpush.bf16.msra.mxu0 %v2589
      %2599 = vmatmul.bf16.gmra.mxu0 %v1976
      %v2600 = vpop.f32.mrf.mxu0
      %v2601 = vadd.f32 0.0, %v2600
      %v2602 = vpop.f32.mrf.mxu0
      %v2603 = vadd.f32 0.0, %v2602
      %2604 = vmatmul.bf16.gmra.mxu0 %v1979
      %v2605 = vpop.f32.mrf.mxu0
      %v2606 = vadd.f32 0.0, %v2605
      %v2607 = vpop.f32.mrf.mxu0
      %v2608 = vadd.f32 0.0, %v2607
      %2609 = vmatmul.bf16.gmra.mxu0 %v1982
      %v2610 = vpop.f32.mrf.mxu0
      %v2611 = vadd.f32 0.0, %v2610
      %v2612 = vpop.f32.mrf.mxu0
      %v2613 = vadd.f32 0.0, %v2612
      %2614 = vmatmul.bf16.gmra.mxu0 %v1985
      %v2615 = vpop.f32.mrf.mxu0
      %v2616 = vadd.f32 0.0, %v2615
      %v2617 = vpop.f32.mrf.mxu0
      %v2618 = vadd.f32 0.0, %v2617
      %2619 = vmatmul.bf16.gmra.mxu0 %v1988
      %v2620 = vpop.f32.mrf.mxu0
      %v2621 = vadd.f32 0.0, %v2620
      %v2622 = vpop.f32.mrf.mxu0
      %v2623 = vadd.f32 0.0, %v2622
      %2624 = vmatmul.bf16.gmra.mxu0 %v1991
      %v2625 = vpop.f32.mrf.mxu0
      %v2626 = vadd.f32 0.0, %v2625
      %v2627 = vpop.f32.mrf.mxu0
      %v2628 = vadd.f32 0.0, %v2627
      %2629 = vmatmul.bf16.gmra.mxu0 %v1994
      %v2630 = vpop.f32.mrf.mxu0
      %v2631 = vadd.f32 0.0, %v2630
      %v2632 = vpop.f32.mrf.mxu0
      %v2633 = vadd.f32 0.0, %v2632
      %2634 = vmatmul.bf16.gmra.mxu0 %v1997
      %v2635 = vpop.f32.mrf.mxu0
      %v2636 = vadd.f32 0.0, %v2635
      %v2637 = vpop.f32.mrf.mxu0
      %v2638 = vadd.f32 0.0, %v2637
      %2639 = vmatmul.bf16.gmra.mxu0 %v2000
      %v2640 = vpop.f32.mrf.mxu0
      %v2641 = vadd.f32 0.0, %v2640
      %v2642 = vpop.f32.mrf.mxu0
      %v2643 = vadd.f32 0.0, %v2642
      %2644 = vmatmul.bf16.gmra.mxu0 %v2003
      %v2645 = vpop.f32.mrf.mxu0
      %v2646 = vadd.f32 0.0, %v2645
      %v2647 = vpop.f32.mrf.mxu0
      %v2648 = vadd.f32 0.0, %v2647
      %2649 = vmatmul.bf16.gmra.mxu0 %v2006
      %v2650 = vpop.f32.mrf.mxu0
      %v2651 = vadd.f32 0.0, %v2650
      %v2652 = vpop.f32.mrf.mxu0
      %v2653 = vadd.f32 0.0, %v2652
      %2654 = vmatmul.bf16.gmra.mxu0 %v2009
      %v2655 = vpop.f32.mrf.mxu0
      %v2656 = vadd.f32 0.0, %v2655
      %v2657 = vpop.f32.mrf.mxu0
      %v2658 = vadd.f32 0.0, %v2657
      %2659 = vmatmul.bf16.gmra.mxu0 %v2012
      %v2660 = vpop.f32.mrf.mxu0
      %v2661 = vadd.f32 0.0, %v2660
      %v2662 = vpop.f32.mrf.mxu0
      %v2663 = vadd.f32 0.0, %v2662
      %2664 = vmatmul.bf16.gmra.mxu0 %v2015
      %v2665 = vpop.f32.mrf.mxu0
      %v2666 = vadd.f32 0.0, %v2665
      %v2667 = vpop.f32.mrf.mxu0
      %v2668 = vadd.f32 0.0, %v2667
      %2669 = vmatmul.bf16.gmra.mxu0 %v2018
      %v2670 = vpop.f32.mrf.mxu0
      %v2671 = vadd.f32 0.0, %v2670
      %v2672 = vpop.f32.mrf.mxu0
      %v2673 = vadd.f32 0.0, %v2672
      %2674 = vmatmul.bf16.gmra.mxu0 %v2586
      %v2675 = vpop.f32.mrf.mxu0
      %v2676 = vadd.f32 0.0, %v2675
      %v2677 = vpop.f32.mrf.mxu0
      %v2678 = vadd.f32 0.0, %v2677
      %2679 = vdwg.mxu0
      %v2680 = vadd.f32 %v2133, %v2601
      %v2681 = vadd.f32 %v2135, %v2603
      %v2682 = vadd.f32 %v2138, %v2606
      %v2683 = vadd.f32 %v2140, %v2608
      %v2684 = vadd.f32 %v2143, %v2611
      %v2685 = vadd.f32 %v2145, %v2613
      %v2686 = vadd.f32 %v2148, %v2616
      %v2687 = vadd.f32 %v2150, %v2618
      %v2688 = vadd.f32 %v2153, %v2621
      %v2689 = vadd.f32 %v2155, %v2623
      %v2690 = vadd.f32 %v2158, %v2626
      %v2691 = vadd.f32 %v2160, %v2628
      %v2692 = vadd.f32 %v2163, %v2631
      %v2693 = vadd.f32 %v2165, %v2633
      %v2694 = vadd.f32 %v2168, %v2636
      %v2695 = vadd.f32 %v2170, %v2638
      %v2696 = vadd.f32 %v2173, %v2641
      %v2697 = vadd.f32 %v2175, %v2643
      %v2698 = vadd.f32 %v2178, %v2646
      %v2699 = vadd.f32 %v2180, %v2648
      %v2700 = vadd.f32 %v2183, %v2651
      %v2701 = vadd.f32 %v2185, %v2653
      %v2702 = vadd.f32 %v2188, %v2656
      %v2703 = vadd.f32 %v2190, %v2658
      %v2704 = vadd.f32 %v2193, %v2661
      %v2705 = vadd.f32 %v2195, %v2663
      %v2706 = vadd.f32 %v2198, %v2666
      %v2707 = vadd.f32 %v2200, %v2668
      %v2708 = vadd.f32 %v2203, %v2671
      %v2709 = vadd.f32 %v2205, %v2673
      %v2710 = vadd.f32 %v2208, %v2676
      %v2711 = vadd.f32 %v2210, %v2678
      %v2713 = vsel %vm515, %v1890, 0
      %2715 = vmatpush.bf16.msra.mxu0 0
      %2716 = vmatpush.bf16.msra.mxu0 0
      %2717 = vmatpush.bf16.msra.mxu0 0
      %2718 = vmatpush.bf16.msra.mxu0 0
      %2719 = vmatpush.bf16.msra.mxu0 0
      %2720 = vmatpush.bf16.msra.mxu0 0
      %2721 = vmatpush.bf16.msra.mxu0 0
      %2722 = vmatpush.bf16.msra.mxu0 %v2713
      %2723 = vmatmul.bf16.gmra.mxu0 %v1976
      %v2724 = vpop.f32.mrf.mxu0
      %v2725 = vadd.f32 0.0, %v2724
      %v2726 = vpop.f32.mrf.mxu0
      %v2727 = vadd.f32 0.0, %v2726
      %2728 = vmatmul.bf16.gmra.mxu0 %v1979
      %v2729 = vpop.f32.mrf.mxu0
      %v2730 = vadd.f32 0.0, %v2729
      %v2731 = vpop.f32.mrf.mxu0
      %v2732 = vadd.f32 0.0, %v2731
      %2733 = vmatmul.bf16.gmra.mxu0 %v1982
      %v2734 = vpop.f32.mrf.mxu0
      %v2735 = vadd.f32 0.0, %v2734
      %v2736 = vpop.f32.mrf.mxu0
      %v2737 = vadd.f32 0.0, %v2736
      %2738 = vmatmul.bf16.gmra.mxu0 %v1985
      %v2739 = vpop.f32.mrf.mxu0
      %v2740 = vadd.f32 0.0, %v2739
      %v2741 = vpop.f32.mrf.mxu0
      %v2742 = vadd.f32 0.0, %v2741
      %2743 = vmatmul.bf16.gmra.mxu0 %v1988
      %v2744 = vpop.f32.mrf.mxu0
      %v2745 = vadd.f32 0.0, %v2744
      %v2746 = vpop.f32.mrf.mxu0
      %v2747 = vadd.f32 0.0, %v2746
      %2748 = vmatmul.bf16.gmra.mxu0 %v1991
      %v2749 = vpop.f32.mrf.mxu0
      %v2750 = vadd.f32 0.0, %v2749
      %v2751 = vpop.f32.mrf.mxu0
      %v2752 = vadd.f32 0.0, %v2751
      %2753 = vmatmul.bf16.gmra.mxu0 %v1994
      %v2754 = vpop.f32.mrf.mxu0
      %v2755 = vadd.f32 0.0, %v2754
      %v2756 = vpop.f32.mrf.mxu0
      %v2757 = vadd.f32 0.0, %v2756
      %2758 = vmatmul.bf16.gmra.mxu0 %v1997
      %v2759 = vpop.f32.mrf.mxu0
      %v2760 = vadd.f32 0.0, %v2759
      %v2761 = vpop.f32.mrf.mxu0
      %v2762 = vadd.f32 0.0, %v2761
      %2763 = vmatmul.bf16.gmra.mxu0 %v2000
      %v2764 = vpop.f32.mrf.mxu0
      %v2765 = vadd.f32 0.0, %v2764
      %v2766 = vpop.f32.mrf.mxu0
      %v2767 = vadd.f32 0.0, %v2766
      %2768 = vmatmul.bf16.gmra.mxu0 %v2003
      %v2769 = vpop.f32.mrf.mxu0
      %v2770 = vadd.f32 0.0, %v2769
      %v2771 = vpop.f32.mrf.mxu0
      %v2772 = vadd.f32 0.0, %v2771
      %2773 = vmatmul.bf16.gmra.mxu0 %v2006
      %v2774 = vpop.f32.mrf.mxu0
      %v2775 = vadd.f32 0.0, %v2774
      %v2776 = vpop.f32.mrf.mxu0
      %v2777 = vadd.f32 0.0, %v2776
      %2778 = vmatmul.bf16.gmra.mxu0 %v2009
      %v2779 = vpop.f32.mrf.mxu0
      %v2780 = vadd.f32 0.0, %v2779
      %v2781 = vpop.f32.mrf.mxu0
      %v2782 = vadd.f32 0.0, %v2781
      %2783 = vmatmul.bf16.gmra.mxu0 %v2012
      %v2784 = vpop.f32.mrf.mxu0
      %v2785 = vadd.f32 0.0, %v2784
      %v2786 = vpop.f32.mrf.mxu0
      %v2787 = vadd.f32 0.0, %v2786
      %2788 = vmatmul.bf16.gmra.mxu0 %v2015
      %v2789 = vpop.f32.mrf.mxu0
      %v2790 = vadd.f32 0.0, %v2789
      %v2791 = vpop.f32.mrf.mxu0
      %v2792 = vadd.f32 0.0, %v2791
      %2793 = vmatmul.bf16.gmra.mxu0 %v2018
      %v2794 = vpop.f32.mrf.mxu0
      %v2795 = vadd.f32 0.0, %v2794
      %v2796 = vpop.f32.mrf.mxu0
      %v2797 = vadd.f32 0.0, %v2796
      %2798 = vmatmul.bf16.gmra.mxu0 %v2586
      %v2799 = vpop.f32.mrf.mxu0
      %v2800 = vadd.f32 0.0, %v2799
      %v2801 = vpop.f32.mrf.mxu0
      %v2802 = vadd.f32 0.0, %v2801
      %2803 = vdwg.mxu0
      %v2804 = vadd.f32 %v2317, %v2725
      %v2805 = vadd.f32 %v2319, %v2727
      %v2806 = vadd.f32 %v2322, %v2730
      %v2807 = vadd.f32 %v2324, %v2732
      %v2808 = vadd.f32 %v2327, %v2735
      %v2809 = vadd.f32 %v2329, %v2737
      %v2810 = vadd.f32 %v2332, %v2740
      %v2811 = vadd.f32 %v2334, %v2742
      %v2812 = vadd.f32 %v2337, %v2745
      %v2813 = vadd.f32 %v2339, %v2747
      %v2814 = vadd.f32 %v2342, %v2750
      %v2815 = vadd.f32 %v2344, %v2752
      %v2816 = vadd.f32 %v2347, %v2755
      %v2817 = vadd.f32 %v2349, %v2757
      %v2818 = vadd.f32 %v2352, %v2760
      %v2819 = vadd.f32 %v2354, %v2762
      %v2820 = vadd.f32 %v2357, %v2765
      %v2821 = vadd.f32 %v2359, %v2767
      %v2822 = vadd.f32 %v2362, %v2770
      %v2823 = vadd.f32 %v2364, %v2772
      %v2824 = vadd.f32 %v2367, %v2775
      %v2825 = vadd.f32 %v2369, %v2777
      %v2826 = vadd.f32 %v2372, %v2780
      %v2827 = vadd.f32 %v2374, %v2782
      %v2828 = vadd.f32 %v2377, %v2785
      %v2829 = vadd.f32 %v2379, %v2787
      %v2830 = vadd.f32 %v2382, %v2790
      %v2831 = vadd.f32 %v2384, %v2792
      %v2832 = vadd.f32 %v2387, %v2795
      %v2833 = vadd.f32 %v2389, %v2797
      %v2834 = vadd.f32 %v2392, %v2800
      %v2835 = vadd.f32 %v2394, %v2802
      %v2837 = vsel %vm515, %v1891, 0
      %2839 = vmatpush.bf16.msra.mxu0 0
      %2840 = vmatpush.bf16.msra.mxu0 0
      %2841 = vmatpush.bf16.msra.mxu0 0
      %2842 = vmatpush.bf16.msra.mxu0 0
      %2843 = vmatpush.bf16.msra.mxu0 0
      %2844 = vmatpush.bf16.msra.mxu0 0
      %2845 = vmatpush.bf16.msra.mxu0 0
      %2846 = vmatpush.bf16.msra.mxu0 %v2837
      %2847 = vmatmul.bf16.gmra.mxu0 %v1976
      %v2848 = vpop.f32.mrf.mxu0
      %v2849 = vadd.f32 0.0, %v2848
      %v2850 = vpop.f32.mrf.mxu0
      %v2851 = vadd.f32 0.0, %v2850
      %2852 = vmatmul.bf16.gmra.mxu0 %v1979
      %v2853 = vpop.f32.mrf.mxu0
      %v2854 = vadd.f32 0.0, %v2853
      %v2855 = vpop.f32.mrf.mxu0
      %v2856 = vadd.f32 0.0, %v2855
      %2857 = vmatmul.bf16.gmra.mxu0 %v1982
      %v2858 = vpop.f32.mrf.mxu0
      %v2859 = vadd.f32 0.0, %v2858
      %v2860 = vpop.f32.mrf.mxu0
      %v2861 = vadd.f32 0.0, %v2860
      %2862 = vmatmul.bf16.gmra.mxu0 %v1985
      %v2863 = vpop.f32.mrf.mxu0
      %v2864 = vadd.f32 0.0, %v2863
      %v2865 = vpop.f32.mrf.mxu0
      %v2866 = vadd.f32 0.0, %v2865
      %2867 = vmatmul.bf16.gmra.mxu0 %v1988
      %v2868 = vpop.f32.mrf.mxu0
      %v2869 = vadd.f32 0.0, %v2868
      %v2870 = vpop.f32.mrf.mxu0
      %v2871 = vadd.f32 0.0, %v2870
      %2872 = vmatmul.bf16.gmra.mxu0 %v1991
      %v2873 = vpop.f32.mrf.mxu0
      %v2874 = vadd.f32 0.0, %v2873
      %v2875 = vpop.f32.mrf.mxu0
      %v2876 = vadd.f32 0.0, %v2875
      %2877 = vmatmul.bf16.gmra.mxu0 %v1994
      %v2878 = vpop.f32.mrf.mxu0
      %v2879 = vadd.f32 0.0, %v2878
      %v2880 = vpop.f32.mrf.mxu0
      %v2881 = vadd.f32 0.0, %v2880
      %2882 = vmatmul.bf16.gmra.mxu0 %v1997
      %v2883 = vpop.f32.mrf.mxu0
      %v2884 = vadd.f32 0.0, %v2883
      %v2885 = vpop.f32.mrf.mxu0
      %v2886 = vadd.f32 0.0, %v2885
      %2887 = vmatmul.bf16.gmra.mxu0 %v2000
      %v2888 = vpop.f32.mrf.mxu0
      %v2889 = vadd.f32 0.0, %v2888
      %v2890 = vpop.f32.mrf.mxu0
      %v2891 = vadd.f32 0.0, %v2890
      %2892 = vmatmul.bf16.gmra.mxu0 %v2003
      %v2893 = vpop.f32.mrf.mxu0
      %v2894 = vadd.f32 0.0, %v2893
      %v2895 = vpop.f32.mrf.mxu0
      %v2896 = vadd.f32 0.0, %v2895
      %2897 = vmatmul.bf16.gmra.mxu0 %v2006
      %v2898 = vpop.f32.mrf.mxu0
      %v2899 = vadd.f32 0.0, %v2898
      %v2900 = vpop.f32.mrf.mxu0
      %v2901 = vadd.f32 0.0, %v2900
      %2902 = vmatmul.bf16.gmra.mxu0 %v2009
      %v2903 = vpop.f32.mrf.mxu0
      %v2904 = vadd.f32 0.0, %v2903
      %v2905 = vpop.f32.mrf.mxu0
      %v2906 = vadd.f32 0.0, %v2905
      %2907 = vmatmul.bf16.gmra.mxu0 %v2012
      %v2908 = vpop.f32.mrf.mxu0
      %v2909 = vadd.f32 0.0, %v2908
      %v2910 = vpop.f32.mrf.mxu0
      %v2911 = vadd.f32 0.0, %v2910
      %2912 = vmatmul.bf16.gmra.mxu0 %v2015
      %v2913 = vpop.f32.mrf.mxu0
      %v2914 = vadd.f32 0.0, %v2913
      %v2915 = vpop.f32.mrf.mxu0
      %v2916 = vadd.f32 0.0, %v2915
      %2917 = vmatmul.bf16.gmra.mxu0 %v2018
      %v2918 = vpop.f32.mrf.mxu0
      %v2919 = vadd.f32 0.0, %v2918
      %v2920 = vpop.f32.mrf.mxu0
      %v2921 = vadd.f32 0.0, %v2920
      %2922 = vmatmul.bf16.gmra.mxu0 %v2586
      %v2923 = vpop.f32.mrf.mxu0
      %v2924 = vadd.f32 0.0, %v2923
      %v2925 = vpop.f32.mrf.mxu0
      %v2926 = vadd.f32 0.0, %v2925
      %2927 = vdwg.mxu0
      %v2928 = vadd.f32 %v2501, %v2849
      %v2929 = vadd.f32 %v2503, %v2851
      %v2930 = vadd.f32 %v2506, %v2854
      %v2931 = vadd.f32 %v2508, %v2856
      %v2932 = vadd.f32 %v2511, %v2859
      %v2933 = vadd.f32 %v2513, %v2861
      %v2934 = vadd.f32 %v2516, %v2864
      %v2935 = vadd.f32 %v2518, %v2866
      %v2936 = vadd.f32 %v2521, %v2869
      %v2937 = vadd.f32 %v2523, %v2871
      %v2938 = vadd.f32 %v2526, %v2874
      %v2939 = vadd.f32 %v2528, %v2876
      %v2940 = vadd.f32 %v2531, %v2879
      %v2941 = vadd.f32 %v2533, %v2881
      %v2942 = vadd.f32 %v2536, %v2884
      %v2943 = vadd.f32 %v2538, %v2886
      %v2944 = vadd.f32 %v2541, %v2889
      %v2945 = vadd.f32 %v2543, %v2891
      %v2946 = vadd.f32 %v2546, %v2894
      %v2947 = vadd.f32 %v2548, %v2896
      %v2948 = vadd.f32 %v2551, %v2899
      %v2949 = vadd.f32 %v2553, %v2901
      %v2950 = vadd.f32 %v2556, %v2904
      %v2951 = vadd.f32 %v2558, %v2906
      %v2952 = vadd.f32 %v2561, %v2909
      %v2953 = vadd.f32 %v2563, %v2911
      %v2954 = vadd.f32 %v2566, %v2914
      %v2955 = vadd.f32 %v2568, %v2916
      %v2956 = vadd.f32 %v2571, %v2919
      %v2957 = vadd.f32 %v2573, %v2921
      %v2958 = vadd.f32 %v2576, %v2924
      %v2959 = vadd.f32 %v2578, %v2926
      %v2960 = vrot.slane %v2680, 7
      %v2961 = vrot.slane %v2681, 7
      %v2962 = vrot.slane %v2682, 7
      %v2963 = vrot.slane %v2683, 7
      %v2964 = vrot.slane %v2684, 7
      %v2965 = vrot.slane %v2685, 7
      %v2966 = vrot.slane %v2686, 7
      %v2967 = vrot.slane %v2687, 7
      %v2968 = vrot.slane %v2688, 7
      %v2969 = vrot.slane %v2689, 7
      %v2970 = vrot.slane %v2690, 7
      %v2971 = vrot.slane %v2691, 7
      %v2972 = vrot.slane %v2692, 7
      %v2973 = vrot.slane %v2693, 7
      %v2974 = vrot.slane %v2694, 7
      %v2975 = vrot.slane %v2695, 7
      %v2976 = vrot.slane %v2696, 7
      %v2977 = vrot.slane %v2697, 7
      %v2978 = vrot.slane %v2698, 7
      %v2979 = vrot.slane %v2699, 7
      %v2980 = vrot.slane %v2700, 7
      %v2981 = vrot.slane %v2701, 7
      %v2982 = vrot.slane %v2702, 7
      %v2983 = vrot.slane %v2703, 7
      %v2984 = vrot.slane %v2704, 7
      %v2985 = vrot.slane %v2705, 7
      %v2986 = vrot.slane %v2706, 7
      %v2987 = vrot.slane %v2707, 7
      %v2988 = vrot.slane %v2708, 7
      %v2989 = vrot.slane %v2709, 7
      %v2990 = vrot.slane %v2710, 7
      %v2991 = vrot.slane %v2711, 7
      %v2992 = vsel %vm1488, %v2990, %v2991
      %v2993 = vsel %vm1488, %v2989, %v2990
      %v2994 = vsel %vm1488, %v2988, %v2989
      %v2995 = vsel %vm1488, %v2987, %v2988
      %v2996 = vsel %vm1488, %v2986, %v2987
      %v2997 = vsel %vm1488, %v2985, %v2986
      %v2998 = vsel %vm1488, %v2984, %v2985
      %v2999 = vsel %vm1488, %v2983, %v2984
      %v3000 = vsel %vm1488, %v2982, %v2983
      %v3001 = vsel %vm1488, %v2981, %v2982
      %v3002 = vsel %vm1488, %v2980, %v2981
      %v3003 = vsel %vm1488, %v2979, %v2980
      %v3004 = vsel %vm1488, %v2978, %v2979
      %v3005 = vsel %vm1488, %v2977, %v2978
      %v3006 = vsel %vm1488, %v2976, %v2977
      %v3007 = vsel %vm1488, %v2975, %v2976
      %v3008 = vsel %vm1488, %v2974, %v2975
      %v3009 = vsel %vm1488, %v2973, %v2974
      %v3010 = vsel %vm1488, %v2972, %v2973
      %v3011 = vsel %vm1488, %v2971, %v2972
      %v3012 = vsel %vm1488, %v2970, %v2971
      %v3013 = vsel %vm1488, %v2969, %v2970
      %v3014 = vsel %vm1488, %v2968, %v2969
      %v3015 = vsel %vm1488, %v2967, %v2968
      %v3016 = vsel %vm1488, %v2966, %v2967
      %v3017 = vsel %vm1488, %v2965, %v2966
      %v3018 = vsel %vm1488, %v2964, %v2965
      %v3019 = vsel %vm1488, %v2963, %v2964
      %v3020 = vsel %vm1488, %v2962, %v2963
      %v3021 = vsel %vm1488, %v2961, %v2962
      %v3022 = vsel %vm1488, %v2960, %v2961
      %v3023 = vsel %vm1488, %v2991, %v2960
      %v3024 = vsel %vm337, %v3023, 0.0
      %v3025 = vsel %vm338, %v3022, 0.0
      %v3026 = vsel %vm337, %v3021, 0.0
      %v3027 = vsel %vm338, %v3020, 0.0
      %v3028 = vsel %vm337, %v3019, 0.0
      %v3029 = vsel %vm338, %v3018, 0.0
      %v3030 = vsel %vm337, %v3017, 0.0
      %v3031 = vsel %vm338, %v3016, 0.0
      %v3032 = vsel %vm337, %v3015, 0.0
      %v3033 = vsel %vm338, %v3014, 0.0
      %v3034 = vsel %vm337, %v3013, 0.0
      %v3035 = vsel %vm338, %v3012, 0.0
      %v3036 = vsel %vm337, %v3011, 0.0
      %v3037 = vsel %vm338, %v3010, 0.0
      %v3038 = vsel %vm337, %v3009, 0.0
      %v3039 = vsel %vm338, %v3008, 0.0
      %v3040 = vsel %vm337, %v3007, 0.0
      %v3041 = vsel %vm338, %v3006, 0.0
      %v3042 = vsel %vm337, %v3005, 0.0
      %v3043 = vsel %vm338, %v3004, 0.0
      %v3044 = vsel %vm337, %v3003, 0.0
      %v3045 = vsel %vm338, %v3002, 0.0
      %v3046 = vsel %vm337, %v3001, 0.0
      %v3047 = vsel %vm338, %v3000, 0.0
      %v3048 = vsel %vm337, %v2999, 0.0
      %v3049 = vsel %vm338, %v2998, 0.0
      %v3050 = vsel %vm337, %v2997, 0.0
      %v3051 = vsel %vm338, %v2996, 0.0
      %v3052 = vsel %vm337, %v2995, 0.0
      %v3053 = vsel %vm338, %v2994, 0.0
      %v3054 = vsel %vm337, %v2993, 0.0
      %v3055 = vsel %vm338, %v2992, 0.0
      %v3056 = vrot.slane %v2928, 1
      %v3057 = vrot.slane %v2929, 1
      %v3058 = vrot.slane %v2930, 1
      %v3059 = vrot.slane %v2931, 1
      %v3060 = vrot.slane %v2932, 1
      %v3061 = vrot.slane %v2933, 1
      %v3062 = vrot.slane %v2934, 1
      %v3063 = vrot.slane %v2935, 1
      %v3064 = vrot.slane %v2936, 1
      %v3065 = vrot.slane %v2937, 1
      %v3066 = vrot.slane %v2938, 1
      %v3067 = vrot.slane %v2939, 1
      %v3068 = vrot.slane %v2940, 1
      %v3069 = vrot.slane %v2941, 1
      %v3070 = vrot.slane %v2942, 1
      %v3071 = vrot.slane %v2943, 1
      %v3072 = vrot.slane %v2944, 1
      %v3073 = vrot.slane %v2945, 1
      %v3074 = vrot.slane %v2946, 1
      %v3075 = vrot.slane %v2947, 1
      %v3076 = vrot.slane %v2948, 1
      %v3077 = vrot.slane %v2949, 1
      %v3078 = vrot.slane %v2950, 1
      %v3079 = vrot.slane %v2951, 1
      %v3080 = vrot.slane %v2952, 1
      %v3081 = vrot.slane %v2953, 1
      %v3082 = vrot.slane %v2954, 1
      %v3083 = vrot.slane %v2955, 1
      %v3084 = vrot.slane %v2956, 1
      %v3085 = vrot.slane %v2957, 1
      %v3086 = vrot.slane %v2958, 1
      %v3087 = vrot.slane %v2959, 1
      %v3088 = vsel %vm1585, %v3086, %v3087
      %v3089 = vsel %vm1585, %v3085, %v3086
      %v3090 = vsel %vm1585, %v3084, %v3085
      %v3091 = vsel %vm1585, %v3083, %v3084
      %v3092 = vsel %vm1585, %v3082, %v3083
      %v3093 = vsel %vm1585, %v3081, %v3082
      %v3094 = vsel %vm1585, %v3080, %v3081
      %v3095 = vsel %vm1585, %v3079, %v3080
      %v3096 = vsel %vm1585, %v3078, %v3079
      %v3097 = vsel %vm1585, %v3077, %v3078
      %v3098 = vsel %vm1585, %v3076, %v3077
      %v3099 = vsel %vm1585, %v3075, %v3076
      %v3100 = vsel %vm1585, %v3074, %v3075
      %v3101 = vsel %vm1585, %v3073, %v3074
      %v3102 = vsel %vm1585, %v3072, %v3073
      %v3103 = vsel %vm1585, %v3071, %v3072
      %v3104 = vsel %vm1585, %v3070, %v3071
      %v3105 = vsel %vm1585, %v3069, %v3070
      %v3106 = vsel %vm1585, %v3068, %v3069
      %v3107 = vsel %vm1585, %v3067, %v3068
      %v3108 = vsel %vm1585, %v3066, %v3067
      %v3109 = vsel %vm1585, %v3065, %v3066
      %v3110 = vsel %vm1585, %v3064, %v3065
      %v3111 = vsel %vm1585, %v3063, %v3064
      %v3112 = vsel %vm1585, %v3062, %v3063
      %v3113 = vsel %vm1585, %v3061, %v3062
      %v3114 = vsel %vm1585, %v3060, %v3061
      %v3115 = vsel %vm1585, %v3059, %v3060
      %v3116 = vsel %vm1585, %v3058, %v3059
      %v3117 = vsel %vm1585, %v3057, %v3058
      %v3118 = vsel %vm1585, %v3056, %v3057
      %v3119 = vsel %vm1585, %v3087, %v3056
      %v3120 = vsel %vm339, %v3118, 0.0
      %v3121 = vsel %vm340, %v3117, 0.0
      %v3122 = vsel %vm339, %v3116, 0.0
      %v3123 = vsel %vm340, %v3115, 0.0
      %v3124 = vsel %vm339, %v3114, 0.0
      %v3125 = vsel %vm340, %v3113, 0.0
      %v3126 = vsel %vm339, %v3112, 0.0
      %v3127 = vsel %vm340, %v3111, 0.0
      %v3128 = vsel %vm339, %v3110, 0.0
      %v3129 = vsel %vm340, %v3109, 0.0
      %v3130 = vsel %vm339, %v3108, 0.0
      %v3131 = vsel %vm340, %v3107, 0.0
      %v3132 = vsel %vm339, %v3106, 0.0
      %v3133 = vsel %vm340, %v3105, 0.0
      %v3134 = vsel %vm339, %v3104, 0.0
      %v3135 = vsel %vm340, %v3103, 0.0
      %v3136 = vsel %vm339, %v3102, 0.0
      %v3137 = vsel %vm340, %v3101, 0.0
      %v3138 = vsel %vm339, %v3100, 0.0
      %v3139 = vsel %vm340, %v3099, 0.0
      %v3140 = vsel %vm339, %v3098, 0.0
      %v3141 = vsel %vm340, %v3097, 0.0
      %v3142 = vsel %vm339, %v3096, 0.0
      %v3143 = vsel %vm340, %v3095, 0.0
      %v3144 = vsel %vm339, %v3094, 0.0
      %v3145 = vsel %vm340, %v3093, 0.0
      %v3146 = vsel %vm339, %v3092, 0.0
      %v3147 = vsel %vm340, %v3091, 0.0
      %v3148 = vsel %vm339, %v3090, 0.0
      %v3149 = vsel %vm340, %v3089, 0.0
      %v3150 = vsel %vm339, %v3088, 0.0
      %v3151 = vsel %vm340, %v3119, 0.0
      %v3152 = vadd.f32 %v2804, %v3024
      %v3153 = vadd.f32 %v2805, %v3025
      %v3154 = vadd.f32 %v2806, %v3026
      %v3155 = vadd.f32 %v2807, %v3027
      %v3156 = vadd.f32 %v2808, %v3028
      %v3157 = vadd.f32 %v2809, %v3029
      %v3158 = vadd.f32 %v2810, %v3030
      %v3159 = vadd.f32 %v2811, %v3031
      %v3160 = vadd.f32 %v2812, %v3032
      %v3161 = vadd.f32 %v2813, %v3033
      %v3162 = vadd.f32 %v2814, %v3034
      %v3163 = vadd.f32 %v2815, %v3035
      %v3164 = vadd.f32 %v2816, %v3036
      %v3165 = vadd.f32 %v2817, %v3037
      %v3166 = vadd.f32 %v2818, %v3038
      %v3167 = vadd.f32 %v2819, %v3039
      %v3168 = vadd.f32 %v2820, %v3040
      %v3169 = vadd.f32 %v2821, %v3041
      %v3170 = vadd.f32 %v2822, %v3042
      %v3171 = vadd.f32 %v2823, %v3043
      %v3172 = vadd.f32 %v2824, %v3044
      %v3173 = vadd.f32 %v2825, %v3045
      %v3174 = vadd.f32 %v2826, %v3046
      %v3175 = vadd.f32 %v2827, %v3047
      %v3176 = vadd.f32 %v2828, %v3048
      %v3177 = vadd.f32 %v2829, %v3049
      %v3178 = vadd.f32 %v2830, %v3050
      %v3179 = vadd.f32 %v2831, %v3051
      %v3180 = vadd.f32 %v2832, %v3052
      %v3181 = vadd.f32 %v2833, %v3053
      %v3182 = vadd.f32 %v2834, %v3054
      %v3183 = vadd.f32 %v2835, %v3055
      %v3184 = vadd.f32 %v3152, %v3120
      %v3185 = vadd.f32 %v3153, %v3121
      %v3186 = vadd.f32 %v3154, %v3122
      %v3187 = vadd.f32 %v3155, %v3123
      %v3188 = vadd.f32 %v3156, %v3124
      %v3189 = vadd.f32 %v3157, %v3125
      %v3190 = vadd.f32 %v3158, %v3126
      %v3191 = vadd.f32 %v3159, %v3127
      %v3192 = vadd.f32 %v3160, %v3128
      %v3193 = vadd.f32 %v3161, %v3129
      %v3194 = vadd.f32 %v3162, %v3130
      %v3195 = vadd.f32 %v3163, %v3131
      %v3196 = vadd.f32 %v3164, %v3132
      %v3197 = vadd.f32 %v3165, %v3133
      %v3198 = vadd.f32 %v3166, %v3134
      %v3199 = vadd.f32 %v3167, %v3135
      %v3200 = vadd.f32 %v3168, %v3136
      %v3201 = vadd.f32 %v3169, %v3137
      %v3202 = vadd.f32 %v3170, %v3138
      %v3203 = vadd.f32 %v3171, %v3139
      %v3204 = vadd.f32 %v3172, %v3140
      %v3205 = vadd.f32 %v3173, %v3141
      %v3206 = vadd.f32 %v3174, %v3142
      %v3207 = vadd.f32 %v3175, %v3143
      %v3208 = vadd.f32 %v3176, %v3144
      %v3209 = vadd.f32 %v3177, %v3145
      %v3210 = vadd.f32 %v3178, %v3146
      %v3211 = vadd.f32 %v3179, %v3147
      %v3212 = vadd.f32 %v3180, %v3148
      %v3213 = vadd.f32 %v3181, %v3149
      %v3214 = vadd.f32 %v3182, %v3150
      %v3215 = vadd.f32 %v3183, %v3151
      %v3216 = vld [vmem:[%s4] sm:$0x1]
      %v3218 = vperm.slane %v3216, 0
      %v3220 = vadd.f32 %v3184, %v3218
      %v3221 = vadd.f32 %v3185, %v3218
      %v3222 = vadd.f32 %v3186, %v3218
      %v3223 = vadd.f32 %v3187, %v3218
      %v3224 = vadd.f32 %v3188, %v3218
      %v3225 = vadd.f32 %v3189, %v3218
      %v3226 = vadd.f32 %v3190, %v3218
      %v3227 = vadd.f32 %v3191, %v3218
      %v3228 = vadd.f32 %v3192, %v3218
      %v3229 = vadd.f32 %v3193, %v3218
      %v3230 = vadd.f32 %v3194, %v3218
      %v3231 = vadd.f32 %v3195, %v3218
      %v3232 = vadd.f32 %v3196, %v3218
      %v3233 = vadd.f32 %v3197, %v3218
      %v3234 = vadd.f32 %v3198, %v3218
      %v3235 = vadd.f32 %v3199, %v3218
      %v3236 = vadd.f32 %v3200, %v3218
      %v3237 = vadd.f32 %v3201, %v3218
      %v3238 = vadd.f32 %v3202, %v3218
      %v3239 = vadd.f32 %v3203, %v3218
      %v3240 = vadd.f32 %v3204, %v3218
      %v3241 = vadd.f32 %v3205, %v3218
      %v3242 = vadd.f32 %v3206, %v3218
      %v3243 = vadd.f32 %v3207, %v3218
      %v3244 = vadd.f32 %v3208, %v3218
      %v3245 = vadd.f32 %v3209, %v3218
      %v3246 = vadd.f32 %v3210, %v3218
      %v3247 = vadd.f32 %v3211, %v3218
      %v3248 = vadd.f32 %v3212, %v3218
      %v3249 = vadd.f32 %v3213, %v3218
      %v3250 = vadd.f32 %v3214, %v3218
      %v3251 = vadd.f32 %v3215, %v3218
      %v3252 = vadd.f32 %v3220, %v226
      %v3253 = vadd.f32 %v3221, %v227
      %v3254 = vadd.f32 %v3222, %v228
      %v3255 = vadd.f32 %v3223, %v229
      %v3256 = vadd.f32 %v3224, %v230
      %v3257 = vadd.f32 %v3225, %v231
      %v3258 = vadd.f32 %v3226, %v232
      %v3259 = vadd.f32 %v3227, %v233
      %v3260 = vadd.f32 %v3228, %v234
      %v3261 = vadd.f32 %v3229, %v235
      %v3262 = vadd.f32 %v3230, %v236
      %v3263 = vadd.f32 %v3231, %v237
      %v3264 = vadd.f32 %v3232, %v238
      %v3265 = vadd.f32 %v3233, %v239
      %v3266 = vadd.f32 %v3234, %v240
      %v3267 = vadd.f32 %v3235, %v241
      %v3268 = vadd.f32 %v3236, %v242
      %v3269 = vadd.f32 %v3237, %v243
      %v3270 = vadd.f32 %v3238, %v244
      %v3271 = vadd.f32 %v3239, %v245
      %v3272 = vadd.f32 %v3240, %v246
      %v3273 = vadd.f32 %v3241, %v247
      %v3274 = vadd.f32 %v3242, %v248
      %v3275 = vadd.f32 %v3243, %v249
      %v3276 = vadd.f32 %v3244, %v250
      %v3277 = vadd.f32 %v3245, %v251
      %v3278 = vadd.f32 %v3246, %v252
      %v3279 = vadd.f32 %v3247, %v253
      %v3280 = vadd.f32 %v3248, %v254
      %v3281 = vadd.f32 %v3249, %v255
      %v3282 = vadd.f32 %v3250, %v256
      %v3283 = vadd.f32 %v3251, %v257
      %v3284 = vmax.f32 %v3252, 0.0
      %v3285 = vmax.f32 %v3253, 0.0
      %v3286 = vmax.f32 %v3254, 0.0
      %v3287 = vmax.f32 %v3255, 0.0
      %v3288 = vmax.f32 %v3256, 0.0
      %v3289 = vmax.f32 %v3257, 0.0
      %v3290 = vmax.f32 %v3258, 0.0
      %v3291 = vmax.f32 %v3259, 0.0
      %v3292 = vmax.f32 %v3260, 0.0
      %v3293 = vmax.f32 %v3261, 0.0
      %v3294 = vmax.f32 %v3262, 0.0
      %v3295 = vmax.f32 %v3263, 0.0
      %v3296 = vmax.f32 %v3264, 0.0
      %v3297 = vmax.f32 %v3265, 0.0
      %v3298 = vmax.f32 %v3266, 0.0
      %v3299 = vmax.f32 %v3267, 0.0
      %v3300 = vmax.f32 %v3268, 0.0
      %v3301 = vmax.f32 %v3269, 0.0
      %v3302 = vmax.f32 %v3270, 0.0
      %v3303 = vmax.f32 %v3271, 0.0
      %v3304 = vmax.f32 %v3272, 0.0
      %v3305 = vmax.f32 %v3273, 0.0
      %v3306 = vmax.f32 %v3274, 0.0
      %v3307 = vmax.f32 %v3275, 0.0
      %v3308 = vmax.f32 %v3276, 0.0
      %v3309 = vmax.f32 %v3277, 0.0
      %v3310 = vmax.f32 %v3278, 0.0
      %v3311 = vmax.f32 %v3279, 0.0
      %v3312 = vmax.f32 %v3280, 0.0
      %v3313 = vmax.f32 %v3281, 0.0
      %v3314 = vmax.f32 %v3282, 0.0
      %v3315 = vmax.f32 %v3283, 0.0
      %3316 = vst.msk [vmem:[%s224] sm:$0xff] %vm466, %v3284
      %3317 = vst.msk [vmem:[%s224 + $0x8] sm:$0xff] %vm466, %v3285
      %3318 = vst.msk [vmem:[%s224 + $0x10] sm:$0xff] %vm466, %v3286
      %3319 = vst.msk [vmem:[%s224 + $0x18] sm:$0xff] %vm466, %v3287
      %3320 = vst.msk [vmem:[%s224 + $0x20] sm:$0xff] %vm466, %v3288
      %3321 = vst.msk [vmem:[%s224 + $0x28] sm:$0xff] %vm466, %v3289
      %3322 = vst.msk [vmem:[%s224 + $0x30] sm:$0xff] %vm466, %v3290
      %3323 = vst.msk [vmem:[%s224 + $0x38] sm:$0xff] %vm466, %v3291
      %3324 = vst.msk [vmem:[%s224 + $0x40] sm:$0xff] %vm466, %v3292
      %3325 = vst.msk [vmem:[%s224 + $0x48] sm:$0xff] %vm466, %v3293
      %3326 = vst.msk [vmem:[%s224 + $0x50] sm:$0xff] %vm466, %v3294
      %3327 = vst.msk [vmem:[%s224 + $0x58] sm:$0xff] %vm466, %v3295
      %3328 = vst.msk [vmem:[%s224 + $0x60] sm:$0xff] %vm466, %v3296
      %3329 = vst.msk [vmem:[%s224 + $0x68] sm:$0xff] %vm466, %v3297
      %3330 = vst.msk [vmem:[%s224 + $0x70] sm:$0xff] %vm466, %v3298
      %3331 = vst.msk [vmem:[%s224 + $0x78] sm:$0xff] %vm466, %v3299
      %3332 = vst.msk [vmem:[%s224 + $0x80] sm:$0xff] %vm466, %v3300
      %3333 = vst.msk [vmem:[%s224 + $0x88] sm:$0xff] %vm466, %v3301
      %3334 = vst.msk [vmem:[%s224 + $0x90] sm:$0xff] %vm466, %v3302
      %3335 = vst.msk [vmem:[%s224 + $0x98] sm:$0xff] %vm466, %v3303
      %3336 = vst.msk [vmem:[%s224 + $0xa0] sm:$0xff] %vm466, %v3304
      %3337 = vst.msk [vmem:[%s224 + $0xa8] sm:$0xff] %vm466, %v3305
      %3338 = vst.msk [vmem:[%s224 + $0xb0] sm:$0xff] %vm466, %v3306
      %3339 = vst.msk [vmem:[%s224 + $0xb8] sm:$0xff] %vm466, %v3307
      %3340 = vst.msk [vmem:[%s224 + $0xc0] sm:$0xff] %vm466, %v3308
      %3341 = vst.msk [vmem:[%s224 + $0xc8] sm:$0xff] %vm466, %v3309
      %3342 = vst.msk [vmem:[%s224 + $0xd0] sm:$0xff] %vm466, %v3310
      %3343 = vst.msk [vmem:[%s224 + $0xd8] sm:$0xff] %vm466, %v3311
      %3344 = vst.msk [vmem:[%s224 + $0xe0] sm:$0xff] %vm466, %v3312
      %3345 = vst.msk [vmem:[%s224 + $0xe8] sm:$0xff] %vm466, %v3313
      %3346 = vst.msk [vmem:[%s224 + $0xf0] sm:$0xff] %vm466, %v3314
      %3347 = vst.msk [vmem:[%s224 + $0xf8] sm:$0xff] %vm466, %v3315
      %p3348 = scmp.lt.s32.totalorder %s16, 1
      %s3349 = scalar_select %p3348, %s16, 1
      %s3350 = smul.addr %s3349, 32
      %s3351 = smul.addr %s3350, 8
      %s3352 = scalar_lea.vmem %s5, %s3351
      // Predicated region
      $region41: #{tpu_custom_call.1} parent=39 // pred_check
        %p3353 = pneg %p144
      $region42: #{tpu_custom_call.1} parent=39 // pred_check_branch
        %3355 = sbr.rel (%p3353) target = $region44
      $region43: #{tpu_custom_call.1} parent=39 // pred_region
        _
      $region44: #{tpu_custom_call.1} parent=39 // pred_fallthru
        _
    $region40: #{tpu_custom_call.1} parent=5 // pred_fallthru
      _
    %p3356 = scmp.le.s32.totalorder 2, %s11
    // Predicated region
    $region45: #{tpu_custom_call.1} parent=5 // pred_check
      %p3357 = pneg %p3356
    $region46: #{tpu_custom_call.1} parent=5 // pred_check_branch
      %3359 = sbr.rel (%p3357) target = $region48
    $region47: #{tpu_custom_call.1} parent=5 // pred_region
      %s3360 = ssub.s32 %s11, 2
      // Predicated region
      $region49: #{tpu_custom_call.1} parent=47 // pred_check
        %p3361 = pneg %p150
      $region50: #{tpu_custom_call.1} parent=47 // pred_check_branch
        %3363 = sbr.rel (%p3361) target = $region52
      $region51: #{tpu_custom_call.1} parent=47 // pred_region
        %p3364 = scmp.lt.s32.totalorder %s17, 1
        %s3365 = scalar_select %p3364, %s17, 1
        %s3366 = smul.addr %s3365, 32
        %s3367 = smul.addr %s3366, 8
        %s3368 = scalar_lea.vmem %s5, %s3367
      $region52: #{tpu_custom_call.1} parent=47 // pred_fallthru
        _
    $region48: #{tpu_custom_call.1} parent=5 // pred_fallthru
      _
  $region6: #{tpu_custom_call.1} parent=0 // loop_footer
    %s15 = sadd.s32 1, %s11
  $region7: #{tpu_custom_call.1} parent=0 // loop_footer_branch
    %10 = sbr.rel target = $region3
  $region8: #{tpu_custom_call.1} parent=0 // loop_exit
    _

</llo_original>
